<compile_context>
chip_gen: v5e
topology: v5e:2x2
jax: 0.10.0
libtpu: 0.0.40
codegen_flags: <defaults>
</compile_context>

<pallas_src>
import functools

import jax
import jax.numpy as jnp
from jax.experimental import pallas as pl
from jax.experimental.pallas import tpu as pltpu


def residual_block_kernel(x_ref, w1_ref, b1_ref, w2_ref, b2_ref, out_ref,
                          pad_ref, *, H, W):
    # x_ref, out_ref : (1, C, H*W)      lane-dense flattened NCHW image
    # w*_ref         : (9, Cout, Cin)   tap t = ky*3 + kx
    # b*_ref         : (C, 1)
    # pad_ref        : (C, (H+2)*W + 2) f32 flat scratch; image data lives at
    #                  [OFF, OFF+H*W), zeros elsewhere act as the conv padding.
    C = pad_ref.shape[0]
    HW = H * W
    OFF = W + 1

    # Column-spill masks: in the flattened layout a horizontal tap offset of
    # -1/+1 wraps into the neighbouring image row for output columns 0 / W-1;
    # those taps read zero-padding in the 2-D conv, so mask them out.
    col = jax.lax.broadcasted_iota(jnp.int32, (1, HW), 1) % W
    mask_l = col != 0          # valid output lanes for kx == 0 taps
    mask_r = col != (W - 1)    # valid output lanes for kx == 2 taps

    def conv3x3(src_ref, w_ref):
        # 3x3 conv as 9 MXU matmuls with f32 accumulation.
        acc = jnp.zeros((C, HW), jnp.float32)
        for kx in range(3):
            part = jnp.zeros((C, HW), jnp.float32)
            for ky in range(3):
                start = OFF + (ky - 1) * W + (kx - 1)
                patch = src_ref[:, start:start + HW]               # (Cin, HW)
                w_tap = w_ref[ky * 3 + kx].astype(jnp.float32)     # (Cout, Cin)
                part = part + jnp.dot(w_tap, patch,
                                      preferred_element_type=jnp.float32,
                                      precision=jax.lax.Precision.HIGHEST)
            if kx == 0:
                part = jnp.where(mask_l, part, 0.0)
            elif kx == 2:
                part = jnp.where(mask_r, part, 0.0)
            acc = acc + part
        return acc

    x2d = x_ref[0].astype(jnp.float32)                             # (C, HW)

    # ---- conv1 + bias + ReLU -----------------------------------------------
    pad_ref[...] = jnp.zeros_like(pad_ref)       # zero halo (cheap, per-tile)
    pad_ref[:, OFF:OFF + HW] = x2d
    y = jnp.maximum(conv3x3(pad_ref, w1_ref) + b1_ref[...].astype(jnp.float32),
                    0.0)

    # ---- conv2 + bias (reuse the same scratch; halo is still zero) ----------
    pad_ref[:, OFF:OFF + HW] = y
    z = conv3x3(pad_ref, w2_ref) + b2_ref[...].astype(jnp.float32)

    # ---- residual + ReLU, lane-dense store ----------------------------------
    out_ref[0] = jnp.maximum(x2d + z, 0.0).astype(out_ref.dtype)


def residual_block(x_nchw, w1, b1, w2, b2):
    """x_nchw: (N, C, H, W); w: (Cout, Cin, 3, 3); b: (C,). Returns (N, C, H, W)."""
    N, C, H, W = x_nchw.shape
    HW = H * W
    Lf = (H + 2) * W + 2

    # Only free, contiguous reshapes of the activations; weight/bias reshapes
    # are on tiny tensors.
    x_flat = x_nchw.reshape(N, C, HW)
    w1_t = jnp.transpose(w1, (2, 3, 0, 1)).reshape(9, C, C)   # [t, co, ci]
    w2_t = jnp.transpose(w2, (2, 3, 0, 1)).reshape(9, C, C)
    b1_c = b1.reshape(C, 1)
    b2_c = b2.reshape(C, 1)

    kernel = functools.partial(residual_block_kernel, H=H, W=W)

    out_flat = pl.pallas_call(
        kernel,
        out_shape=jax.ShapeDtypeStruct((N, C, HW), x_nchw.dtype),
        grid_spec=pltpu.PrefetchScalarGridSpec(
            num_scalar_prefetch=0,
            grid=(N,),                                   # one image per step
            in_specs=[
                pl.BlockSpec((1, C, HW), lambda n: (n, 0, 0)),
                pl.BlockSpec((9, C, C), lambda n: (0, 0, 0)),
                pl.BlockSpec((C, 1), lambda n: (0, 0)),
                pl.BlockSpec((9, C, C), lambda n: (0, 0, 0)),
                pl.BlockSpec((C, 1), lambda n: (0, 0)),
            ],
            out_specs=pl.BlockSpec((1, C, HW), lambda n: (n, 0, 0)),
            scratch_shapes=[pltpu.VMEM((C, Lf), jnp.float32)],
        ),
        compiler_params=pltpu.CompilerParams(
            dimension_semantics=("parallel",)),          # pipelining + v7x megacore
    )(x_flat, w1_t, b1_c, w2_t, b2_c)

    return out_flat.reshape(N, C, H, W)


def ref_residual_block(x, w1, b1, w2, b2):
    """Pure-JAX reference matching torch semantics (NCHW / OIHW)."""
    dn = jax.lax.conv_dimension_numbers(x.shape, w1.shape, ("NCHW", "OIHW", "NCHW"))
    y = jax.lax.conv_general_dilated(
        x, w1, (1, 1), ((1, 1), (1, 1)), dimension_numbers=dn,
        precision=jax.lax.Precision.HIGHEST) + b1[None, :, None, None]
    y = jnp.maximum(y, 0.0)
    z = jax.lax.conv_general_dilated(
        y, w2, (1, 1), ((1, 1), (1, 1)), dimension_numbers=dn,
        precision=jax.lax.Precision.HIGHEST) + b2[None, :, None, None]
    return jnp.maximum(x + z, 0.0)


if __name__ == "__main__":
    key = jax.random.PRNGKey(0)
    kx_, kw1, kb1, kw2, kb2 = jax.random.split(key, 5)

    N, C, H, W = 2, 4, 16, 16
    x = jax.random.normal(kx_, (N, C, H, W), jnp.float32)

    # Deterministic Conv2d-style init: U(-1/sqrt(fan_in), 1/sqrt(fan_in)).
    bound = 1.0 / float((C * 3 * 3) ** 0.5)
    w1 = jax.random.uniform(kw1, (C, C, 3, 3), jnp.float32, -bound, bound)
    b1 = jax.random.uniform(kb1, (C,), jnp.float32, -bound, bound)
    w2 = jax.random.uniform(kw2, (C, C, 3, 3), jnp.float32, -bound, bound)
    b2 = jax.random.uniform(kb2, (C,), jnp.float32, -bound, bound)

    out = jax.block_until_ready(residual_block(x, w1, b1, w2, b2))

    ref = ref_residual_block(x, w1, b1, w2, b2)
    assert out.shape == (N, C, H, W)
    max_err = float(jnp.max(jnp.abs(out - ref)))
    assert jnp.allclose(out, ref, atol=1e-5, rtol=1e-5), max_err
    print("KERNEL_OK")
</pallas_src>

<mosaic_0001>
module attributes {stable_mosaic.version = 11 : i64} {
  func.func @residual_block_kernel(%arg0: i32, %arg1: memref<1x4x256xf32, #tpu.memory_space<vmem>>, %arg2: memref<9x4x4xf32, #tpu.memory_space<vmem>>, %arg3: memref<4x1xf32, #tpu.memory_space<vmem>>, %arg4: memref<9x4x4xf32, #tpu.memory_space<vmem>>, %arg5: memref<4x1xf32, #tpu.memory_space<vmem>>, %arg6: memref<1x4x256xf32, #tpu.memory_space<vmem>>, %arg7: memref<4x290xf32, #tpu.memory_space<vmem>>) attributes {dimension_semantics = [#tpu.dimension_semantics<parallel>], iteration_bounds = array<i64: 2>, scalar_prefetch = 0 : i64, scratch_operands = 1 : i64, tpu.core_type = #tpu.core_type<tc>, window_params = [{transform_indices = @transform_0, window_bounds = array<i64: 1, 4, 256>}, {pipeline_mode = #tpu.pipeline_mode<synchronous>, transform_indices = @transform_1, window_bounds = array<i64: 9, 4, 4>}, {pipeline_mode = #tpu.pipeline_mode<synchronous>, transform_indices = @transform_2, window_bounds = array<i64: 4, 1>}, {pipeline_mode = #tpu.pipeline_mode<synchronous>, transform_indices = @transform_3, window_bounds = array<i64: 9, 4, 4>}, {pipeline_mode = #tpu.pipeline_mode<synchronous>, transform_indices = @transform_4, window_bounds = array<i64: 4, 1>}, {transform_indices = @transform_5, window_bounds = array<i64: 1, 4, 256>}]} {
    %0 = tpu.iota {dimensions = array<i32: 1>} : vector<1x256xi32>
    %c16_i32 = arith.constant 16 : i32
    %c0_i32 = arith.constant 0 : i32
    %1 = arith.cmpi eq, %c16_i32, %c0_i32 : i32
    %c1_i32 = arith.constant 1 : i32
    %2 = arith.select %1, %c1_i32, %c16_i32 : i32
    %3 = vector.broadcast %2 : i32 to vector<1x256xi32>
    %4 = arith.remsi %0, %3 : vector<1x256xi32>
    %c0_i32_0 = arith.constant 0 : i32
    %5 = vector.broadcast %c0_i32_0 : i32 to vector<1x256xi32>
    %6 = arith.cmpi ne, %4, %5 : vector<1x256xi32>
    %c0_i32_1 = arith.constant 0 : i32
    %7 = vector.broadcast %c0_i32_1 : i32 to vector<1x256xi32>
    %8 = arith.cmpi slt, %4, %7 : vector<1x256xi32>
    %c0_i32_2 = arith.constant 0 : i32
    %9 = arith.cmpi slt, %2, %c0_i32_2 : i32
    %10 = vector.broadcast %9 : i1 to vector<1x256xi1>
    %11 = vector.broadcast %10 : vector<1x256xi1> to vector<1x256xi1>
    %12 = arith.xori %8, %11 : vector<1x256xi1>
    %13 = arith.andi %12, %6 : vector<1x256xi1>
    %14 = vector.broadcast %2 : i32 to vector<1x256xi32>
    %15 = arith.addi %4, %14 : vector<1x256xi32>
    %16 = arith.select %13, %15, %4 : vector<1x256xi1>, vector<1x256xi32>
    %c0_i32_3 = arith.constant 0 : i32
    %17 = vector.broadcast %c0_i32_3 : i32 to vector<1x256xi32>
    %18 = arith.cmpi ne, %16, %17 : vector<1x256xi32>
    %c15_i32 = arith.constant 15 : i32
    %19 = vector.broadcast %c15_i32 : i32 to vector<1x256xi32>
    %20 = arith.cmpi ne, %16, %19 : vector<1x256xi32>
    %c0 = arith.constant 0 : index
    %c0_4 = arith.constant 0 : index
    %c0_5 = arith.constant 0 : index
    %21 = vector.load %arg1[%c0, %c0_4, %c0_5] : memref<1x4x256xf32, #tpu.memory_space<vmem>>, vector<1x4x256xf32>
    %22 = vector.shape_cast %21 : vector<1x4x256xf32> to vector<4x256xf32>
    %cst = arith.constant 0.000000e+00 : f32
    %23 = vector.broadcast %cst : f32 to vector<4x290xf32>
    %c0_6 = arith.constant 0 : index
    %c0_7 = arith.constant 0 : index
    %24 = vector.load %arg7[%c0_6, %c0_7] : memref<4x290xf32, #tpu.memory_space<vmem>>, vector<4x290xf32>
    tpu.vector_store %arg7[%c0_6, %c0_7], %23 {strides = array<i32>} : memref<4x290xf32, #tpu.memory_space<vmem>>, vector<4x290xf32>,
    %c0_8 = arith.constant 0 : index
    %c17 = arith.constant 17 : index
    %25 = vector.load %arg7[%c0_8, %c17] : memref<4x290xf32, #tpu.memory_space<vmem>>, vector<4x256xf32>
    tpu.vector_store %arg7[%c0_8, %c17], %22 {strides = array<i32>} : memref<4x290xf32, #tpu.memory_space<vmem>>, vector<4x256xf32>,
    %cst_9 = arith.constant 0.000000e+00 : f32
    %26 = vector.broadcast %cst_9 : f32 to vector<4x256xf32>
    %cst_10 = arith.constant 0.000000e+00 : f32
    %27 = vector.broadcast %cst_10 : f32 to vector<4x256xf32>
    %c0_11 = arith.constant 0 : index
    %c0_12 = arith.constant 0 : index
    %28 = vector.load %arg7[%c0_11, %c0_12] : memref<4x290xf32, #tpu.memory_space<vmem>>, vector<4x256xf32>
    %c0_13 = arith.constant 0 : index
    %c0_14 = arith.constant 0 : index
    %c0_15 = arith.constant 0 : index
    %29 = vector.load %arg2[%c0_13, %c0_14, %c0_15] : memref<9x4x4xf32, #tpu.memory_space<vmem>>, vector<1x4x4xf32>
    %30 = vector.shape_cast %29 : vector<1x4x4xf32> to vector<4x4xf32>
    %cst_16 = arith.constant dense<0.000000e+00> : vector<4x256xf32>
    %31 = tpu.matmul %30, %28, %cst_16 {dimension_numbers = #tpu.dot_dimension_numbers<[1], [0], [0], [1], [0, 0, 1, 1], [], []>, precision = #tpu.contract_precision<fp32>} : vector<4x4xf32>, vector<4x256xf32>, vector<4x256xf32> -> vector<4x256xf32>
    %32 = arith.addf %27, %31 : vector<4x256xf32>
    %c0_17 = arith.constant 0 : index
    %c16 = arith.constant 16 : index
    %33 = vector.load %arg7[%c0_17, %c16] : memref<4x290xf32, #tpu.memory_space<vmem>>, vector<4x256xf32>
    %c3 = arith.constant 3 : index
    %c0_18 = arith.constant 0 : index
    %c0_19 = arith.constant 0 : index
    %34 = vector.load %arg2[%c3, %c0_18, %c0_19] : memref<9x4x4xf32, #tpu.memory_space<vmem>>, vector<1x4x4xf32>
    %35 = vector.shape_cast %34 : vector<1x4x4xf32> to vector<4x4xf32>
    %cst_20 = arith.constant dense<0.000000e+00> : vector<4x256xf32>
    %36 = tpu.matmul %35, %33, %cst_20 {dimension_numbers = #tpu.dot_dimension_numbers<[1], [0], [0], [1], [0, 0, 1, 1], [], []>, precision = #tpu.contract_precision<fp32>} : vector<4x4xf32>, vector<4x256xf32>, vector<4x256xf32> -> vector<4x256xf32>
    %37 = arith.addf %32, %36 : vector<4x256xf32>
    %c0_21 = arith.constant 0 : index
    %c32 = arith.constant 32 : index
    %38 = vector.load %arg7[%c0_21, %c32] : memref<4x290xf32, #tpu.memory_space<vmem>>, vector<4x256xf32>
    %c6 = arith.constant 6 : index
    %c0_22 = arith.constant 0 : index
    %c0_23 = arith.constant 0 : index
    %39 = vector.load %arg2[%c6, %c0_22, %c0_23] : memref<9x4x4xf32, #tpu.memory_space<vmem>>, vector<1x4x4xf32>
    %40 = vector.shape_cast %39 : vector<1x4x4xf32> to vector<4x4xf32>
    %cst_24 = arith.constant dense<0.000000e+00> : vector<4x256xf32>
    %41 = tpu.matmul %40, %38, %cst_24 {dimension_numbers = #tpu.dot_dimension_numbers<[1], [0], [0], [1], [0, 0, 1, 1], [], []>, precision = #tpu.contract_precision<fp32>} : vector<4x4xf32>, vector<4x256xf32>, vector<4x256xf32> -> vector<4x256xf32>
    %42 = arith.addf %37, %41 : vector<4x256xf32>
    %cst_25 = arith.constant 0.000000e+00 : f32
    %43 = vector.shape_cast %18 : vector<1x256xi1> to vector<1x256xi1>
    %44 = vector.broadcast %43 : vector<1x256xi1> to vector<4x256xi1>
    %45 = vector.broadcast %cst_25 : f32 to vector<4x256xf32>
    %46 = arith.select %44, %42, %45 : vector<4x256xi1>, vector<4x256xf32>
    %47 = arith.addf %26, %46 : vector<4x256xf32>
    %cst_26 = arith.constant 0.000000e+00 : f32
    %48 = vector.broadcast %cst_26 : f32 to vector<4x256xf32>
    %c0_27 = arith.constant 0 : index
    %c1 = arith.constant 1 : index
    %49 = vector.load %arg7[%c0_27, %c1] : memref<4x290xf32, #tpu.memory_space<vmem>>, vector<4x256xf32>
    %c1_28 = arith.constant 1 : index
    %c0_29 = arith.constant 0 : index
    %c0_30 = arith.constant 0 : index
    %50 = vector.load %arg2[%c1_28, %c0_29, %c0_30] : memref<9x4x4xf32, #tpu.memory_space<vmem>>, vector<1x4x4xf32>
    %51 = vector.shape_cast %50 : vector<1x4x4xf32> to vector<4x4xf32>
    %cst_31 = arith.constant dense<0.000000e+00> : vector<4x256xf32>
    %52 = tpu.matmul %51, %49, %cst_31 {dimension_numbers = #tpu.dot_dimension_numbers<[1], [0], [0], [1], [0, 0, 1, 1], [], []>, precision = #tpu.contract_precision<fp32>} : vector<4x4xf32>, vector<4x256xf32>, vector<4x256xf32> -> vector<4x256xf32>
    %53 = arith.addf %48, %52 : vector<4x256xf32>
    %c0_32 = arith.constant 0 : index
    %c17_33 = arith.constant 17 : index
    %54 = vector.load %arg7[%c0_32, %c17_33] : memref<4x290xf32, #tpu.memory_space<vmem>>, vector<4x256xf32>
    %c4 = arith.constant 4 : index
    %c0_34 = arith.constant 0 : index
    %c0_35 = arith.constant 0 : index
    %55 = vector.load %arg2[%c4, %c0_34, %c0_35] : memref<9x4x4xf32, #tpu.memory_space<vmem>>, vector<1x4x4xf32>
    %56 = vector.shape_cast %55 : vector<1x4x4xf32> to vector<4x4xf32>
    %cst_36 = arith.constant dense<0.000000e+00> : vector<4x256xf32>
    %57 = tpu.matmul %56, %54, %cst_36 {dimension_numbers = #tpu.dot_dimension_numbers<[1], [0], [0], [1], [0, 0, 1, 1], [], []>, precision = #tpu.contract_precision<fp32>} : vector<4x4xf32>, vector<4x256xf32>, vector<4x256xf32> -> vector<4x256xf32>
    %58 = arith.addf %53, %57 : vector<4x256xf32>
    %c0_37 = arith.constant 0 : index
    %c33 = arith.constant 33 : index
    %59 = vector.load %arg7[%c0_37, %c33] : memref<4x290xf32, #tpu.memory_space<vmem>>, vector<4x256xf32>
    %c7 = arith.constant 7 : index
    %c0_38 = arith.constant 0 : index
    %c0_39 = arith.constant 0 : index
    %60 = vector.load %arg2[%c7, %c0_38, %c0_39] : memref<9x4x4xf32, #tpu.memory_space<vmem>>, vector<1x4x4xf32>
    %61 = vector.shape_cast %60 : vector<1x4x4xf32> to vector<4x4xf32>
    %cst_40 = arith.constant dense<0.000000e+00> : vector<4x256xf32>
    %62 = tpu.matmul %61, %59, %cst_40 {dimension_numbers = #tpu.dot_dimension_numbers<[1], [0], [0], [1], [0, 0, 1, 1], [], []>, precision = #tpu.contract_precision<fp32>} : vector<4x4xf32>, vector<4x256xf32>, vector<4x256xf32> -> vector<4x256xf32>
    %63 = arith.addf %58, %62 : vector<4x256xf32>
    %64 = arith.addf %47, %63 : vector<4x256xf32>
    %cst_41 = arith.constant 0.000000e+00 : f32
    %65 = vector.broadcast %cst_41 : f32 to vector<4x256xf32>
    %c0_42 = arith.constant 0 : index
    %c2 = arith.constant 2 : index
    %66 = vector.load %arg7[%c0_42, %c2] : memref<4x290xf32, #tpu.memory_space<vmem>>, vector<4x256xf32>
    %c2_43 = arith.constant 2 : index
    %c0_44 = arith.constant 0 : index
    %c0_45 = arith.constant 0 : index
    %67 = vector.load %arg2[%c2_43, %c0_44, %c0_45] : memref<9x4x4xf32, #tpu.memory_space<vmem>>, vector<1x4x4xf32>
    %68 = vector.shape_cast %67 : vector<1x4x4xf32> to vector<4x4xf32>
    %cst_46 = arith.constant dense<0.000000e+00> : vector<4x256xf32>
    %69 = tpu.matmul %68, %66, %cst_46 {dimension_numbers = #tpu.dot_dimension_numbers<[1], [0], [0], [1], [0, 0, 1, 1], [], []>, precision = #tpu.contract_precision<fp32>} : vector<4x4xf32>, vector<4x256xf32>, vector<4x256xf32> -> vector<4x256xf32>
    %70 = arith.addf %65, %69 : vector<4x256xf32>
    %c0_47 = arith.constant 0 : index
    %c18 = arith.constant 18 : index
    %71 = vector.load %arg7[%c0_47, %c18] : memref<4x290xf32, #tpu.memory_space<vmem>>, vector<4x256xf32>
    %c5 = arith.constant 5 : index
    %c0_48 = arith.constant 0 : index
    %c0_49 = arith.constant 0 : index
    %72 = vector.load %arg2[%c5, %c0_48, %c0_49] : memref<9x4x4xf32, #tpu.memory_space<vmem>>, vector<1x4x4xf32>
    %73 = vector.shape_cast %72 : vector<1x4x4xf32> to vector<4x4xf32>
    %cst_50 = arith.constant dense<0.000000e+00> : vector<4x256xf32>
    %74 = tpu.matmul %73, %71, %cst_50 {dimension_numbers = #tpu.dot_dimension_numbers<[1], [0], [0], [1], [0, 0, 1, 1], [], []>, precision = #tpu.contract_precision<fp32>} : vector<4x4xf32>, vector<4x256xf32>, vector<4x256xf32> -> vector<4x256xf32>
    %75 = arith.addf %70, %74 : vector<4x256xf32>
    %c0_51 = arith.constant 0 : index
    %c34 = arith.constant 34 : index
    %76 = vector.load %arg7[%c0_51, %c34] : memref<4x290xf32, #tpu.memory_space<vmem>>, vector<4x256xf32>
    %c8 = arith.constant 8 : index
    %c0_52 = arith.constant 0 : index
    %c0_53 = arith.constant 0 : index
    %77 = vector.load %arg2[%c8, %c0_52, %c0_53] : memref<9x4x4xf32, #tpu.memory_space<vmem>>, vector<1x4x4xf32>
    %78 = vector.shape_cast %77 : vector<1x4x4xf32> to vector<4x4xf32>
    %cst_54 = arith.constant dense<0.000000e+00> : vector<4x256xf32>
    %79 = tpu.matmul %78, %76, %cst_54 {dimension_numbers = #tpu.dot_dimension_numbers<[1], [0], [0], [1], [0, 0, 1, 1], [], []>, precision = #tpu.contract_precision<fp32>} : vector<4x4xf32>, vector<4x256xf32>, vector<4x256xf32> -> vector<4x256xf32>
    %80 = arith.addf %75, %79 : vector<4x256xf32>
    %cst_55 = arith.constant 0.000000e+00 : f32
    %81 = vector.shape_cast %20 : vector<1x256xi1> to vector<1x256xi1>
    %82 = vector.broadcast %81 : vector<1x256xi1> to vector<4x256xi1>
    %83 = vector.broadcast %cst_55 : f32 to vector<4x256xf32>
    %84 = arith.select %82, %80, %83 : vector<4x256xi1>, vector<4x256xf32>
    %85 = arith.addf %64, %84 : vector<4x256xf32>
    %c0_56 = arith.constant 0 : index
    %c0_57 = arith.constant 0 : index
    %86 = vector.load %arg3[%c0_56, %c0_57] : memref<4x1xf32, #tpu.memory_space<vmem>>, vector<4x1xf32>
    %87 = vector.broadcast %86 : vector<4x1xf32> to vector<4x256xf32>
    %88 = arith.addf %85, %87 : vector<4x256xf32>
    %cst_58 = arith.constant 0.000000e+00 : f32
    %89 = vector.broadcast %cst_58 : f32 to vector<4x256xf32>
    %90 = arith.maximumf %88, %89 : vector<4x256xf32>
    %c0_59 = arith.constant 0 : index
    %c17_60 = arith.constant 17 : index
    %91 = vector.load %arg7[%c0_59, %c17_60] : memref<4x290xf32, #tpu.memory_space<vmem>>, vector<4x256xf32>
    tpu.vector_store %arg7[%c0_59, %c17_60], %90 {strides = array<i32>} : memref<4x290xf32, #tpu.memory_space<vmem>>, vector<4x256xf32>,
    %cst_61 = arith.constant 0.000000e+00 : f32
    %92 = vector.broadcast %cst_61 : f32 to vector<4x256xf32>
    %cst_62 = arith.constant 0.000000e+00 : f32
    %93 = vector.broadcast %cst_62 : f32 to vector<4x256xf32>
    %c0_63 = arith.constant 0 : index
    %c0_64 = arith.constant 0 : index
    %94 = vector.load %arg7[%c0_63, %c0_64] : memref<4x290xf32, #tpu.memory_space<vmem>>, vector<4x256xf32>
    %c0_65 = arith.constant 0 : index
    %c0_66 = arith.constant 0 : index
    %c0_67 = arith.constant 0 : index
    %95 = vector.load %arg4[%c0_65, %c0_66, %c0_67] : memref<9x4x4xf32, #tpu.memory_space<vmem>>, vector<1x4x4xf32>
    %96 = vector.shape_cast %95 : vector<1x4x4xf32> to vector<4x4xf32>
    %cst_68 = arith.constant dense<0.000000e+00> : vector<4x256xf32>
    %97 = tpu.matmul %96, %94, %cst_68 {dimension_numbers = #tpu.dot_dimension_numbers<[1], [0], [0], [1], [0, 0, 1, 1], [], []>, precision = #tpu.contract_precision<fp32>} : vector<4x4xf32>, vector<4x256xf32>, vector<4x256xf32> -> vector<4x256xf32>
    %98 = arith.addf %93, %97 : vector<4x256xf32>
    %c0_69 = arith.constant 0 : index
    %c16_70 = arith.constant 16 : index
    %99 = vector.load %arg7[%c0_69, %c16_70] : memref<4x290xf32, #tpu.memory_space<vmem>>, vector<4x256xf32>
    %c3_71 = arith.constant 3 : index
    %c0_72 = arith.constant 0 : index
    %c0_73 = arith.constant 0 : index
    %100 = vector.load %arg4[%c3_71, %c0_72, %c0_73] : memref<9x4x4xf32, #tpu.memory_space<vmem>>, vector<1x4x4xf32>
    %101 = vector.shape_cast %100 : vector<1x4x4xf32> to vector<4x4xf32>
    %cst_74 = arith.constant dense<0.000000e+00> : vector<4x256xf32>
    %102 = tpu.matmul %101, %99, %cst_74 {dimension_numbers = #tpu.dot_dimension_numbers<[1], [0], [0], [1], [0, 0, 1, 1], [], []>, precision = #tpu.contract_precision<fp32>} : vector<4x4xf32>, vector<4x256xf32>, vector<4x256xf32> -> vector<4x256xf32>
    %103 = arith.addf %98, %102 : vector<4x256xf32>
    %c0_75 = arith.constant 0 : index
    %c32_76 = arith.constant 32 : index
    %104 = vector.load %arg7[%c0_75, %c32_76] : memref<4x290xf32, #tpu.memory_space<vmem>>, vector<4x256xf32>
    %c6_77 = arith.constant 6 : index
    %c0_78 = arith.constant 0 : index
    %c0_79 = arith.constant 0 : index
    %105 = vector.load %arg4[%c6_77, %c0_78, %c0_79] : memref<9x4x4xf32, #tpu.memory_space<vmem>>, vector<1x4x4xf32>
    %106 = vector.shape_cast %105 : vector<1x4x4xf32> to vector<4x4xf32>
    %cst_80 = arith.constant dense<0.000000e+00> : vector<4x256xf32>
    %107 = tpu.matmul %106, %104, %cst_80 {dimension_numbers = #tpu.dot_dimension_numbers<[1], [0], [0], [1], [0, 0, 1, 1], [], []>, precision = #tpu.contract_precision<fp32>} : vector<4x4xf32>, vector<4x256xf32>, vector<4x256xf32> -> vector<4x256xf32>
    %108 = arith.addf %103, %107 : vector<4x256xf32>
    %cst_81 = arith.constant 0.000000e+00 : f32
    %109 = vector.shape_cast %18 : vector<1x256xi1> to vector<1x256xi1>
    %110 = vector.broadcast %109 : vector<1x256xi1> to vector<4x256xi1>
    %111 = vector.broadcast %cst_81 : f32 to vector<4x256xf32>
    %112 = arith.select %110, %108, %111 : vector<4x256xi1>, vector<4x256xf32>
    %113 = arith.addf %92, %112 : vector<4x256xf32>
    %cst_82 = arith.constant 0.000000e+00 : f32
    %114 = vector.broadcast %cst_82 : f32 to vector<4x256xf32>
    %c0_83 = arith.constant 0 : index
    %c1_84 = arith.constant 1 : index
    %115 = vector.load %arg7[%c0_83, %c1_84] : memref<4x290xf32, #tpu.memory_space<vmem>>, vector<4x256xf32>
    %c1_85 = arith.constant 1 : index
    %c0_86 = arith.constant 0 : index
    %c0_87 = arith.constant 0 : index
    %116 = vector.load %arg4[%c1_85, %c0_86, %c0_87] : memref<9x4x4xf32, #tpu.memory_space<vmem>>, vector<1x4x4xf32>
    %117 = vector.shape_cast %116 : vector<1x4x4xf32> to vector<4x4xf32>
    %cst_88 = arith.constant dense<0.000000e+00> : vector<4x256xf32>
    %118 = tpu.matmul %117, %115, %cst_88 {dimension_numbers = #tpu.dot_dimension_numbers<[1], [0], [0], [1], [0, 0, 1, 1], [], []>, precision = #tpu.contract_precision<fp32>} : vector<4x4xf32>, vector<4x256xf32>, vector<4x256xf32> -> vector<4x256xf32>
    %119 = arith.addf %114, %118 : vector<4x256xf32>
    %c0_89 = arith.constant 0 : index
    %c17_90 = arith.constant 17 : index
    %120 = vector.load %arg7[%c0_89, %c17_90] : memref<4x290xf32, #tpu.memory_space<vmem>>, vector<4x256xf32>
    %c4_91 = arith.constant 4 : index
    %c0_92 = arith.constant 0 : index
    %c0_93 = arith.constant 0 : index
    %121 = vector.load %arg4[%c4_91, %c0_92, %c0_93] : memref<9x4x4xf32, #tpu.memory_space<vmem>>, vector<1x4x4xf32>
    %122 = vector.shape_cast %121 : vector<1x4x4xf32> to vector<4x4xf32>
    %cst_94 = arith.constant dense<0.000000e+00> : vector<4x256xf32>
    %123 = tpu.matmul %122, %120, %cst_94 {dimension_numbers = #tpu.dot_dimension_numbers<[1], [0], [0], [1], [0, 0, 1, 1], [], []>, precision = #tpu.contract_precision<fp32>} : vector<4x4xf32>, vector<4x256xf32>, vector<4x256xf32> -> vector<4x256xf32>
    %124 = arith.addf %119, %123 : vector<4x256xf32>
    %c0_95 = arith.constant 0 : index
    %c33_96 = arith.constant 33 : index
    %125 = vector.load %arg7[%c0_95, %c33_96] : memref<4x290xf32, #tpu.memory_space<vmem>>, vector<4x256xf32>
    %c7_97 = arith.constant 7 : index
    %c0_98 = arith.constant 0 : index
    %c0_99 = arith.constant 0 : index
    %126 = vector.load %arg4[%c7_97, %c0_98, %c0_99] : memref<9x4x4xf32, #tpu.memory_space<vmem>>, vector<1x4x4xf32>
    %127 = vector.shape_cast %126 : vector<1x4x4xf32> to vector<4x4xf32>
    %cst_100 = arith.constant dense<0.000000e+00> : vector<4x256xf32>
    %128 = tpu.matmul %127, %125, %cst_100 {dimension_numbers = #tpu.dot_dimension_numbers<[1], [0], [0], [1], [0, 0, 1, 1], [], []>, precision = #tpu.contract_precision<fp32>} : vector<4x4xf32>, vector<4x256xf32>, vector<4x256xf32> -> vector<4x256xf32>
    %129 = arith.addf %124, %128 : vector<4x256xf32>
    %130 = arith.addf %113, %129 : vector<4x256xf32>
    %cst_101 = arith.constant 0.000000e+00 : f32
    %131 = vector.broadcast %cst_101 : f32 to vector<4x256xf32>
    %c0_102 = arith.constant 0 : index
    %c2_103 = arith.constant 2 : index
    %132 = vector.load %arg7[%c0_102, %c2_103] : memref<4x290xf32, #tpu.memory_space<vmem>>, vector<4x256xf32>
    %c2_104 = arith.constant 2 : index
    %c0_105 = arith.constant 0 : index
    %c0_106 = arith.constant 0 : index
    %133 = vector.load %arg4[%c2_104, %c0_105, %c0_106] : memref<9x4x4xf32, #tpu.memory_space<vmem>>, vector<1x4x4xf32>
    %134 = vector.shape_cast %133 : vector<1x4x4xf32> to vector<4x4xf32>
    %cst_107 = arith.constant dense<0.000000e+00> : vector<4x256xf32>
    %135 = tpu.matmul %134, %132, %cst_107 {dimension_numbers = #tpu.dot_dimension_numbers<[1], [0], [0], [1], [0, 0, 1, 1], [], []>, precision = #tpu.contract_precision<fp32>} : vector<4x4xf32>, vector<4x256xf32>, vector<4x256xf32> -> vector<4x256xf32>
    %136 = arith.addf %131, %135 : vector<4x256xf32>
    %c0_108 = arith.constant 0 : index
    %c18_109 = arith.constant 18 : index
    %137 = vector.load %arg7[%c0_108, %c18_109] : memref<4x290xf32, #tpu.memory_space<vmem>>, vector<4x256xf32>
    %c5_110 = arith.constant 5 : index
    %c0_111 = arith.constant 0 : index
    %c0_112 = arith.constant 0 : index
    %138 = vector.load %arg4[%c5_110, %c0_111, %c0_112] : memref<9x4x4xf32, #tpu.memory_space<vmem>>, vector<1x4x4xf32>
    %139 = vector.shape_cast %138 : vector<1x4x4xf32> to vector<4x4xf32>
    %cst_113 = arith.constant dense<0.000000e+00> : vector<4x256xf32>
    %140 = tpu.matmul %139, %137, %cst_113 {dimension_numbers = #tpu.dot_dimension_numbers<[1], [0], [0], [1], [0, 0, 1, 1], [], []>, precision = #tpu.contract_precision<fp32>} : vector<4x4xf32>, vector<4x256xf32>, vector<4x256xf32> -> vector<4x256xf32>
    %141 = arith.addf %136, %140 : vector<4x256xf32>
    %c0_114 = arith.constant 0 : index
    %c34_115 = arith.constant 34 : index
    %142 = vector.load %arg7[%c0_114, %c34_115] : memref<4x290xf32, #tpu.memory_space<vmem>>, vector<4x256xf32>
    %c8_116 = arith.constant 8 : index
    %c0_117 = arith.constant 0 : index
    %c0_118 = arith.constant 0 : index
    %143 = vector.load %arg4[%c8_116, %c0_117, %c0_118] : memref<9x4x4xf32, #tpu.memory_space<vmem>>, vector<1x4x4xf32>
    %144 = vector.shape_cast %143 : vector<1x4x4xf32> to vector<4x4xf32>
    %cst_119 = arith.constant dense<0.000000e+00> : vector<4x256xf32>
    %145 = tpu.matmul %144, %142, %cst_119 {dimension_numbers = #tpu.dot_dimension_numbers<[1], [0], [0], [1], [0, 0, 1, 1], [], []>, precision = #tpu.contract_precision<fp32>} : vector<4x4xf32>, vector<4x256xf32>, vector<4x256xf32> -> vector<4x256xf32>
    %146 = arith.addf %141, %145 : vector<4x256xf32>
    %cst_120 = arith.constant 0.000000e+00 : f32
    %147 = vector.shape_cast %20 : vector<1x256xi1> to vector<1x256xi1>
    %148 = vector.broadcast %147 : vector<1x256xi1> to vector<4x256xi1>
    %149 = vector.broadcast %cst_120 : f32 to vector<4x256xf32>
    %150 = arith.select %148, %146, %149 : vector<4x256xi1>, vector<4x256xf32>
    %151 = arith.addf %130, %150 : vector<4x256xf32>
    %c0_121 = arith.constant 0 : index
    %c0_122 = arith.constant 0 : index
    %152 = vector.load %arg5[%c0_121, %c0_122] : memref<4x1xf32, #tpu.memory_space<vmem>>, vector<4x1xf32>
    %153 = vector.broadcast %152 : vector<4x1xf32> to vector<4x256xf32>
    %154 = arith.addf %151, %153 : vector<4x256xf32>
    %155 = arith.addf %22, %154 : vector<4x256xf32>
    %cst_123 = arith.constant 0.000000e+00 : f32
    %156 = vector.broadcast %cst_123 : f32 to vector<4x256xf32>
    %157 = arith.maximumf %155, %156 : vector<4x256xf32>
    %c0_124 = arith.constant 0 : index
    %c0_125 = arith.constant 0 : index
    %c0_126 = arith.constant 0 : index
    %158 = vector.load %arg6[%c0_124, %c0_125, %c0_126] : memref<1x4x256xf32, #tpu.memory_space<vmem>>, vector<1x4x256xf32>
    %159 = vector.shape_cast %158 : vector<1x4x256xf32> to vector<4x256xf32>
    %160 = vector.shape_cast %157 : vector<4x256xf32> to vector<1x4x256xf32>
    tpu.vector_store %arg6[%c0_124, %c0_125, %c0_126], %160 {strides = array<i32>} : memref<1x4x256xf32, #tpu.memory_space<vmem>>, vector<1x4x256xf32>,
    return
  }
  func.func @transform_0(%arg0: i32) -> (i32, i32, i32) {
    %c0_i32 = arith.constant 0 : i32
    %c0_i32_0 = arith.constant 0 : i32
    %c0_i32_1 = arith.constant 0 : i32
    return %arg0, %c0_i32, %c0_i32_0 : i32, i32, i32
  }
  func.func @transform_1(%arg0: i32) -> (i32, i32, i32) {
    %c0_i32 = arith.constant 0 : i32
    %c0_i32_0 = arith.constant 0 : i32
    %c0_i32_1 = arith.constant 0 : i32
    %c0_i32_2 = arith.constant 0 : i32
    return %c0_i32, %c0_i32_0, %c0_i32_1 : i32, i32, i32
  }
  func.func @transform_2(%arg0: i32) -> (i32, i32) {
    %c0_i32 = arith.constant 0 : i32
    %c0_i32_0 = arith.constant 0 : i32
    %c0_i32_1 = arith.constant 0 : i32
    return %c0_i32, %c0_i32_0 : i32, i32
  }
  func.func @transform_3(%arg0: i32) -> (i32, i32, i32) {
    %c0_i32 = arith.constant 0 : i32
    %c0_i32_0 = arith.constant 0 : i32
    %c0_i32_1 = arith.constant 0 : i32
    %c0_i32_2 = arith.constant 0 : i32
    return %c0_i32, %c0_i32_0, %c0_i32_1 : i32, i32, i32
  }
  func.func @transform_4(%arg0: i32) -> (i32, i32) {
    %c0_i32 = arith.constant 0 : i32
    %c0_i32_0 = arith.constant 0 : i32
    %c0_i32_1 = arith.constant 0 : i32
    return %c0_i32, %c0_i32_0 : i32, i32
  }
  func.func @transform_5(%arg0: i32) -> (i32, i32, i32) {
    %c0_i32 = arith.constant 0 : i32
    %c0_i32_0 = arith.constant 0 : i32
    %c0_i32_1 = arith.constant 0 : i32
    return %arg0, %c0_i32, %c0_i32_0 : i32, i32, i32
  }
}

</mosaic_0001>

<llo_original>
// kernel: tpu_custom_call.1
$region0: #{tpu_custom_call.1}
  #allocation0 [shape = 'u32[]', space=smem, size = 0x4, offset = 0x4, fixed_abs, tag = 'smem constant byte address 0x4 - core index']
  #allocation1 [shape = 'u32[72,128]{1,0:T(1,128)}', space=vmem, size = 0x9000, scoped, tag = 'internal scratch']
  #allocation2 [shape = 'f32[4,290]{1,0:T(4,128)}', space=vmem, size = 0x1800, scoped, tag = 'scratch operand']
  %s0 = inlined_call_operand.vmem [shape: f32[2,4,256], index: 0, kind: input, shape index: {}]
  %s1 = inlined_call_operand.vmem [shape: f32[9,4,4], index: 1, kind: input, shape index: {}]
  %s2 = inlined_call_operand.vmem [shape: f32[4,1], index: 2, kind: input, shape index: {}]
  %s3 = inlined_call_operand.vmem [shape: f32[9,4,4], index: 3, kind: input, shape index: {}]
  %s4 = inlined_call_operand.vmem [shape: f32[4,1], index: 4, kind: input, shape index: {}]
  %s5 = inlined_call_operand.hbm [shape: f32[2,4,256], index: 5, kind: output, shape index: {}]
  %s6 = sld [smem:[#allocation0]]
  $region53: #{tpu_custom_call.1} parent=0
    _
  %s8 = ssub.s32 1, %s6
  %s9 = scalar_select 0, %s8, %s6
  $region1: #{tpu_custom_call.1} parent=0
    #allocation3 [shape = 'u8[8192]{0}', space=vmem, size = 0x2000, scoped, tag = 'output window, operand 0']
    #allocation4 [shape = 's32[2]{0}', space=sflag, size = 0x8, scoped, tag = 'scoped memory for tpu_custom_call.1']
    %10 = vsyncpa [#allocation4], 0
    %s11 = scalar_lea.sflag [#allocation4], 1
    %12 = vsyncpa %s11, 0
    loop: start=0, step=1, limit=4
    $region2: #{tpu_custom_call.1} parent=1 // loop_pre_header
      _
    $region3: #{tpu_custom_call.1} parent=1 // loop_header
      %s14 = sphi 0, %s18
      %p15 = scmp.ge.s32.totalorder %s14, 4
      %s24 = sphi 0, %s26
      %s27 = sphi 0, %s24
      %s28 = sphi 0, %s27
      %s44 = sphi 0, %s28
      %s48 = sphi 0, %s48
      %s50 = sphi 0, %s48
      %s51 = sphi 0, %s50
      %s65 = sphi 0, %s51
      %s69 = sphi 0, %s69
      %s71 = sphi 0, %s69
      %s72 = sphi 0, %s71
      %s86 = sphi 0, %s72
      %s90 = sphi 0, %s90
      %s92 = sphi 0, %s90
      %s93 = sphi 0, %s92
      %s107 = sphi 0, %s93
      %s111 = sphi 0, %s111
      %s113 = sphi 0, %s111
      %s114 = sphi 0, %s113
      %s128 = sphi 0, %s114
      %s134 = sphi 0, %s136
      %s137 = sphi 0, %s134
      %s138 = sphi 0, %s137
      %s154 = sphi 0, %s138
    $region4: #{tpu_custom_call.1} parent=1 // loop_header_branch
      %17 = sbr.rel (%p15) target = $region8
    $region5: #{tpu_custom_call.1} parent=1 // loop_body
      %s19 = ssub.s32 %s14, 1
      %s20 = ssub.s32 %s14, 2
      %s21 = sadd.s32 %s14, 1
      %s22 = ssub.s32 %s14, %s21
      %p23 = scmp.eq.s32.totalorder %s22, 0
      %s25 = sadd.s32 %s24, 1
      %s26 = scalar_select %p23, %s24, %s25
      %p29 = pneg %p23
      %p30 = scmp.eq.s32.totalorder %s14, 1
      %p31 = por %p29, %p30
      %p32 = scmp.ne.s32.totalorder %s24, %s27
      %p33 = scmp.eq.s32.totalorder %s14, 0
      %p34 = por %p32, %p33
      %p35 = scmp.ne.s32.totalorder %s24, %s27
      %p36 = scmp.eq.s32.totalorder %s19, 1
      %p37 = por %p35, %p36
      %p38 = scmp.ne.s32.totalorder %s27, %s28
      %p39 = scmp.eq.s32.totalorder %s19, 0
      %p40 = por %p38, %p39
      %p41 = scmp.ne.s32.totalorder %s27, %s28
      %p42 = scmp.eq.s32.totalorder %s20, 1
      %p43 = por %p41, %p42
      %p45 = scmp.ne.s32.totalorder %s28, %s44
      %p46 = scmp.eq.s32.totalorder %s20, 0
      %p47 = por %p45, %p46
      %s49 = sadd.s32 %s48, 1
      %p52 = scmp.eq.s32.totalorder %s14, 1
      %p53 = scmp.ne.s32.totalorder %s48, %s50
      %p54 = scmp.eq.s32.totalorder %s14, 0
      %p55 = por %p53, %p54
      %p56 = scmp.ne.s32.totalorder %s48, %s50
      %p57 = scmp.eq.s32.totalorder %s19, 1
      %p58 = por %p56, %p57
      %p59 = scmp.ne.s32.totalorder %s50, %s51
      %p60 = scmp.eq.s32.totalorder %s19, 0
      %p61 = por %p59, %p60
      %p62 = scmp.ne.s32.totalorder %s50, %s51
      %p63 = scmp.eq.s32.totalorder %s20, 1
      %p64 = por %p62, %p63
      %p66 = scmp.ne.s32.totalorder %s51, %s65
      %p67 = scmp.eq.s32.totalorder %s20, 0
      %p68 = por %p66, %p67
      %s70 = sadd.s32 %s69, 1
      %p73 = scmp.eq.s32.totalorder %s14, 1
      %p74 = scmp.ne.s32.totalorder %s69, %s71
      %p75 = scmp.eq.s32.totalorder %s14, 0
      %p76 = por %p74, %p75
      %p77 = scmp.ne.s32.totalorder %s69, %s71
      %p78 = scmp.eq.s32.totalorder %s19, 1
      %p79 = por %p77, %p78
      %p80 = scmp.ne.s32.totalorder %s71, %s72
      %p81 = scmp.eq.s32.totalorder %s19, 0
      %p82 = por %p80, %p81
      %p83 = scmp.ne.s32.totalorder %s71, %s72
      %p84 = scmp.eq.s32.totalorder %s20, 1
      %p85 = por %p83, %p84
      %p87 = scmp.ne.s32.totalorder %s72, %s86
      %p88 = scmp.eq.s32.totalorder %s20, 0
      %p89 = por %p87, %p88
      %s91 = sadd.s32 %s90, 1
      %p94 = scmp.eq.s32.totalorder %s14, 1
      %p95 = scmp.ne.s32.totalorder %s90, %s92
      %p96 = scmp.eq.s32.totalorder %s14, 0
      %p97 = por %p95, %p96
      %p98 = scmp.ne.s32.totalorder %s90, %s92
      %p99 = scmp.eq.s32.totalorder %s19, 1
      %p100 = por %p98, %p99
      %p101 = scmp.ne.s32.totalorder %s92, %s93
      %p102 = scmp.eq.s32.totalorder %s19, 0
      %p103 = por %p101, %p102
      %p104 = scmp.ne.s32.totalorder %s92, %s93
      %p105 = scmp.eq.s32.totalorder %s20, 1
      %p106 = por %p104, %p105
      %p108 = scmp.ne.s32.totalorder %s93, %s107
      %p109 = scmp.eq.s32.totalorder %s20, 0
      %p110 = por %p108, %p109
      %s112 = sadd.s32 %s111, 1
      %p115 = scmp.eq.s32.totalorder %s14, 1
      %p116 = scmp.ne.s32.totalorder %s111, %s113
      %p117 = scmp.eq.s32.totalorder %s14, 0
      %p118 = por %p116, %p117
      %p119 = scmp.ne.s32.totalorder %s111, %s113
      %p120 = scmp.eq.s32.totalorder %s19, 1
      %p121 = por %p119, %p120
      %p122 = scmp.ne.s32.totalorder %s113, %s114
      %p123 = scmp.eq.s32.totalorder %s19, 0
      %p124 = por %p122, %p123
      %p125 = scmp.ne.s32.totalorder %s113, %s114
      %p126 = scmp.eq.s32.totalorder %s20, 1
      %p127 = por %p125, %p126
      %p129 = scmp.ne.s32.totalorder %s114, %s128
      %p130 = scmp.eq.s32.totalorder %s20, 0
      %p131 = por %p129, %p130
      %s132 = ssub.s32 %s14, %s21
      %p133 = scmp.eq.s32.totalorder %s132, 0
      %s135 = sadd.s32 %s134, 1
      %s136 = scalar_select %p133, %s134, %s135
      %p139 = pneg %p133
      %p140 = scmp.eq.s32.totalorder %s14, 1
      %p141 = por %p139, %p140
      %p142 = scmp.ne.s32.totalorder %s134, %s137
      %p143 = scmp.eq.s32.totalorder %s14, 0
      %p144 = por %p142, %p143
      %p145 = scmp.ne.s32.totalorder %s134, %s137
      %p146 = scmp.eq.s32.totalorder %s19, 1
      %p147 = por %p145, %p146
      %p148 = scmp.ne.s32.totalorder %s137, %s138
      %p149 = scmp.eq.s32.totalorder %s19, 0
      %p150 = por %p148, %p149
      %p151 = scmp.ne.s32.totalorder %s137, %s138
      %p152 = scmp.eq.s32.totalorder %s20, 1
      %p153 = por %p151, %p152
      %p155 = scmp.ne.s32.totalorder %s138, %s154
      %p156 = scmp.eq.s32.totalorder %s20, 0
      %p157 = por %p155, %p156
      %p158 = scmp.le.s32.totalorder 1, %s14
      %p159 = scmp.lt.s32.totalorder %s14, 3
      %p160 = pnand %p158, %p159
      %p161 = pneg %p160
      // Predicated region
      $region9: #{tpu_custom_call.1} parent=5 // pred_check
        _
      $region10: #{tpu_custom_call.1} parent=5 // pred_check_branch
        %163 = sbr.rel (%p160) target = $region12
      $region11: #{tpu_custom_call.1} parent=5 // pred_region
        %s164 = ssub.s32 %s14, 1
        // Predicated region
        $region13: #{tpu_custom_call.1} parent=11 // pred_check
          %p165 = pneg %p61
        $region14: #{tpu_custom_call.1} parent=11 // pred_check_branch
          %167 = sbr.rel (%p165) target = $region16
        $region15: #{tpu_custom_call.1} parent=11 // pred_region
          _
        $region16: #{tpu_custom_call.1} parent=11 // pred_fallthru
          _
        // Predicated region
        $region17: #{tpu_custom_call.1} parent=11 // pred_check
          %p168 = pneg %p82
        $region18: #{tpu_custom_call.1} parent=11 // pred_check_branch
          %170 = sbr.rel (%p168) target = $region20
        $region19: #{tpu_custom_call.1} parent=11 // pred_region
          _
        $region20: #{tpu_custom_call.1} parent=11 // pred_fallthru
          _
        // Predicated region
        $region21: #{tpu_custom_call.1} parent=11 // pred_check
          %p171 = pneg %p103
        $region22: #{tpu_custom_call.1} parent=11 // pred_check_branch
          %173 = sbr.rel (%p171) target = $region24
        $region23: #{tpu_custom_call.1} parent=11 // pred_region
          _
        $region24: #{tpu_custom_call.1} parent=11 // pred_fallthru
          _
        // Predicated region
        $region25: #{tpu_custom_call.1} parent=11 // pred_check
          %p174 = pneg %p124
        $region26: #{tpu_custom_call.1} parent=11 // pred_check_branch
          %176 = sbr.rel (%p174) target = $region28
        $region27: #{tpu_custom_call.1} parent=11 // pred_region
          _
        $region28: #{tpu_custom_call.1} parent=11 // pred_fallthru
          _
      $region12: #{tpu_custom_call.1} parent=5 // pred_fallthru
        _
      %p177 = scmp.lt.s32.totalorder %s14, 2
      // Predicated region
      $region29: #{tpu_custom_call.1} parent=5 // pred_check
        %p178 = pneg %p177
      $region30: #{tpu_custom_call.1} parent=5 // pred_check_branch
        %180 = sbr.rel (%p178) target = $region32
      $region31: #{tpu_custom_call.1} parent=5 // pred_region
        // Predicated region
        $region33: #{tpu_custom_call.1} parent=31 // pred_check
          %p181 = pneg %p34
        $region34: #{tpu_custom_call.1} parent=31 // pred_check_branch
          %183 = sbr.rel (%p181) target = $region36
        $region35: #{tpu_custom_call.1} parent=31 // pred_region
          %p184 = scmp.lt.s32.totalorder %s14, 1
          %s185 = scalar_select %p184, %s14, 1
          %s186 = smul.addr %s185, 2
          %s187 = smul.addr %s186, 4
          %s188 = scalar_lea.vmem %s0, %s187
        $region36: #{tpu_custom_call.1} parent=31 // pred_fallthru
          _
      $region32: #{tpu_custom_call.1} parent=5 // pred_fallthru
        _
      %p189 = scmp.le.s32.totalorder 1, %s14
      %p190 = scmp.lt.s32.totalorder %s14, 3
      %p191 = pnand %p189, %p190
      %p192 = pneg %p191
      // Predicated region
      $region37: #{tpu_custom_call.1} parent=5 // pred_check
        _
      $region38: #{tpu_custom_call.1} parent=5 // pred_check_branch
        %194 = sbr.rel (%p191) target = $region40
      $region39: #{tpu_custom_call.1} parent=5 // pred_region
        %s195 = ssub.s32 %s14, 1
        %p196 = scmp.lt.s32.totalorder %s19, 1
        %s197 = scalar_select %p196, %s19, 1
        %s198 = smul.addr %s197, 2
        %s199 = smul.addr %s198, 4
        %s200 = scalar_lea.vmem %s0, %s199
        %p201 = pneg %p40
        %p202 = pneg %p37
        %p203 = pneg %p61
        %p204 = pneg %p58
        %p205 = pneg %p82
        %p206 = pneg %p79
        %p207 = pneg %p103
        %p208 = pneg %p100
        %p209 = pneg %p124
        %p210 = pneg %p121
        %p211 = pneg %p150
        %p212 = pneg %p147
        %s213 = sand.u32 %s137, 1
        %s214 = scalar_lea.sflag [#allocation4], %s213
        %s215 = sand.u32 %s137, 1
        %s216 = smul.addr %s215, 8
        %s217 = scalar_lea.vmem [#allocation3], %s216
        %p218 = scmp.lt.s32.totalorder %s19, 1
        %s219 = scalar_select %p218, %s19, 1
        %s220 = smul.addr %s219, 2
        %s221 = smul.addr %s220, 4
        %s222 = scalar_lea.vmem %s0, %s221
        %v223 = vlaneseq
        %v224 = vand.u32 %v223, 127
        %v225 = vadd.s32 %v224, 128
        %vm226 = vcmp.lt.s32.totalorder %v224, 0
        %v227 = vsub.s32 0, %v224
        %v228 = vsel %vm226, %v227, %v224
        %v229 = vshrl.u32 %v228, 4
        %v230 = vand.u32 %v228, 15
        %v231 = vsub.s32 0, %v230
        %v232 = vsel %vm226, %v231, %v230
        %vm233 = vcmp.lt.s32.totalorder %v225, 0
        %v234 = vsub.s32 0, %v225
        %v235 = vsel %vm233, %v234, %v225
        %v236 = vshrl.u32 %v235, 4
        %v237 = vand.u32 %v235, 15
        %v238 = vsub.s32 0, %v237
        %v239 = vsel %vm233, %v238, %v237
        %vm240 = vcmp.ne.s32.totalorder %v232, 0
        %vm241 = vcmp.ne.s32.totalorder %v239, 0
        %vm242 = vcmp.lt.s32.totalorder %v232, 0
        %vm243 = vcmp.lt.s32.totalorder %v239, 0
        %vm244 = vmand %vm242, %vm240
        %vm245 = vmand %vm243, %vm241
        %v246 = vadd.s32 %v232, 16
        %v247 = vadd.s32 %v239, 16
        %v248 = vsel %vm244, %v246, %v232
        %v249 = vsel %vm245, %v247, %v239
        %vm250 = vcmp.ne.s32.totalorder %v248, 0
        %vm251 = vcmp.ne.s32.totalorder %v249, 0
        %vm252 = vcmp.ne.s32.totalorder %v248, 15
        %vm253 = vcmp.ne.s32.totalorder %v249, 15
        %v254 = vld [vmem:[%s222] sm:$0xff]
        %255 = vst [vmem:[#allocation2] sm:$0xff] 0.0
        %vm256 = vcmask 273408
        %257 = vst.msk [vmem:[#allocation2 + $0x8] sm:$0xf] %vm256, 0.0
        %259 = vrot.lane.b32.xlu0 %v254, 17
        %v260 = vpop.permute.xlu0 %259
        %v261 = vrot.slane %v260, 4
        %vm262 = vcmask 138240
        %v263 = vsel %vm262, %v261, %v260
        %vm266 = vcmask 1043592
        %vm267 = vcmask 1047556
        %vm268 = vmor %vm267, %vm266
        %269 = vst.msk [vmem:[#allocation2] sm:$0xff] %vm268, %v263
        %vm270 = vcmask 134144
        %271 = vst.msk [vmem:[#allocation2 + $0x8] sm:$0xf] %vm270, %v261
        %v272 = vld [vmem:[#allocation2] sm:$0xff]
        %v273 = vld [vmem:[%s1] sm:$0xf]
        %v274 = vld [vmem:[#allocation2 + $0x8] sm:$0xf]
        %s275 = scalar_lea.vmem %s1, 12
        %v276 = vld [vmem:[%s275] sm:$0xf]
        %279 = vst [vmem:[#allocation1] ss:$2 sm:$0xff] %v272
        %s280 = scalar_lea.vmem [#allocation1], 16
        %281 = vst [vmem:[%s280] ss:$2 sm:$0xff] %v274
        %v282 = vld.sshfl [vmem:[#allocation1] sm:$0xff pattern:$0x75316420]
        %v283 = vld.sshfl [vmem:[#allocation1 + $0x8] sm:$0xff pattern:$0x75316420]
        %v284 = vld.sshfl [vmem:[#allocation1 + $0x10] sm:$0xff pattern:$0x75316420]
        %285 = vrot.lane.b32.xlu0 %v282, 112
        %v286 = vpop.permute.xlu0 %285
        %287 = vrot.lane.b32.xlu0 %v283, 112
        %v288 = vpop.permute.xlu0 %287
        %289 = vrot.lane.b32.xlu0 %v284, 112
        %v290 = vpop.permute.xlu0 %289
        %vm291 = vcmask 916480
        %v292 = vsel %vm291, %v286, %v288
        %v293 = vsel %vm291, %v288, %v290
        %vm294 = vcmask 31744
        %v296 = vsel %vm294, %v276, 0
        %vm298 = vcmask 1043456
        %v299 = vsel %vm298, %v292, 0
        %v301 = vsel %vm298, %v293, 0
        %303 = vmatpush.msra.mxu0 0.0
        %304 = vmatpush.msra.mxu0 0.0
        %305 = vmatpush.msra.mxu0 0.0
        %306 = vmatpush.msra.mxu0 0.0
        %307 = vmatpush.msra.mxu0 0.0
        %308 = vmatpush.msra.mxu0 0.0
        %309 = vmatpush.msra.mxu0 0.0
        %310 = vmatpush.msra.mxu0 0.0
        %311 = vmatpush.msra.mxu0 0.0
        %312 = vmatpush.msra.mxu0 0.0
        %313 = vmatpush.msra.mxu0 0.0
        %314 = vmatpush.msra.mxu0 0.0
        %315 = vmatpush.msra.mxu0 0.0
        %316 = vmatpush.msra.mxu0 0.0
        %317 = vmatpush.msra.mxu0 0.0
        %v318 = vand.u32 %v299, 4294901760
        %319 = vmatpush.msra.mxu0 %v318
        %v320 = vand.u32 %v296, 4294901760
        %v321 = vsub.f32 %v296, %v320
        %v322 = vand.u32 %v321, 4294901760
        %v323 = vsub.f32 %v321, %v322
        %v324 = vand.u32 %v323, 4294901760
        %325 = vmatmul.f32.gmra.mxu0 %v324
        %v326 = vpop.f32.mrf.mxu0
        %v327 = vadd.f32 0.0, %v326
        %328 = vdwg.mxu0
        %329 = vmatpush.msra.mxu0 0.0
        %330 = vmatpush.msra.mxu0 0.0
        %331 = vmatpush.msra.mxu0 0.0
        %332 = vmatpush.msra.mxu0 0.0
        %333 = vmatpush.msra.mxu0 0.0
        %334 = vmatpush.msra.mxu0 0.0
        %335 = vmatpush.msra.mxu0 0.0
        %336 = vmatpush.msra.mxu0 0.0
        %337 = vmatpush.msra.mxu0 0.0
        %338 = vmatpush.msra.mxu0 0.0
        %339 = vmatpush.msra.mxu0 0.0
        %340 = vmatpush.msra.mxu0 0.0
        %341 = vmatpush.msra.mxu0 0.0
        %342 = vmatpush.msra.mxu0 0.0
        %343 = vmatpush.msra.mxu0 0.0
        %v344 = vand.u32 %v299, 4294901760
        %v345 = vsub.f32 %v299, %v344
        %v346 = vand.u32 %v345, 4294901760
        %v347 = vsub.f32 %v345, %v346
        %v348 = vand.u32 %v347, 4294901760
        %349 = vmatpush.msra.mxu0 %v348
        %v350 = vand.u32 %v296, 4294901760
        %351 = vmatmul.f32.gmra.mxu0 %v350
        %v352 = vpop.f32.mrf.mxu0
        %v353 = vadd.f32 %v327, %v352
        %354 = vdwg.mxu0
        %355 = vmatpush.msra.mxu0 0.0
        %356 = vmatpush.msra.mxu0 0.0
        %357 = vmatpush.msra.mxu0 0.0
        %358 = vmatpush.msra.mxu0 0.0
        %359 = vmatpush.msra.mxu0 0.0
        %360 = vmatpush.msra.mxu0 0.0
        %361 = vmatpush.msra.mxu0 0.0
        %362 = vmatpush.msra.mxu0 0.0
        %363 = vmatpush.msra.mxu0 0.0
        %364 = vmatpush.msra.mxu0 0.0
        %365 = vmatpush.msra.mxu0 0.0
        %366 = vmatpush.msra.mxu0 0.0
        %367 = vmatpush.msra.mxu0 0.0
        %368 = vmatpush.msra.mxu0 0.0
        %369 = vmatpush.msra.mxu0 0.0
        %v370 = vand.u32 %v299, 4294901760
        %v371 = vsub.f32 %v299, %v370
        %372 = vmatpush.msra.mxu0 %v371
        %v373 = vand.u32 %v296, 4294901760
        %v374 = vsub.f32 %v296, %v373
        %375 = vmatmul.f32.gmra.mxu0 %v374
        %v376 = vpop.f32.mrf.mxu0
        %v377 = vadd.f32 %v353, %v376
        %378 = vdwg.mxu0
        %379 = vmatpush.msra.mxu0 0.0
        %380 = vmatpush.msra.mxu0 0.0
        %381 = vmatpush.msra.mxu0 0.0
        %382 = vmatpush.msra.mxu0 0.0
        %383 = vmatpush.msra.mxu0 0.0
        %384 = vmatpush.msra.mxu0 0.0
        %385 = vmatpush.msra.mxu0 0.0
        %386 = vmatpush.msra.mxu0 0.0
        %387 = vmatpush.msra.mxu0 0.0
        %388 = vmatpush.msra.mxu0 0.0
        %389 = vmatpush.msra.mxu0 0.0
        %390 = vmatpush.msra.mxu0 0.0
        %391 = vmatpush.msra.mxu0 0.0
        %392 = vmatpush.msra.mxu0 0.0
        %393 = vmatpush.msra.mxu0 0.0
        %v394 = vand.u32 %v299, 4294901760
        %395 = vmatpush.msra.mxu0 %v394
        %v396 = vand.u32 %v296, 4294901760
        %v397 = vsub.f32 %v296, %v396
        %v398 = vand.u32 %v397, 4294901760
        %399 = vmatmul.f32.gmra.mxu0 %v398
        %v400 = vpop.f32.mrf.mxu0
        %v401 = vadd.f32 %v377, %v400
        %402 = vdwg.mxu0
        %403 = vmatpush.msra.mxu0 0.0
        %404 = vmatpush.msra.mxu0 0.0
        %405 = vmatpush.msra.mxu0 0.0
        %406 = vmatpush.msra.mxu0 0.0
        %407 = vmatpush.msra.mxu0 0.0
        %408 = vmatpush.msra.mxu0 0.0
        %409 = vmatpush.msra.mxu0 0.0
        %410 = vmatpush.msra.mxu0 0.0
        %411 = vmatpush.msra.mxu0 0.0
        %412 = vmatpush.msra.mxu0 0.0
        %413 = vmatpush.msra.mxu0 0.0
        %414 = vmatpush.msra.mxu0 0.0
        %415 = vmatpush.msra.mxu0 0.0
        %416 = vmatpush.msra.mxu0 0.0
        %417 = vmatpush.msra.mxu0 0.0
        %v418 = vand.u32 %v299, 4294901760
        %v419 = vsub.f32 %v299, %v418
        %v420 = vand.u32 %v419, 4294901760
        %421 = vmatpush.msra.mxu0 %v420
        %v422 = vand.u32 %v296, 4294901760
        %423 = vmatmul.f32.gmra.mxu0 %v422
        %v424 = vpop.f32.mrf.mxu0
        %v425 = vadd.f32 %v401, %v424
        %426 = vdwg.mxu0
        %427 = vmatpush.msra.mxu0 0.0
        %428 = vmatpush.msra.mxu0 0.0
        %429 = vmatpush.msra.mxu0 0.0
        %430 = vmatpush.msra.mxu0 0.0
        %431 = vmatpush.msra.mxu0 0.0
        %432 = vmatpush.msra.mxu0 0.0
        %433 = vmatpush.msra.mxu0 0.0
        %434 = vmatpush.msra.mxu0 0.0
        %435 = vmatpush.msra.mxu0 0.0
        %436 = vmatpush.msra.mxu0 0.0
        %437 = vmatpush.msra.mxu0 0.0
        %438 = vmatpush.msra.mxu0 0.0
        %439 = vmatpush.msra.mxu0 0.0
        %440 = vmatpush.msra.mxu0 0.0
        %441 = vmatpush.msra.mxu0 0.0
        %v442 = vand.u32 %v299, 4294901760
        %443 = vmatpush.msra.mxu0 %v442
        %v444 = vand.u32 %v296, 4294901760
        %445 = vmatmul.f32.gmra.mxu0 %v444
        %v446 = vpop.f32.mrf.mxu0
        %v447 = vadd.f32 %v425, %v446
        %448 = vdwg.mxu0
        %449 = vmatpush.msra.mxu0 0.0
        %450 = vmatpush.msra.mxu0 0.0
        %451 = vmatpush.msra.mxu0 0.0
        %452 = vmatpush.msra.mxu0 0.0
        %453 = vmatpush.msra.mxu0 0.0
        %454 = vmatpush.msra.mxu0 0.0
        %455 = vmatpush.msra.mxu0 0.0
        %456 = vmatpush.msra.mxu0 0.0
        %457 = vmatpush.msra.mxu0 0.0
        %458 = vmatpush.msra.mxu0 0.0
        %459 = vmatpush.msra.mxu0 0.0
        %460 = vmatpush.msra.mxu0 0.0
        %461 = vmatpush.msra.mxu0 0.0
        %462 = vmatpush.msra.mxu0 0.0
        %463 = vmatpush.msra.mxu0 0.0
        %v464 = vand.u32 %v301, 4294901760
        %465 = vmatpush.msra.mxu0 %v464
        %v466 = vand.u32 %v296, 4294901760
        %v467 = vsub.f32 %v296, %v466
        %v468 = vand.u32 %v467, 4294901760
        %v469 = vsub.f32 %v467, %v468
        %v470 = vand.u32 %v469, 4294901760
        %471 = vmatmul.f32.gmra.mxu0 %v470
        %v472 = vpop.f32.mrf.mxu0
        %v473 = vadd.f32 0.0, %v472
        %474 = vdwg.mxu0
        %475 = vmatpush.msra.mxu0 0.0
        %476 = vmatpush.msra.mxu0 0.0
        %477 = vmatpush.msra.mxu0 0.0
        %478 = vmatpush.msra.mxu0 0.0
        %479 = vmatpush.msra.mxu0 0.0
        %480 = vmatpush.msra.mxu0 0.0
        %481 = vmatpush.msra.mxu0 0.0
        %482 = vmatpush.msra.mxu0 0.0
        %483 = vmatpush.msra.mxu0 0.0
        %484 = vmatpush.msra.mxu0 0.0
        %485 = vmatpush.msra.mxu0 0.0
        %486 = vmatpush.msra.mxu0 0.0
        %487 = vmatpush.msra.mxu0 0.0
        %488 = vmatpush.msra.mxu0 0.0
        %489 = vmatpush.msra.mxu0 0.0
        %v490 = vand.u32 %v301, 4294901760
        %v491 = vsub.f32 %v301, %v490
        %v492 = vand.u32 %v491, 4294901760
        %v493 = vsub.f32 %v491, %v492
        %v494 = vand.u32 %v493, 4294901760
        %495 = vmatpush.msra.mxu0 %v494
        %v496 = vand.u32 %v296, 4294901760
        %497 = vmatmul.f32.gmra.mxu0 %v496
        %v498 = vpop.f32.mrf.mxu0
        %v499 = vadd.f32 %v473, %v498
        %500 = vdwg.mxu0
        %501 = vmatpush.msra.mxu0 0.0
        %502 = vmatpush.msra.mxu0 0.0
        %503 = vmatpush.msra.mxu0 0.0
        %504 = vmatpush.msra.mxu0 0.0
        %505 = vmatpush.msra.mxu0 0.0
        %506 = vmatpush.msra.mxu0 0.0
        %507 = vmatpush.msra.mxu0 0.0
        %508 = vmatpush.msra.mxu0 0.0
        %509 = vmatpush.msra.mxu0 0.0
        %510 = vmatpush.msra.mxu0 0.0
        %511 = vmatpush.msra.mxu0 0.0
        %512 = vmatpush.msra.mxu0 0.0
        %513 = vmatpush.msra.mxu0 0.0
        %514 = vmatpush.msra.mxu0 0.0
        %515 = vmatpush.msra.mxu0 0.0
        %v516 = vand.u32 %v301, 4294901760
        %v517 = vsub.f32 %v301, %v516
        %518 = vmatpush.msra.mxu0 %v517
        %v519 = vand.u32 %v296, 4294901760
        %v520 = vsub.f32 %v296, %v519
        %521 = vmatmul.f32.gmra.mxu0 %v520
        %v522 = vpop.f32.mrf.mxu0
        %v523 = vadd.f32 %v499, %v522
        %524 = vdwg.mxu0
        %525 = vmatpush.msra.mxu0 0.0
        %526 = vmatpush.msra.mxu0 0.0
        %527 = vmatpush.msra.mxu0 0.0
        %528 = vmatpush.msra.mxu0 0.0
        %529 = vmatpush.msra.mxu0 0.0
        %530 = vmatpush.msra.mxu0 0.0
        %531 = vmatpush.msra.mxu0 0.0
        %532 = vmatpush.msra.mxu0 0.0
        %533 = vmatpush.msra.mxu0 0.0
        %534 = vmatpush.msra.mxu0 0.0
        %535 = vmatpush.msra.mxu0 0.0
        %536 = vmatpush.msra.mxu0 0.0
        %537 = vmatpush.msra.mxu0 0.0
        %538 = vmatpush.msra.mxu0 0.0
        %539 = vmatpush.msra.mxu0 0.0
        %v540 = vand.u32 %v301, 4294901760
        %541 = vmatpush.msra.mxu0 %v540
        %v542 = vand.u32 %v296, 4294901760
        %v543 = vsub.f32 %v296, %v542
        %v544 = vand.u32 %v543, 4294901760
        %545 = vmatmul.f32.gmra.mxu0 %v544
        %v546 = vpop.f32.mrf.mxu0
        %v547 = vadd.f32 %v523, %v546
        %548 = vdwg.mxu0
        %549 = vmatpush.msra.mxu0 0.0
        %550 = vmatpush.msra.mxu0 0.0
        %551 = vmatpush.msra.mxu0 0.0
        %552 = vmatpush.msra.mxu0 0.0
        %553 = vmatpush.msra.mxu0 0.0
        %554 = vmatpush.msra.mxu0 0.0
        %555 = vmatpush.msra.mxu0 0.0
        %556 = vmatpush.msra.mxu0 0.0
        %557 = vmatpush.msra.mxu0 0.0
        %558 = vmatpush.msra.mxu0 0.0
        %559 = vmatpush.msra.mxu0 0.0
        %560 = vmatpush.msra.mxu0 0.0
        %561 = vmatpush.msra.mxu0 0.0
        %562 = vmatpush.msra.mxu0 0.0
        %563 = vmatpush.msra.mxu0 0.0
        %v564 = vand.u32 %v301, 4294901760
        %v565 = vsub.f32 %v301, %v564
        %v566 = vand.u32 %v565, 4294901760
        %567 = vmatpush.msra.mxu0 %v566
        %v568 = vand.u32 %v296, 4294901760
        %569 = vmatmul.f32.gmra.mxu0 %v568
        %v570 = vpop.f32.mrf.mxu0
        %v571 = vadd.f32 %v547, %v570
        %572 = vdwg.mxu0
        %573 = vmatpush.msra.mxu0 0.0
        %574 = vmatpush.msra.mxu0 0.0
        %575 = vmatpush.msra.mxu0 0.0
        %576 = vmatpush.msra.mxu0 0.0
        %577 = vmatpush.msra.mxu0 0.0
        %578 = vmatpush.msra.mxu0 0.0
        %579 = vmatpush.msra.mxu0 0.0
        %580 = vmatpush.msra.mxu0 0.0
        %581 = vmatpush.msra.mxu0 0.0
        %582 = vmatpush.msra.mxu0 0.0
        %583 = vmatpush.msra.mxu0 0.0
        %584 = vmatpush.msra.mxu0 0.0
        %585 = vmatpush.msra.mxu0 0.0
        %586 = vmatpush.msra.mxu0 0.0
        %587 = vmatpush.msra.mxu0 0.0
        %v588 = vand.u32 %v301, 4294901760
        %589 = vmatpush.msra.mxu0 %v588
        %v590 = vand.u32 %v296, 4294901760
        %591 = vmatmul.f32.gmra.mxu0 %v590
        %v592 = vpop.f32.mrf.mxu0
        %v593 = vadd.f32 %v571, %v592
        %594 = vdwg.mxu0
        %595 = vst [vmem:[#allocation1] ss:$2 sm:$0xff] %v272
        %v596 = vld.sshfl [vmem:[#allocation1] sm:$0xff pattern:$0x75316420]
        %v597 = vld.sshfl [vmem:[#allocation1 + $0x8] sm:$0xff pattern:$0x75316420]
        %v599 = vsel %vm294, %v273, 0
        %v601 = vsel %vm298, %v596, 0
        %v603 = vsel %vm298, %v597, 0
        %605 = vmatpush.msra.mxu0 0.0
        %606 = vmatpush.msra.mxu0 0.0
        %607 = vmatpush.msra.mxu0 0.0
        %608 = vmatpush.msra.mxu0 0.0
        %609 = vmatpush.msra.mxu0 0.0
        %610 = vmatpush.msra.mxu0 0.0
        %611 = vmatpush.msra.mxu0 0.0
        %612 = vmatpush.msra.mxu0 0.0
        %613 = vmatpush.msra.mxu0 0.0
        %614 = vmatpush.msra.mxu0 0.0
        %615 = vmatpush.msra.mxu0 0.0
        %616 = vmatpush.msra.mxu0 0.0
        %617 = vmatpush.msra.mxu0 0.0
        %618 = vmatpush.msra.mxu0 0.0
        %619 = vmatpush.msra.mxu0 0.0
        %v620 = vand.u32 %v601, 4294901760
        %621 = vmatpush.msra.mxu0 %v620
        %v622 = vand.u32 %v599, 4294901760
        %v623 = vsub.f32 %v599, %v622
        %v624 = vand.u32 %v623, 4294901760
        %v625 = vsub.f32 %v623, %v624
        %v626 = vand.u32 %v625, 4294901760
        %627 = vmatmul.f32.gmra.mxu0 %v626
        %v628 = vpop.f32.mrf.mxu0
        %v629 = vadd.f32 %v447, %v628
        %630 = vdwg.mxu0
        %631 = vmatpush.msra.mxu0 0.0
        %632 = vmatpush.msra.mxu0 0.0
        %633 = vmatpush.msra.mxu0 0.0
        %634 = vmatpush.msra.mxu0 0.0
        %635 = vmatpush.msra.mxu0 0.0
        %636 = vmatpush.msra.mxu0 0.0
        %637 = vmatpush.msra.mxu0 0.0
        %638 = vmatpush.msra.mxu0 0.0
        %639 = vmatpush.msra.mxu0 0.0
        %640 = vmatpush.msra.mxu0 0.0
        %641 = vmatpush.msra.mxu0 0.0
        %642 = vmatpush.msra.mxu0 0.0
        %643 = vmatpush.msra.mxu0 0.0
        %644 = vmatpush.msra.mxu0 0.0
        %645 = vmatpush.msra.mxu0 0.0
        %v646 = vand.u32 %v601, 4294901760
        %v647 = vsub.f32 %v601, %v646
        %v648 = vand.u32 %v647, 4294901760
        %v649 = vsub.f32 %v647, %v648
        %v650 = vand.u32 %v649, 4294901760
        %651 = vmatpush.msra.mxu0 %v650
        %v652 = vand.u32 %v599, 4294901760
        %653 = vmatmul.f32.gmra.mxu0 %v652
        %v654 = vpop.f32.mrf.mxu0
        %v655 = vadd.f32 %v629, %v654
        %656 = vdwg.mxu0
        %657 = vmatpush.msra.mxu0 0.0
        %658 = vmatpush.msra.mxu0 0.0
        %659 = vmatpush.msra.mxu0 0.0
        %660 = vmatpush.msra.mxu0 0.0
        %661 = vmatpush.msra.mxu0 0.0
        %662 = vmatpush.msra.mxu0 0.0
        %663 = vmatpush.msra.mxu0 0.0
        %664 = vmatpush.msra.mxu0 0.0
        %665 = vmatpush.msra.mxu0 0.0
        %666 = vmatpush.msra.mxu0 0.0
        %667 = vmatpush.msra.mxu0 0.0
        %668 = vmatpush.msra.mxu0 0.0
        %669 = vmatpush.msra.mxu0 0.0
        %670 = vmatpush.msra.mxu0 0.0
        %671 = vmatpush.msra.mxu0 0.0
        %v672 = vand.u32 %v601, 4294901760
        %v673 = vsub.f32 %v601, %v672
        %674 = vmatpush.msra.mxu0 %v673
        %v675 = vand.u32 %v599, 4294901760
        %v676 = vsub.f32 %v599, %v675
        %677 = vmatmul.f32.gmra.mxu0 %v676
        %v678 = vpop.f32.mrf.mxu0
        %v679 = vadd.f32 %v655, %v678
        %680 = vdwg.mxu0
        %681 = vmatpush.msra.mxu0 0.0
        %682 = vmatpush.msra.mxu0 0.0
        %683 = vmatpush.msra.mxu0 0.0
        %684 = vmatpush.msra.mxu0 0.0
        %685 = vmatpush.msra.mxu0 0.0
        %686 = vmatpush.msra.mxu0 0.0
        %687 = vmatpush.msra.mxu0 0.0
        %688 = vmatpush.msra.mxu0 0.0
        %689 = vmatpush.msra.mxu0 0.0
        %690 = vmatpush.msra.mxu0 0.0
        %691 = vmatpush.msra.mxu0 0.0
        %692 = vmatpush.msra.mxu0 0.0
        %693 = vmatpush.msra.mxu0 0.0
        %694 = vmatpush.msra.mxu0 0.0
        %695 = vmatpush.msra.mxu0 0.0
        %v696 = vand.u32 %v601, 4294901760
        %697 = vmatpush.msra.mxu0 %v696
        %v698 = vand.u32 %v599, 4294901760
        %v699 = vsub.f32 %v599, %v698
        %v700 = vand.u32 %v699, 4294901760
        %701 = vmatmul.f32.gmra.mxu0 %v700
        %v702 = vpop.f32.mrf.mxu0
        %v703 = vadd.f32 %v679, %v702
        %704 = vdwg.mxu0
        %705 = vmatpush.msra.mxu0 0.0
        %706 = vmatpush.msra.mxu0 0.0
        %707 = vmatpush.msra.mxu0 0.0
        %708 = vmatpush.msra.mxu0 0.0
        %709 = vmatpush.msra.mxu0 0.0
        %710 = vmatpush.msra.mxu0 0.0
        %711 = vmatpush.msra.mxu0 0.0
        %712 = vmatpush.msra.mxu0 0.0
        %713 = vmatpush.msra.mxu0 0.0
        %714 = vmatpush.msra.mxu0 0.0
        %715 = vmatpush.msra.mxu0 0.0
        %716 = vmatpush.msra.mxu0 0.0
        %717 = vmatpush.msra.mxu0 0.0
        %718 = vmatpush.msra.mxu0 0.0
        %719 = vmatpush.msra.mxu0 0.0
        %v720 = vand.u32 %v601, 4294901760
        %v721 = vsub.f32 %v601, %v720
        %v722 = vand.u32 %v721, 4294901760
        %723 = vmatpush.msra.mxu0 %v722
        %v724 = vand.u32 %v599, 4294901760
        %725 = vmatmul.f32.gmra.mxu0 %v724
        %v726 = vpop.f32.mrf.mxu0
        %v727 = vadd.f32 %v703, %v726
        %728 = vdwg.mxu0
        %729 = vmatpush.msra.mxu0 0.0
        %730 = vmatpush.msra.mxu0 0.0
        %731 = vmatpush.msra.mxu0 0.0
        %732 = vmatpush.msra.mxu0 0.0
        %733 = vmatpush.msra.mxu0 0.0
        %734 = vmatpush.msra.mxu0 0.0
        %735 = vmatpush.msra.mxu0 0.0
        %736 = vmatpush.msra.mxu0 0.0
        %737 = vmatpush.msra.mxu0 0.0
        %738 = vmatpush.msra.mxu0 0.0
        %739 = vmatpush.msra.mxu0 0.0
        %740 = vmatpush.msra.mxu0 0.0
        %741 = vmatpush.msra.mxu0 0.0
        %742 = vmatpush.msra.mxu0 0.0
        %743 = vmatpush.msra.mxu0 0.0
        %v744 = vand.u32 %v601, 4294901760
        %745 = vmatpush.msra.mxu0 %v744
        %v746 = vand.u32 %v599, 4294901760
        %747 = vmatmul.f32.gmra.mxu0 %v746
        %v748 = vpop.f32.mrf.mxu0
        %v749 = vadd.f32 %v727, %v748
        %750 = vdwg.mxu0
        %751 = vmatpush.msra.mxu0 0.0
        %752 = vmatpush.msra.mxu0 0.0
        %753 = vmatpush.msra.mxu0 0.0
        %754 = vmatpush.msra.mxu0 0.0
        %755 = vmatpush.msra.mxu0 0.0
        %756 = vmatpush.msra.mxu0 0.0
        %757 = vmatpush.msra.mxu0 0.0
        %758 = vmatpush.msra.mxu0 0.0
        %759 = vmatpush.msra.mxu0 0.0
        %760 = vmatpush.msra.mxu0 0.0
        %761 = vmatpush.msra.mxu0 0.0
        %762 = vmatpush.msra.mxu0 0.0
        %763 = vmatpush.msra.mxu0 0.0
        %764 = vmatpush.msra.mxu0 0.0
        %765 = vmatpush.msra.mxu0 0.0
        %v766 = vand.u32 %v603, 4294901760
        %767 = vmatpush.msra.mxu0 %v766
        %v768 = vand.u32 %v599, 4294901760
        %v769 = vsub.f32 %v599, %v768
        %v770 = vand.u32 %v769, 4294901760
        %v771 = vsub.f32 %v769, %v770
        %v772 = vand.u32 %v771, 4294901760
        %773 = vmatmul.f32.gmra.mxu0 %v772
        %v774 = vpop.f32.mrf.mxu0
        %v775 = vadd.f32 %v593, %v774
        %776 = vdwg.mxu0
        %777 = vmatpush.msra.mxu0 0.0
        %778 = vmatpush.msra.mxu0 0.0
        %779 = vmatpush.msra.mxu0 0.0
        %780 = vmatpush.msra.mxu0 0.0
        %781 = vmatpush.msra.mxu0 0.0
        %782 = vmatpush.msra.mxu0 0.0
        %783 = vmatpush.msra.mxu0 0.0
        %784 = vmatpush.msra.mxu0 0.0
        %785 = vmatpush.msra.mxu0 0.0
        %786 = vmatpush.msra.mxu0 0.0
        %787 = vmatpush.msra.mxu0 0.0
        %788 = vmatpush.msra.mxu0 0.0
        %789 = vmatpush.msra.mxu0 0.0
        %790 = vmatpush.msra.mxu0 0.0
        %791 = vmatpush.msra.mxu0 0.0
        %v792 = vand.u32 %v603, 4294901760
        %v793 = vsub.f32 %v603, %v792
        %v794 = vand.u32 %v793, 4294901760
        %v795 = vsub.f32 %v793, %v794
        %v796 = vand.u32 %v795, 4294901760
        %797 = vmatpush.msra.mxu0 %v796
        %v798 = vand.u32 %v599, 4294901760
        %799 = vmatmul.f32.gmra.mxu0 %v798
        %v800 = vpop.f32.mrf.mxu0
        %v801 = vadd.f32 %v775, %v800
        %802 = vdwg.mxu0
        %803 = vmatpush.msra.mxu0 0.0
        %804 = vmatpush.msra.mxu0 0.0
        %805 = vmatpush.msra.mxu0 0.0
        %806 = vmatpush.msra.mxu0 0.0
        %807 = vmatpush.msra.mxu0 0.0
        %808 = vmatpush.msra.mxu0 0.0
        %809 = vmatpush.msra.mxu0 0.0
        %810 = vmatpush.msra.mxu0 0.0
        %811 = vmatpush.msra.mxu0 0.0
        %812 = vmatpush.msra.mxu0 0.0
        %813 = vmatpush.msra.mxu0 0.0
        %814 = vmatpush.msra.mxu0 0.0
        %815 = vmatpush.msra.mxu0 0.0
        %816 = vmatpush.msra.mxu0 0.0
        %817 = vmatpush.msra.mxu0 0.0
        %v818 = vand.u32 %v603, 4294901760
        %v819 = vsub.f32 %v603, %v818
        %820 = vmatpush.msra.mxu0 %v819
        %v821 = vand.u32 %v599, 4294901760
        %v822 = vsub.f32 %v599, %v821
        %823 = vmatmul.f32.gmra.mxu0 %v822
        %v824 = vpop.f32.mrf.mxu0
        %v825 = vadd.f32 %v801, %v824
        %826 = vdwg.mxu0
        %827 = vmatpush.msra.mxu0 0.0
        %828 = vmatpush.msra.mxu0 0.0
        %829 = vmatpush.msra.mxu0 0.0
        %830 = vmatpush.msra.mxu0 0.0
        %831 = vmatpush.msra.mxu0 0.0
        %832 = vmatpush.msra.mxu0 0.0
        %833 = vmatpush.msra.mxu0 0.0
        %834 = vmatpush.msra.mxu0 0.0
        %835 = vmatpush.msra.mxu0 0.0
        %836 = vmatpush.msra.mxu0 0.0
        %837 = vmatpush.msra.mxu0 0.0
        %838 = vmatpush.msra.mxu0 0.0
        %839 = vmatpush.msra.mxu0 0.0
        %840 = vmatpush.msra.mxu0 0.0
        %841 = vmatpush.msra.mxu0 0.0
        %v842 = vand.u32 %v603, 4294901760
        %843 = vmatpush.msra.mxu0 %v842
        %v844 = vand.u32 %v599, 4294901760
        %v845 = vsub.f32 %v599, %v844
        %v846 = vand.u32 %v845, 4294901760
        %847 = vmatmul.f32.gmra.mxu0 %v846
        %v848 = vpop.f32.mrf.mxu0
        %v849 = vadd.f32 %v825, %v848
        %850 = vdwg.mxu0
        %851 = vmatpush.msra.mxu0 0.0
        %852 = vmatpush.msra.mxu0 0.0
        %853 = vmatpush.msra.mxu0 0.0
        %854 = vmatpush.msra.mxu0 0.0
        %855 = vmatpush.msra.mxu0 0.0
        %856 = vmatpush.msra.mxu0 0.0
        %857 = vmatpush.msra.mxu0 0.0
        %858 = vmatpush.msra.mxu0 0.0
        %859 = vmatpush.msra.mxu0 0.0
        %860 = vmatpush.msra.mxu0 0.0
        %861 = vmatpush.msra.mxu0 0.0
        %862 = vmatpush.msra.mxu0 0.0
        %863 = vmatpush.msra.mxu0 0.0
        %864 = vmatpush.msra.mxu0 0.0
        %865 = vmatpush.msra.mxu0 0.0
        %v866 = vand.u32 %v603, 4294901760
        %v867 = vsub.f32 %v603, %v866
        %v868 = vand.u32 %v867, 4294901760
        %869 = vmatpush.msra.mxu0 %v868
        %v870 = vand.u32 %v599, 4294901760
        %871 = vmatmul.f32.gmra.mxu0 %v870
        %v872 = vpop.f32.mrf.mxu0
        %v873 = vadd.f32 %v849, %v872
        %874 = vdwg.mxu0
        %875 = vmatpush.msra.mxu0 0.0
        %876 = vmatpush.msra.mxu0 0.0
        %877 = vmatpush.msra.mxu0 0.0
        %878 = vmatpush.msra.mxu0 0.0
        %879 = vmatpush.msra.mxu0 0.0
        %880 = vmatpush.msra.mxu0 0.0
        %881 = vmatpush.msra.mxu0 0.0
        %882 = vmatpush.msra.mxu0 0.0
        %883 = vmatpush.msra.mxu0 0.0
        %884 = vmatpush.msra.mxu0 0.0
        %885 = vmatpush.msra.mxu0 0.0
        %886 = vmatpush.msra.mxu0 0.0
        %887 = vmatpush.msra.mxu0 0.0
        %888 = vmatpush.msra.mxu0 0.0
        %889 = vmatpush.msra.mxu0 0.0
        %v890 = vand.u32 %v603, 4294901760
        %891 = vmatpush.msra.mxu0 %v890
        %v892 = vand.u32 %v599, 4294901760
        %893 = vmatmul.f32.gmra.mxu0 %v892
        %v894 = vpop.f32.mrf.mxu0
        %v895 = vadd.f32 %v873, %v894
        %896 = vdwg.mxu0
        %v897 = vld [vmem:[#allocation2] sm:$0xff]
        %v898 = vld [vmem:[#allocation2 + $0x8] sm:$0xf]
        %s899 = scalar_lea.vmem %s1, 24
        %v900 = vld [vmem:[%s899] sm:$0xf]
        %903 = vst [vmem:[#allocation1] ss:$2 sm:$0xff] %v897
        %s904 = scalar_lea.vmem [#allocation1], 16
        %905 = vst [vmem:[%s904] ss:$2 sm:$0xff] %v898
        %v906 = vld.sshfl [vmem:[#allocation1] sm:$0xff pattern:$0x75316420]
        %v907 = vld.sshfl [vmem:[#allocation1 + $0x8] sm:$0xff pattern:$0x75316420]
        %v908 = vld.sshfl [vmem:[#allocation1 + $0x10] sm:$0xff pattern:$0x75316420]
        %909 = vrot.lane.b32.xlu0 %v906, 96
        %v910 = vpop.permute.xlu0 %909
        %911 = vrot.lane.b32.xlu0 %v907, 96
        %v912 = vpop.permute.xlu0 %911
        %913 = vrot.lane.b32.xlu0 %v908, 96
        %v914 = vpop.permute.xlu0 %913
        %vm915 = vcmask 785408
        %v916 = vsel %vm915, %v910, %v912
        %v917 = vsel %vm915, %v912, %v914
        %v919 = vsel %vm294, %v900, 0
        %v921 = vsel %vm298, %v916, 0
        %v923 = vsel %vm298, %v917, 0
        %925 = vmatpush.msra.mxu0 0.0
        %926 = vmatpush.msra.mxu0 0.0
        %927 = vmatpush.msra.mxu0 0.0
        %928 = vmatpush.msra.mxu0 0.0
        %929 = vmatpush.msra.mxu0 0.0
        %930 = vmatpush.msra.mxu0 0.0
        %931 = vmatpush.msra.mxu0 0.0
        %932 = vmatpush.msra.mxu0 0.0
        %933 = vmatpush.msra.mxu0 0.0
        %934 = vmatpush.msra.mxu0 0.0
        %935 = vmatpush.msra.mxu0 0.0
        %936 = vmatpush.msra.mxu0 0.0
        %937 = vmatpush.msra.mxu0 0.0
        %938 = vmatpush.msra.mxu0 0.0
        %939 = vmatpush.msra.mxu0 0.0
        %v940 = vand.u32 %v921, 4294901760
        %941 = vmatpush.msra.mxu0 %v940
        %v942 = vand.u32 %v919, 4294901760
        %v943 = vsub.f32 %v919, %v942
        %v944 = vand.u32 %v943, 4294901760
        %v945 = vsub.f32 %v943, %v944
        %v946 = vand.u32 %v945, 4294901760
        %947 = vmatmul.f32.gmra.mxu0 %v946
        %v948 = vpop.f32.mrf.mxu0
        %v949 = vadd.f32 0.0, %v948
        %950 = vdwg.mxu0
        %951 = vmatpush.msra.mxu0 0.0
        %952 = vmatpush.msra.mxu0 0.0
        %953 = vmatpush.msra.mxu0 0.0
        %954 = vmatpush.msra.mxu0 0.0
        %955 = vmatpush.msra.mxu0 0.0
        %956 = vmatpush.msra.mxu0 0.0
        %957 = vmatpush.msra.mxu0 0.0
        %958 = vmatpush.msra.mxu0 0.0
        %959 = vmatpush.msra.mxu0 0.0
        %960 = vmatpush.msra.mxu0 0.0
        %961 = vmatpush.msra.mxu0 0.0
        %962 = vmatpush.msra.mxu0 0.0
        %963 = vmatpush.msra.mxu0 0.0
        %964 = vmatpush.msra.mxu0 0.0
        %965 = vmatpush.msra.mxu0 0.0
        %v966 = vand.u32 %v921, 4294901760
        %v967 = vsub.f32 %v921, %v966
        %v968 = vand.u32 %v967, 4294901760
        %v969 = vsub.f32 %v967, %v968
        %v970 = vand.u32 %v969, 4294901760
        %971 = vmatpush.msra.mxu0 %v970
        %v972 = vand.u32 %v919, 4294901760
        %973 = vmatmul.f32.gmra.mxu0 %v972
        %v974 = vpop.f32.mrf.mxu0
        %v975 = vadd.f32 %v949, %v974
        %976 = vdwg.mxu0
        %977 = vmatpush.msra.mxu0 0.0
        %978 = vmatpush.msra.mxu0 0.0
        %979 = vmatpush.msra.mxu0 0.0
        %980 = vmatpush.msra.mxu0 0.0
        %981 = vmatpush.msra.mxu0 0.0
        %982 = vmatpush.msra.mxu0 0.0
        %983 = vmatpush.msra.mxu0 0.0
        %984 = vmatpush.msra.mxu0 0.0
        %985 = vmatpush.msra.mxu0 0.0
        %986 = vmatpush.msra.mxu0 0.0
        %987 = vmatpush.msra.mxu0 0.0
        %988 = vmatpush.msra.mxu0 0.0
        %989 = vmatpush.msra.mxu0 0.0
        %990 = vmatpush.msra.mxu0 0.0
        %991 = vmatpush.msra.mxu0 0.0
        %v992 = vand.u32 %v921, 4294901760
        %v993 = vsub.f32 %v921, %v992
        %994 = vmatpush.msra.mxu0 %v993
        %v995 = vand.u32 %v919, 4294901760
        %v996 = vsub.f32 %v919, %v995
        %997 = vmatmul.f32.gmra.mxu0 %v996
        %v998 = vpop.f32.mrf.mxu0
        %v999 = vadd.f32 %v975, %v998
        %1000 = vdwg.mxu0
        %1001 = vmatpush.msra.mxu0 0.0
        %1002 = vmatpush.msra.mxu0 0.0
        %1003 = vmatpush.msra.mxu0 0.0
        %1004 = vmatpush.msra.mxu0 0.0
        %1005 = vmatpush.msra.mxu0 0.0
        %1006 = vmatpush.msra.mxu0 0.0
        %1007 = vmatpush.msra.mxu0 0.0
        %1008 = vmatpush.msra.mxu0 0.0
        %1009 = vmatpush.msra.mxu0 0.0
        %1010 = vmatpush.msra.mxu0 0.0
        %1011 = vmatpush.msra.mxu0 0.0
        %1012 = vmatpush.msra.mxu0 0.0
        %1013 = vmatpush.msra.mxu0 0.0
        %1014 = vmatpush.msra.mxu0 0.0
        %1015 = vmatpush.msra.mxu0 0.0
        %v1016 = vand.u32 %v921, 4294901760
        %1017 = vmatpush.msra.mxu0 %v1016
        %v1018 = vand.u32 %v919, 4294901760
        %v1019 = vsub.f32 %v919, %v1018
        %v1020 = vand.u32 %v1019, 4294901760
        %1021 = vmatmul.f32.gmra.mxu0 %v1020
        %v1022 = vpop.f32.mrf.mxu0
        %v1023 = vadd.f32 %v999, %v1022
        %1024 = vdwg.mxu0
        %1025 = vmatpush.msra.mxu0 0.0
        %1026 = vmatpush.msra.mxu0 0.0
        %1027 = vmatpush.msra.mxu0 0.0
        %1028 = vmatpush.msra.mxu0 0.0
        %1029 = vmatpush.msra.mxu0 0.0
        %1030 = vmatpush.msra.mxu0 0.0
        %1031 = vmatpush.msra.mxu0 0.0
        %1032 = vmatpush.msra.mxu0 0.0
        %1033 = vmatpush.msra.mxu0 0.0
        %1034 = vmatpush.msra.mxu0 0.0
        %1035 = vmatpush.msra.mxu0 0.0
        %1036 = vmatpush.msra.mxu0 0.0
        %1037 = vmatpush.msra.mxu0 0.0
        %1038 = vmatpush.msra.mxu0 0.0
        %1039 = vmatpush.msra.mxu0 0.0
        %v1040 = vand.u32 %v921, 4294901760
        %v1041 = vsub.f32 %v921, %v1040
        %v1042 = vand.u32 %v1041, 4294901760
        %1043 = vmatpush.msra.mxu0 %v1042
        %v1044 = vand.u32 %v919, 4294901760
        %1045 = vmatmul.f32.gmra.mxu0 %v1044
        %v1046 = vpop.f32.mrf.mxu0
        %v1047 = vadd.f32 %v1023, %v1046
        %1048 = vdwg.mxu0
        %1049 = vmatpush.msra.mxu0 0.0
        %1050 = vmatpush.msra.mxu0 0.0
        %1051 = vmatpush.msra.mxu0 0.0
        %1052 = vmatpush.msra.mxu0 0.0
        %1053 = vmatpush.msra.mxu0 0.0
        %1054 = vmatpush.msra.mxu0 0.0
        %1055 = vmatpush.msra.mxu0 0.0
        %1056 = vmatpush.msra.mxu0 0.0
        %1057 = vmatpush.msra.mxu0 0.0
        %1058 = vmatpush.msra.mxu0 0.0
        %1059 = vmatpush.msra.mxu0 0.0
        %1060 = vmatpush.msra.mxu0 0.0
        %1061 = vmatpush.msra.mxu0 0.0
        %1062 = vmatpush.msra.mxu0 0.0
        %1063 = vmatpush.msra.mxu0 0.0
        %v1064 = vand.u32 %v921, 4294901760
        %1065 = vmatpush.msra.mxu0 %v1064
        %v1066 = vand.u32 %v919, 4294901760
        %1067 = vmatmul.f32.gmra.mxu0 %v1066
        %v1068 = vpop.f32.mrf.mxu0
        %v1069 = vadd.f32 %v1047, %v1068
        %1070 = vdwg.mxu0
        %1071 = vmatpush.msra.mxu0 0.0
        %1072 = vmatpush.msra.mxu0 0.0
        %1073 = vmatpush.msra.mxu0 0.0
        %1074 = vmatpush.msra.mxu0 0.0
        %1075 = vmatpush.msra.mxu0 0.0
        %1076 = vmatpush.msra.mxu0 0.0
        %1077 = vmatpush.msra.mxu0 0.0
        %1078 = vmatpush.msra.mxu0 0.0
        %1079 = vmatpush.msra.mxu0 0.0
        %1080 = vmatpush.msra.mxu0 0.0
        %1081 = vmatpush.msra.mxu0 0.0
        %1082 = vmatpush.msra.mxu0 0.0
        %1083 = vmatpush.msra.mxu0 0.0
        %1084 = vmatpush.msra.mxu0 0.0
        %1085 = vmatpush.msra.mxu0 0.0
        %v1086 = vand.u32 %v923, 4294901760
        %1087 = vmatpush.msra.mxu0 %v1086
        %v1088 = vand.u32 %v919, 4294901760
        %v1089 = vsub.f32 %v919, %v1088
        %v1090 = vand.u32 %v1089, 4294901760
        %v1091 = vsub.f32 %v1089, %v1090
        %v1092 = vand.u32 %v1091, 4294901760
        %1093 = vmatmul.f32.gmra.mxu0 %v1092
        %v1094 = vpop.f32.mrf.mxu0
        %v1095 = vadd.f32 0.0, %v1094
        %1096 = vdwg.mxu0
        %1097 = vmatpush.msra.mxu0 0.0
        %1098 = vmatpush.msra.mxu0 0.0
        %1099 = vmatpush.msra.mxu0 0.0
        %1100 = vmatpush.msra.mxu0 0.0
        %1101 = vmatpush.msra.mxu0 0.0
        %1102 = vmatpush.msra.mxu0 0.0
        %1103 = vmatpush.msra.mxu0 0.0
        %1104 = vmatpush.msra.mxu0 0.0
        %1105 = vmatpush.msra.mxu0 0.0
        %1106 = vmatpush.msra.mxu0 0.0
        %1107 = vmatpush.msra.mxu0 0.0
        %1108 = vmatpush.msra.mxu0 0.0
        %1109 = vmatpush.msra.mxu0 0.0
        %1110 = vmatpush.msra.mxu0 0.0
        %1111 = vmatpush.msra.mxu0 0.0
        %v1112 = vand.u32 %v923, 4294901760
        %v1113 = vsub.f32 %v923, %v1112
        %v1114 = vand.u32 %v1113, 4294901760
        %v1115 = vsub.f32 %v1113, %v1114
        %v1116 = vand.u32 %v1115, 4294901760
        %1117 = vmatpush.msra.mxu0 %v1116
        %v1118 = vand.u32 %v919, 4294901760
        %1119 = vmatmul.f32.gmra.mxu0 %v1118
        %v1120 = vpop.f32.mrf.mxu0
        %v1121 = vadd.f32 %v1095, %v1120
        %1122 = vdwg.mxu0
        %1123 = vmatpush.msra.mxu0 0.0
        %1124 = vmatpush.msra.mxu0 0.0
        %1125 = vmatpush.msra.mxu0 0.0
        %1126 = vmatpush.msra.mxu0 0.0
        %1127 = vmatpush.msra.mxu0 0.0
        %1128 = vmatpush.msra.mxu0 0.0
        %1129 = vmatpush.msra.mxu0 0.0
        %1130 = vmatpush.msra.mxu0 0.0
        %1131 = vmatpush.msra.mxu0 0.0
        %1132 = vmatpush.msra.mxu0 0.0
        %1133 = vmatpush.msra.mxu0 0.0
        %1134 = vmatpush.msra.mxu0 0.0
        %1135 = vmatpush.msra.mxu0 0.0
        %1136 = vmatpush.msra.mxu0 0.0
        %1137 = vmatpush.msra.mxu0 0.0
        %v1138 = vand.u32 %v923, 4294901760
        %v1139 = vsub.f32 %v923, %v1138
        %1140 = vmatpush.msra.mxu0 %v1139
        %v1141 = vand.u32 %v919, 4294901760
        %v1142 = vsub.f32 %v919, %v1141
        %1143 = vmatmul.f32.gmra.mxu0 %v1142
        %v1144 = vpop.f32.mrf.mxu0
        %v1145 = vadd.f32 %v1121, %v1144
        %1146 = vdwg.mxu0
        %1147 = vmatpush.msra.mxu0 0.0
        %1148 = vmatpush.msra.mxu0 0.0
        %1149 = vmatpush.msra.mxu0 0.0
        %1150 = vmatpush.msra.mxu0 0.0
        %1151 = vmatpush.msra.mxu0 0.0
        %1152 = vmatpush.msra.mxu0 0.0
        %1153 = vmatpush.msra.mxu0 0.0
        %1154 = vmatpush.msra.mxu0 0.0
        %1155 = vmatpush.msra.mxu0 0.0
        %1156 = vmatpush.msra.mxu0 0.0
        %1157 = vmatpush.msra.mxu0 0.0
        %1158 = vmatpush.msra.mxu0 0.0
        %1159 = vmatpush.msra.mxu0 0.0
        %1160 = vmatpush.msra.mxu0 0.0
        %1161 = vmatpush.msra.mxu0 0.0
        %v1162 = vand.u32 %v923, 4294901760
        %1163 = vmatpush.msra.mxu0 %v1162
        %v1164 = vand.u32 %v919, 4294901760
        %v1165 = vsub.f32 %v919, %v1164
        %v1166 = vand.u32 %v1165, 4294901760
        %1167 = vmatmul.f32.gmra.mxu0 %v1166
        %v1168 = vpop.f32.mrf.mxu0
        %v1169 = vadd.f32 %v1145, %v1168
        %1170 = vdwg.mxu0
        %1171 = vmatpush.msra.mxu0 0.0
        %1172 = vmatpush.msra.mxu0 0.0
        %1173 = vmatpush.msra.mxu0 0.0
        %1174 = vmatpush.msra.mxu0 0.0
        %1175 = vmatpush.msra.mxu0 0.0
        %1176 = vmatpush.msra.mxu0 0.0
        %1177 = vmatpush.msra.mxu0 0.0
        %1178 = vmatpush.msra.mxu0 0.0
        %1179 = vmatpush.msra.mxu0 0.0
        %1180 = vmatpush.msra.mxu0 0.0
        %1181 = vmatpush.msra.mxu0 0.0
        %1182 = vmatpush.msra.mxu0 0.0
        %1183 = vmatpush.msra.mxu0 0.0
        %1184 = vmatpush.msra.mxu0 0.0
        %1185 = vmatpush.msra.mxu0 0.0
        %v1186 = vand.u32 %v923, 4294901760
        %v1187 = vsub.f32 %v923, %v1186
        %v1188 = vand.u32 %v1187, 4294901760
        %1189 = vmatpush.msra.mxu0 %v1188
        %v1190 = vand.u32 %v919, 4294901760
        %1191 = vmatmul.f32.gmra.mxu0 %v1190
        %v1192 = vpop.f32.mrf.mxu0
        %v1193 = vadd.f32 %v1169, %v1192
        %1194 = vdwg.mxu0
        %1195 = vmatpush.msra.mxu0 0.0
        %1196 = vmatpush.msra.mxu0 0.0
        %1197 = vmatpush.msra.mxu0 0.0
        %1198 = vmatpush.msra.mxu0 0.0
        %1199 = vmatpush.msra.mxu0 0.0
        %1200 = vmatpush.msra.mxu0 0.0
        %1201 = vmatpush.msra.mxu0 0.0
        %1202 = vmatpush.msra.mxu0 0.0
        %1203 = vmatpush.msra.mxu0 0.0
        %1204 = vmatpush.msra.mxu0 0.0
        %1205 = vmatpush.msra.mxu0 0.0
        %1206 = vmatpush.msra.mxu0 0.0
        %1207 = vmatpush.msra.mxu0 0.0
        %1208 = vmatpush.msra.mxu0 0.0
        %1209 = vmatpush.msra.mxu0 0.0
        %v1210 = vand.u32 %v923, 4294901760
        %1211 = vmatpush.msra.mxu0 %v1210
        %v1212 = vand.u32 %v919, 4294901760
        %1213 = vmatmul.f32.gmra.mxu0 %v1212
        %v1214 = vpop.f32.mrf.mxu0
        %v1215 = vadd.f32 %v1193, %v1214
        %1216 = vdwg.mxu0
        %v1217 = vadd.f32 %v749, %v1069
        %v1218 = vadd.f32 %v895, %v1215
        %v1219 = vsel %vm250, 1, 0
        %v1220 = vsel %vm251, 1, 0
        %vm1221 = vcmp.eq.s32.totalorder %v1219, 1
        %vm1222 = vcmp.eq.s32.totalorder %v1220, 1
        %v1223 = vsel %vm1221, %v1217, 0.0
        %v1224 = vsel %vm1222, %v1218, 0.0
        %v1225 = vadd.f32 %v1223, 0.0
        %v1226 = vadd.f32 %v1224, 0.0
        %v1227 = vld [vmem:[#allocation2] sm:$0xff]
        %v1228 = vld [vmem:[#allocation2 + $0x8] sm:$0xf]
        %s1229 = scalar_lea.vmem %s1, 4
        %v1230 = vld [vmem:[%s1229] sm:$0xf]
        %s1231 = scalar_lea.vmem %s1, 16
        %v1232 = vld [vmem:[%s1231] sm:$0xf]
        %1235 = vst [vmem:[#allocation1] ss:$2 sm:$0xff] %v1227
        %s1236 = scalar_lea.vmem [#allocation1], 16
        %1237 = vst [vmem:[%s1236] ss:$2 sm:$0xff] %v1228
        %v1238 = vld.sshfl [vmem:[#allocation1] sm:$0xff pattern:$0x75316420]
        %v1239 = vld.sshfl [vmem:[#allocation1 + $0x8] sm:$0xff pattern:$0x75316420]
        %v1240 = vld.sshfl [vmem:[#allocation1 + $0x10] sm:$0xff pattern:$0x75316420]
        %1241 = vrot.lane.b32.xlu0 %v1238, 111
        %v1242 = vpop.permute.xlu0 %1241
        %1243 = vrot.lane.b32.xlu0 %v1239, 111
        %v1244 = vpop.permute.xlu0 %1243
        %1245 = vrot.lane.b32.xlu0 %v1240, 111
        %v1246 = vpop.permute.xlu0 %1245
        %vm1247 = vcmask 908288
        %v1248 = vsel %vm1247, %v1242, %v1244
        %v1249 = vsel %vm1247, %v1244, %v1246
        %v1251 = vsel %vm294, %v1232, 0
        %v1253 = vsel %vm298, %v1248, 0
        %v1255 = vsel %vm298, %v1249, 0
        %1257 = vmatpush.msra.mxu0 0.0
        %1258 = vmatpush.msra.mxu0 0.0
        %1259 = vmatpush.msra.mxu0 0.0
        %1260 = vmatpush.msra.mxu0 0.0
        %1261 = vmatpush.msra.mxu0 0.0
        %1262 = vmatpush.msra.mxu0 0.0
        %1263 = vmatpush.msra.mxu0 0.0
        %1264 = vmatpush.msra.mxu0 0.0
        %1265 = vmatpush.msra.mxu0 0.0
        %1266 = vmatpush.msra.mxu0 0.0
        %1267 = vmatpush.msra.mxu0 0.0
        %1268 = vmatpush.msra.mxu0 0.0
        %1269 = vmatpush.msra.mxu0 0.0
        %1270 = vmatpush.msra.mxu0 0.0
        %1271 = vmatpush.msra.mxu0 0.0
        %v1272 = vand.u32 %v1253, 4294901760
        %1273 = vmatpush.msra.mxu0 %v1272
        %v1274 = vand.u32 %v1251, 4294901760
        %v1275 = vsub.f32 %v1251, %v1274
        %v1276 = vand.u32 %v1275, 4294901760
        %v1277 = vsub.f32 %v1275, %v1276
        %v1278 = vand.u32 %v1277, 4294901760
        %1279 = vmatmul.f32.gmra.mxu0 %v1278
        %v1280 = vpop.f32.mrf.mxu0
        %v1281 = vadd.f32 0.0, %v1280
        %1282 = vdwg.mxu0
        %1283 = vmatpush.msra.mxu0 0.0
        %1284 = vmatpush.msra.mxu0 0.0
        %1285 = vmatpush.msra.mxu0 0.0
        %1286 = vmatpush.msra.mxu0 0.0
        %1287 = vmatpush.msra.mxu0 0.0
        %1288 = vmatpush.msra.mxu0 0.0
        %1289 = vmatpush.msra.mxu0 0.0
        %1290 = vmatpush.msra.mxu0 0.0
        %1291 = vmatpush.msra.mxu0 0.0
        %1292 = vmatpush.msra.mxu0 0.0
        %1293 = vmatpush.msra.mxu0 0.0
        %1294 = vmatpush.msra.mxu0 0.0
        %1295 = vmatpush.msra.mxu0 0.0
        %1296 = vmatpush.msra.mxu0 0.0
        %1297 = vmatpush.msra.mxu0 0.0
        %v1298 = vand.u32 %v1253, 4294901760
        %v1299 = vsub.f32 %v1253, %v1298
        %v1300 = vand.u32 %v1299, 4294901760
        %v1301 = vsub.f32 %v1299, %v1300
        %v1302 = vand.u32 %v1301, 4294901760
        %1303 = vmatpush.msra.mxu0 %v1302
        %v1304 = vand.u32 %v1251, 4294901760
        %1305 = vmatmul.f32.gmra.mxu0 %v1304
        %v1306 = vpop.f32.mrf.mxu0
        %v1307 = vadd.f32 %v1281, %v1306
        %1308 = vdwg.mxu0
        %1309 = vmatpush.msra.mxu0 0.0
        %1310 = vmatpush.msra.mxu0 0.0
        %1311 = vmatpush.msra.mxu0 0.0
        %1312 = vmatpush.msra.mxu0 0.0
        %1313 = vmatpush.msra.mxu0 0.0
        %1314 = vmatpush.msra.mxu0 0.0
        %1315 = vmatpush.msra.mxu0 0.0
        %1316 = vmatpush.msra.mxu0 0.0
        %1317 = vmatpush.msra.mxu0 0.0
        %1318 = vmatpush.msra.mxu0 0.0
        %1319 = vmatpush.msra.mxu0 0.0
        %1320 = vmatpush.msra.mxu0 0.0
        %1321 = vmatpush.msra.mxu0 0.0
        %1322 = vmatpush.msra.mxu0 0.0
        %1323 = vmatpush.msra.mxu0 0.0
        %v1324 = vand.u32 %v1253, 4294901760
        %v1325 = vsub.f32 %v1253, %v1324
        %1326 = vmatpush.msra.mxu0 %v1325
        %v1327 = vand.u32 %v1251, 4294901760
        %v1328 = vsub.f32 %v1251, %v1327
        %1329 = vmatmul.f32.gmra.mxu0 %v1328
        %v1330 = vpop.f32.mrf.mxu0
        %v1331 = vadd.f32 %v1307, %v1330
        %1332 = vdwg.mxu0
        %1333 = vmatpush.msra.mxu0 0.0
        %1334 = vmatpush.msra.mxu0 0.0
        %1335 = vmatpush.msra.mxu0 0.0
        %1336 = vmatpush.msra.mxu0 0.0
        %1337 = vmatpush.msra.mxu0 0.0
        %1338 = vmatpush.msra.mxu0 0.0
        %1339 = vmatpush.msra.mxu0 0.0
        %1340 = vmatpush.msra.mxu0 0.0
        %1341 = vmatpush.msra.mxu0 0.0
        %1342 = vmatpush.msra.mxu0 0.0
        %1343 = vmatpush.msra.mxu0 0.0
        %1344 = vmatpush.msra.mxu0 0.0
        %1345 = vmatpush.msra.mxu0 0.0
        %1346 = vmatpush.msra.mxu0 0.0
        %1347 = vmatpush.msra.mxu0 0.0
        %v1348 = vand.u32 %v1253, 4294901760
        %1349 = vmatpush.msra.mxu0 %v1348
        %v1350 = vand.u32 %v1251, 4294901760
        %v1351 = vsub.f32 %v1251, %v1350
        %v1352 = vand.u32 %v1351, 4294901760
        %1353 = vmatmul.f32.gmra.mxu0 %v1352
        %v1354 = vpop.f32.mrf.mxu0
        %v1355 = vadd.f32 %v1331, %v1354
        %1356 = vdwg.mxu0
        %1357 = vmatpush.msra.mxu0 0.0
        %1358 = vmatpush.msra.mxu0 0.0
        %1359 = vmatpush.msra.mxu0 0.0
        %1360 = vmatpush.msra.mxu0 0.0
        %1361 = vmatpush.msra.mxu0 0.0
        %1362 = vmatpush.msra.mxu0 0.0
        %1363 = vmatpush.msra.mxu0 0.0
        %1364 = vmatpush.msra.mxu0 0.0
        %1365 = vmatpush.msra.mxu0 0.0
        %1366 = vmatpush.msra.mxu0 0.0
        %1367 = vmatpush.msra.mxu0 0.0
        %1368 = vmatpush.msra.mxu0 0.0
        %1369 = vmatpush.msra.mxu0 0.0
        %1370 = vmatpush.msra.mxu0 0.0
        %1371 = vmatpush.msra.mxu0 0.0
        %v1372 = vand.u32 %v1253, 4294901760
        %v1373 = vsub.f32 %v1253, %v1372
        %v1374 = vand.u32 %v1373, 4294901760
        %1375 = vmatpush.msra.mxu0 %v1374
        %v1376 = vand.u32 %v1251, 4294901760
        %1377 = vmatmul.f32.gmra.mxu0 %v1376
        %v1378 = vpop.f32.mrf.mxu0
        %v1379 = vadd.f32 %v1355, %v1378
        %1380 = vdwg.mxu0
        %1381 = vmatpush.msra.mxu0 0.0
        %1382 = vmatpush.msra.mxu0 0.0
        %1383 = vmatpush.msra.mxu0 0.0
        %1384 = vmatpush.msra.mxu0 0.0
        %1385 = vmatpush.msra.mxu0 0.0
        %1386 = vmatpush.msra.mxu0 0.0
        %1387 = vmatpush.msra.mxu0 0.0
        %1388 = vmatpush.msra.mxu0 0.0
        %1389 = vmatpush.msra.mxu0 0.0
        %1390 = vmatpush.msra.mxu0 0.0
        %1391 = vmatpush.msra.mxu0 0.0
        %1392 = vmatpush.msra.mxu0 0.0
        %1393 = vmatpush.msra.mxu0 0.0
        %1394 = vmatpush.msra.mxu0 0.0
        %1395 = vmatpush.msra.mxu0 0.0
        %v1396 = vand.u32 %v1253, 4294901760
        %1397 = vmatpush.msra.mxu0 %v1396
        %v1398 = vand.u32 %v1251, 4294901760
        %1399 = vmatmul.f32.gmra.mxu0 %v1398
        %v1400 = vpop.f32.mrf.mxu0
        %v1401 = vadd.f32 %v1379, %v1400
        %1402 = vdwg.mxu0
        %1403 = vmatpush.msra.mxu0 0.0
        %1404 = vmatpush.msra.mxu0 0.0
        %1405 = vmatpush.msra.mxu0 0.0
        %1406 = vmatpush.msra.mxu0 0.0
        %1407 = vmatpush.msra.mxu0 0.0
        %1408 = vmatpush.msra.mxu0 0.0
        %1409 = vmatpush.msra.mxu0 0.0
        %1410 = vmatpush.msra.mxu0 0.0
        %1411 = vmatpush.msra.mxu0 0.0
        %1412 = vmatpush.msra.mxu0 0.0
        %1413 = vmatpush.msra.mxu0 0.0
        %1414 = vmatpush.msra.mxu0 0.0
        %1415 = vmatpush.msra.mxu0 0.0
        %1416 = vmatpush.msra.mxu0 0.0
        %1417 = vmatpush.msra.mxu0 0.0
        %v1418 = vand.u32 %v1255, 4294901760
        %1419 = vmatpush.msra.mxu0 %v1418
        %v1420 = vand.u32 %v1251, 4294901760
        %v1421 = vsub.f32 %v1251, %v1420
        %v1422 = vand.u32 %v1421, 4294901760
        %v1423 = vsub.f32 %v1421, %v1422
        %v1424 = vand.u32 %v1423, 4294901760
        %1425 = vmatmul.f32.gmra.mxu0 %v1424
        %v1426 = vpop.f32.mrf.mxu0
        %v1427 = vadd.f32 0.0, %v1426
        %1428 = vdwg.mxu0
        %1429 = vmatpush.msra.mxu0 0.0
        %1430 = vmatpush.msra.mxu0 0.0
        %1431 = vmatpush.msra.mxu0 0.0
        %1432 = vmatpush.msra.mxu0 0.0
        %1433 = vmatpush.msra.mxu0 0.0
        %1434 = vmatpush.msra.mxu0 0.0
        %1435 = vmatpush.msra.mxu0 0.0
        %1436 = vmatpush.msra.mxu0 0.0
        %1437 = vmatpush.msra.mxu0 0.0
        %1438 = vmatpush.msra.mxu0 0.0
        %1439 = vmatpush.msra.mxu0 0.0
        %1440 = vmatpush.msra.mxu0 0.0
        %1441 = vmatpush.msra.mxu0 0.0
        %1442 = vmatpush.msra.mxu0 0.0
        %1443 = vmatpush.msra.mxu0 0.0
        %v1444 = vand.u32 %v1255, 4294901760
        %v1445 = vsub.f32 %v1255, %v1444
        %v1446 = vand.u32 %v1445, 4294901760
        %v1447 = vsub.f32 %v1445, %v1446
        %v1448 = vand.u32 %v1447, 4294901760
        %1449 = vmatpush.msra.mxu0 %v1448
        %v1450 = vand.u32 %v1251, 4294901760
        %1451 = vmatmul.f32.gmra.mxu0 %v1450
        %v1452 = vpop.f32.mrf.mxu0
        %v1453 = vadd.f32 %v1427, %v1452
        %1454 = vdwg.mxu0
        %1455 = vmatpush.msra.mxu0 0.0
        %1456 = vmatpush.msra.mxu0 0.0
        %1457 = vmatpush.msra.mxu0 0.0
        %1458 = vmatpush.msra.mxu0 0.0
        %1459 = vmatpush.msra.mxu0 0.0
        %1460 = vmatpush.msra.mxu0 0.0
        %1461 = vmatpush.msra.mxu0 0.0
        %1462 = vmatpush.msra.mxu0 0.0
        %1463 = vmatpush.msra.mxu0 0.0
        %1464 = vmatpush.msra.mxu0 0.0
        %1465 = vmatpush.msra.mxu0 0.0
        %1466 = vmatpush.msra.mxu0 0.0
        %1467 = vmatpush.msra.mxu0 0.0
        %1468 = vmatpush.msra.mxu0 0.0
        %1469 = vmatpush.msra.mxu0 0.0
        %v1470 = vand.u32 %v1255, 4294901760
        %v1471 = vsub.f32 %v1255, %v1470
        %1472 = vmatpush.msra.mxu0 %v1471
        %v1473 = vand.u32 %v1251, 4294901760
        %v1474 = vsub.f32 %v1251, %v1473
        %1475 = vmatmul.f32.gmra.mxu0 %v1474
        %v1476 = vpop.f32.mrf.mxu0
        %v1477 = vadd.f32 %v1453, %v1476
        %1478 = vdwg.mxu0
        %1479 = vmatpush.msra.mxu0 0.0
        %1480 = vmatpush.msra.mxu0 0.0
        %1481 = vmatpush.msra.mxu0 0.0
        %1482 = vmatpush.msra.mxu0 0.0
        %1483 = vmatpush.msra.mxu0 0.0
        %1484 = vmatpush.msra.mxu0 0.0
        %1485 = vmatpush.msra.mxu0 0.0
        %1486 = vmatpush.msra.mxu0 0.0
        %1487 = vmatpush.msra.mxu0 0.0
        %1488 = vmatpush.msra.mxu0 0.0
        %1489 = vmatpush.msra.mxu0 0.0
        %1490 = vmatpush.msra.mxu0 0.0
        %1491 = vmatpush.msra.mxu0 0.0
        %1492 = vmatpush.msra.mxu0 0.0
        %1493 = vmatpush.msra.mxu0 0.0
        %v1494 = vand.u32 %v1255, 4294901760
        %1495 = vmatpush.msra.mxu0 %v1494
        %v1496 = vand.u32 %v1251, 4294901760
        %v1497 = vsub.f32 %v1251, %v1496
        %v1498 = vand.u32 %v1497, 4294901760
        %1499 = vmatmul.f32.gmra.mxu0 %v1498
        %v1500 = vpop.f32.mrf.mxu0
        %v1501 = vadd.f32 %v1477, %v1500
        %1502 = vdwg.mxu0
        %1503 = vmatpush.msra.mxu0 0.0
        %1504 = vmatpush.msra.mxu0 0.0
        %1505 = vmatpush.msra.mxu0 0.0
        %1506 = vmatpush.msra.mxu0 0.0
        %1507 = vmatpush.msra.mxu0 0.0
        %1508 = vmatpush.msra.mxu0 0.0
        %1509 = vmatpush.msra.mxu0 0.0
        %1510 = vmatpush.msra.mxu0 0.0
        %1511 = vmatpush.msra.mxu0 0.0
        %1512 = vmatpush.msra.mxu0 0.0
        %1513 = vmatpush.msra.mxu0 0.0
        %1514 = vmatpush.msra.mxu0 0.0
        %1515 = vmatpush.msra.mxu0 0.0
        %1516 = vmatpush.msra.mxu0 0.0
        %1517 = vmatpush.msra.mxu0 0.0
        %v1518 = vand.u32 %v1255, 4294901760
        %v1519 = vsub.f32 %v1255, %v1518
        %v1520 = vand.u32 %v1519, 4294901760
        %1521 = vmatpush.msra.mxu0 %v1520
        %v1522 = vand.u32 %v1251, 4294901760
        %1523 = vmatmul.f32.gmra.mxu0 %v1522
        %v1524 = vpop.f32.mrf.mxu0
        %v1525 = vadd.f32 %v1501, %v1524
        %1526 = vdwg.mxu0
        %1527 = vmatpush.msra.mxu0 0.0
        %1528 = vmatpush.msra.mxu0 0.0
        %1529 = vmatpush.msra.mxu0 0.0
        %1530 = vmatpush.msra.mxu0 0.0
        %1531 = vmatpush.msra.mxu0 0.0
        %1532 = vmatpush.msra.mxu0 0.0
        %1533 = vmatpush.msra.mxu0 0.0
        %1534 = vmatpush.msra.mxu0 0.0
        %1535 = vmatpush.msra.mxu0 0.0
        %1536 = vmatpush.msra.mxu0 0.0
        %1537 = vmatpush.msra.mxu0 0.0
        %1538 = vmatpush.msra.mxu0 0.0
        %1539 = vmatpush.msra.mxu0 0.0
        %1540 = vmatpush.msra.mxu0 0.0
        %1541 = vmatpush.msra.mxu0 0.0
        %v1542 = vand.u32 %v1255, 4294901760
        %1543 = vmatpush.msra.mxu0 %v1542
        %v1544 = vand.u32 %v1251, 4294901760
        %1545 = vmatmul.f32.gmra.mxu0 %v1544
        %v1546 = vpop.f32.mrf.mxu0
        %v1547 = vadd.f32 %v1525, %v1546
        %1548 = vdwg.mxu0
        %1549 = vst [vmem:[#allocation1] ss:$2 sm:$0xff] %v1227
        %s1550 = scalar_lea.vmem [#allocation1], 16
        %1551 = vst [vmem:[%s1550] ss:$2 sm:$0xff] %v1228
        %v1552 = vld.sshfl [vmem:[#allocation1] sm:$0xff pattern:$0x75316420]
        %v1553 = vld.sshfl [vmem:[#allocation1 + $0x8] sm:$0xff pattern:$0x75316420]
        %v1554 = vld.sshfl [vmem:[#allocation1 + $0x10] sm:$0xff pattern:$0x75316420]
        %1555 = vrot.lane.b32.xlu0 %v1552, 127
        %v1556 = vpop.permute.xlu0 %1555
        %1557 = vrot.lane.b32.xlu0 %v1553, 127
        %v1558 = vpop.permute.xlu0 %1557
        %1559 = vrot.lane.b32.xlu0 %v1554, 127
        %v1560 = vpop.permute.xlu0 %1559
        %vm1561 = vcmask 1039360
        %v1562 = vsel %vm1561, %v1556, %v1558
        %v1563 = vsel %vm1561, %v1558, %v1560
        %v1565 = vsel %vm294, %v1230, 0
        %v1567 = vsel %vm298, %v1562, 0
        %v1569 = vsel %vm298, %v1563, 0
        %1571 = vmatpush.msra.mxu0 0.0
        %1572 = vmatpush.msra.mxu0 0.0
        %1573 = vmatpush.msra.mxu0 0.0
        %1574 = vmatpush.msra.mxu0 0.0
        %1575 = vmatpush.msra.mxu0 0.0
        %1576 = vmatpush.msra.mxu0 0.0
        %1577 = vmatpush.msra.mxu0 0.0
        %1578 = vmatpush.msra.mxu0 0.0
        %1579 = vmatpush.msra.mxu0 0.0
        %1580 = vmatpush.msra.mxu0 0.0
        %1581 = vmatpush.msra.mxu0 0.0
        %1582 = vmatpush.msra.mxu0 0.0
        %1583 = vmatpush.msra.mxu0 0.0
        %1584 = vmatpush.msra.mxu0 0.0
        %1585 = vmatpush.msra.mxu0 0.0
        %v1586 = vand.u32 %v1567, 4294901760
        %1587 = vmatpush.msra.mxu0 %v1586
        %v1588 = vand.u32 %v1565, 4294901760
        %v1589 = vsub.f32 %v1565, %v1588
        %v1590 = vand.u32 %v1589, 4294901760
        %v1591 = vsub.f32 %v1589, %v1590
        %v1592 = vand.u32 %v1591, 4294901760
        %1593 = vmatmul.f32.gmra.mxu0 %v1592
        %v1594 = vpop.f32.mrf.mxu0
        %v1595 = vadd.f32 %v1401, %v1594
        %1596 = vdwg.mxu0
        %1597 = vmatpush.msra.mxu0 0.0
        %1598 = vmatpush.msra.mxu0 0.0
        %1599 = vmatpush.msra.mxu0 0.0
        %1600 = vmatpush.msra.mxu0 0.0
        %1601 = vmatpush.msra.mxu0 0.0
        %1602 = vmatpush.msra.mxu0 0.0
        %1603 = vmatpush.msra.mxu0 0.0
        %1604 = vmatpush.msra.mxu0 0.0
        %1605 = vmatpush.msra.mxu0 0.0
        %1606 = vmatpush.msra.mxu0 0.0
        %1607 = vmatpush.msra.mxu0 0.0
        %1608 = vmatpush.msra.mxu0 0.0
        %1609 = vmatpush.msra.mxu0 0.0
        %1610 = vmatpush.msra.mxu0 0.0
        %1611 = vmatpush.msra.mxu0 0.0
        %v1612 = vand.u32 %v1567, 4294901760
        %v1613 = vsub.f32 %v1567, %v1612
        %v1614 = vand.u32 %v1613, 4294901760
        %v1615 = vsub.f32 %v1613, %v1614
        %v1616 = vand.u32 %v1615, 4294901760
        %1617 = vmatpush.msra.mxu0 %v1616
        %v1618 = vand.u32 %v1565, 4294901760
        %1619 = vmatmul.f32.gmra.mxu0 %v1618
        %v1620 = vpop.f32.mrf.mxu0
        %v1621 = vadd.f32 %v1595, %v1620
        %1622 = vdwg.mxu0
        %1623 = vmatpush.msra.mxu0 0.0
        %1624 = vmatpush.msra.mxu0 0.0
        %1625 = vmatpush.msra.mxu0 0.0
        %1626 = vmatpush.msra.mxu0 0.0
        %1627 = vmatpush.msra.mxu0 0.0
        %1628 = vmatpush.msra.mxu0 0.0
        %1629 = vmatpush.msra.mxu0 0.0
        %1630 = vmatpush.msra.mxu0 0.0
        %1631 = vmatpush.msra.mxu0 0.0
        %1632 = vmatpush.msra.mxu0 0.0
        %1633 = vmatpush.msra.mxu0 0.0
        %1634 = vmatpush.msra.mxu0 0.0
        %1635 = vmatpush.msra.mxu0 0.0
        %1636 = vmatpush.msra.mxu0 0.0
        %1637 = vmatpush.msra.mxu0 0.0
        %v1638 = vand.u32 %v1567, 4294901760
        %v1639 = vsub.f32 %v1567, %v1638
        %1640 = vmatpush.msra.mxu0 %v1639
        %v1641 = vand.u32 %v1565, 4294901760
        %v1642 = vsub.f32 %v1565, %v1641
        %1643 = vmatmul.f32.gmra.mxu0 %v1642
        %v1644 = vpop.f32.mrf.mxu0
        %v1645 = vadd.f32 %v1621, %v1644
        %1646 = vdwg.mxu0
        %1647 = vmatpush.msra.mxu0 0.0
        %1648 = vmatpush.msra.mxu0 0.0
        %1649 = vmatpush.msra.mxu0 0.0
        %1650 = vmatpush.msra.mxu0 0.0
        %1651 = vmatpush.msra.mxu0 0.0
        %1652 = vmatpush.msra.mxu0 0.0
        %1653 = vmatpush.msra.mxu0 0.0
        %1654 = vmatpush.msra.mxu0 0.0
        %1655 = vmatpush.msra.mxu0 0.0
        %1656 = vmatpush.msra.mxu0 0.0
        %1657 = vmatpush.msra.mxu0 0.0
        %1658 = vmatpush.msra.mxu0 0.0
        %1659 = vmatpush.msra.mxu0 0.0
        %1660 = vmatpush.msra.mxu0 0.0
        %1661 = vmatpush.msra.mxu0 0.0
        %v1662 = vand.u32 %v1567, 4294901760
        %1663 = vmatpush.msra.mxu0 %v1662
        %v1664 = vand.u32 %v1565, 4294901760
        %v1665 = vsub.f32 %v1565, %v1664
        %v1666 = vand.u32 %v1665, 4294901760
        %1667 = vmatmul.f32.gmra.mxu0 %v1666
        %v1668 = vpop.f32.mrf.mxu0
        %v1669 = vadd.f32 %v1645, %v1668
        %1670 = vdwg.mxu0
        %1671 = vmatpush.msra.mxu0 0.0
        %1672 = vmatpush.msra.mxu0 0.0
        %1673 = vmatpush.msra.mxu0 0.0
        %1674 = vmatpush.msra.mxu0 0.0
        %1675 = vmatpush.msra.mxu0 0.0
        %1676 = vmatpush.msra.mxu0 0.0
        %1677 = vmatpush.msra.mxu0 0.0
        %1678 = vmatpush.msra.mxu0 0.0
        %1679 = vmatpush.msra.mxu0 0.0
        %1680 = vmatpush.msra.mxu0 0.0
        %1681 = vmatpush.msra.mxu0 0.0
        %1682 = vmatpush.msra.mxu0 0.0
        %1683 = vmatpush.msra.mxu0 0.0
        %1684 = vmatpush.msra.mxu0 0.0
        %1685 = vmatpush.msra.mxu0 0.0
        %v1686 = vand.u32 %v1567, 4294901760
        %v1687 = vsub.f32 %v1567, %v1686
        %v1688 = vand.u32 %v1687, 4294901760
        %1689 = vmatpush.msra.mxu0 %v1688
        %v1690 = vand.u32 %v1565, 4294901760
        %1691 = vmatmul.f32.gmra.mxu0 %v1690
        %v1692 = vpop.f32.mrf.mxu0
        %v1693 = vadd.f32 %v1669, %v1692
        %1694 = vdwg.mxu0
        %1695 = vmatpush.msra.mxu0 0.0
        %1696 = vmatpush.msra.mxu0 0.0
        %1697 = vmatpush.msra.mxu0 0.0
        %1698 = vmatpush.msra.mxu0 0.0
        %1699 = vmatpush.msra.mxu0 0.0
        %1700 = vmatpush.msra.mxu0 0.0
        %1701 = vmatpush.msra.mxu0 0.0
        %1702 = vmatpush.msra.mxu0 0.0
        %1703 = vmatpush.msra.mxu0 0.0
        %1704 = vmatpush.msra.mxu0 0.0
        %1705 = vmatpush.msra.mxu0 0.0
        %1706 = vmatpush.msra.mxu0 0.0
        %1707 = vmatpush.msra.mxu0 0.0
        %1708 = vmatpush.msra.mxu0 0.0
        %1709 = vmatpush.msra.mxu0 0.0
        %v1710 = vand.u32 %v1567, 4294901760
        %1711 = vmatpush.msra.mxu0 %v1710
        %v1712 = vand.u32 %v1565, 4294901760
        %1713 = vmatmul.f32.gmra.mxu0 %v1712
        %v1714 = vpop.f32.mrf.mxu0
        %v1715 = vadd.f32 %v1693, %v1714
        %1716 = vdwg.mxu0
        %1717 = vmatpush.msra.mxu0 0.0
        %1718 = vmatpush.msra.mxu0 0.0
        %1719 = vmatpush.msra.mxu0 0.0
        %1720 = vmatpush.msra.mxu0 0.0
        %1721 = vmatpush.msra.mxu0 0.0
        %1722 = vmatpush.msra.mxu0 0.0
        %1723 = vmatpush.msra.mxu0 0.0
        %1724 = vmatpush.msra.mxu0 0.0
        %1725 = vmatpush.msra.mxu0 0.0
        %1726 = vmatpush.msra.mxu0 0.0
        %1727 = vmatpush.msra.mxu0 0.0
        %1728 = vmatpush.msra.mxu0 0.0
        %1729 = vmatpush.msra.mxu0 0.0
        %1730 = vmatpush.msra.mxu0 0.0
        %1731 = vmatpush.msra.mxu0 0.0
        %v1732 = vand.u32 %v1569, 4294901760
        %1733 = vmatpush.msra.mxu0 %v1732
        %v1734 = vand.u32 %v1565, 4294901760
        %v1735 = vsub.f32 %v1565, %v1734
        %v1736 = vand.u32 %v1735, 4294901760
        %v1737 = vsub.f32 %v1735, %v1736
        %v1738 = vand.u32 %v1737, 4294901760
        %1739 = vmatmul.f32.gmra.mxu0 %v1738
        %v1740 = vpop.f32.mrf.mxu0
        %v1741 = vadd.f32 %v1547, %v1740
        %1742 = vdwg.mxu0
        %1743 = vmatpush.msra.mxu0 0.0
        %1744 = vmatpush.msra.mxu0 0.0
        %1745 = vmatpush.msra.mxu0 0.0
        %1746 = vmatpush.msra.mxu0 0.0
        %1747 = vmatpush.msra.mxu0 0.0
        %1748 = vmatpush.msra.mxu0 0.0
        %1749 = vmatpush.msra.mxu0 0.0
        %1750 = vmatpush.msra.mxu0 0.0
        %1751 = vmatpush.msra.mxu0 0.0
        %1752 = vmatpush.msra.mxu0 0.0
        %1753 = vmatpush.msra.mxu0 0.0
        %1754 = vmatpush.msra.mxu0 0.0
        %1755 = vmatpush.msra.mxu0 0.0
        %1756 = vmatpush.msra.mxu0 0.0
        %1757 = vmatpush.msra.mxu0 0.0
        %v1758 = vand.u32 %v1569, 4294901760
        %v1759 = vsub.f32 %v1569, %v1758
        %v1760 = vand.u32 %v1759, 4294901760
        %v1761 = vsub.f32 %v1759, %v1760
        %v1762 = vand.u32 %v1761, 4294901760
        %1763 = vmatpush.msra.mxu0 %v1762
        %v1764 = vand.u32 %v1565, 4294901760
        %1765 = vmatmul.f32.gmra.mxu0 %v1764
        %v1766 = vpop.f32.mrf.mxu0
        %v1767 = vadd.f32 %v1741, %v1766
        %1768 = vdwg.mxu0
        %1769 = vmatpush.msra.mxu0 0.0
        %1770 = vmatpush.msra.mxu0 0.0
        %1771 = vmatpush.msra.mxu0 0.0
        %1772 = vmatpush.msra.mxu0 0.0
        %1773 = vmatpush.msra.mxu0 0.0
        %1774 = vmatpush.msra.mxu0 0.0
        %1775 = vmatpush.msra.mxu0 0.0
        %1776 = vmatpush.msra.mxu0 0.0
        %1777 = vmatpush.msra.mxu0 0.0
        %1778 = vmatpush.msra.mxu0 0.0
        %1779 = vmatpush.msra.mxu0 0.0
        %1780 = vmatpush.msra.mxu0 0.0
        %1781 = vmatpush.msra.mxu0 0.0
        %1782 = vmatpush.msra.mxu0 0.0
        %1783 = vmatpush.msra.mxu0 0.0
        %v1784 = vand.u32 %v1569, 4294901760
        %v1785 = vsub.f32 %v1569, %v1784
        %1786 = vmatpush.msra.mxu0 %v1785
        %v1787 = vand.u32 %v1565, 4294901760
        %v1788 = vsub.f32 %v1565, %v1787
        %1789 = vmatmul.f32.gmra.mxu0 %v1788
        %v1790 = vpop.f32.mrf.mxu0
        %v1791 = vadd.f32 %v1767, %v1790
        %1792 = vdwg.mxu0
        %1793 = vmatpush.msra.mxu0 0.0
        %1794 = vmatpush.msra.mxu0 0.0
        %1795 = vmatpush.msra.mxu0 0.0
        %1796 = vmatpush.msra.mxu0 0.0
        %1797 = vmatpush.msra.mxu0 0.0
        %1798 = vmatpush.msra.mxu0 0.0
        %1799 = vmatpush.msra.mxu0 0.0
        %1800 = vmatpush.msra.mxu0 0.0
        %1801 = vmatpush.msra.mxu0 0.0
        %1802 = vmatpush.msra.mxu0 0.0
        %1803 = vmatpush.msra.mxu0 0.0
        %1804 = vmatpush.msra.mxu0 0.0
        %1805 = vmatpush.msra.mxu0 0.0
        %1806 = vmatpush.msra.mxu0 0.0
        %1807 = vmatpush.msra.mxu0 0.0
        %v1808 = vand.u32 %v1569, 4294901760
        %1809 = vmatpush.msra.mxu0 %v1808
        %v1810 = vand.u32 %v1565, 4294901760
        %v1811 = vsub.f32 %v1565, %v1810
        %v1812 = vand.u32 %v1811, 4294901760
        %1813 = vmatmul.f32.gmra.mxu0 %v1812
        %v1814 = vpop.f32.mrf.mxu0
        %v1815 = vadd.f32 %v1791, %v1814
        %1816 = vdwg.mxu0
        %1817 = vmatpush.msra.mxu0 0.0
        %1818 = vmatpush.msra.mxu0 0.0
        %1819 = vmatpush.msra.mxu0 0.0
        %1820 = vmatpush.msra.mxu0 0.0
        %1821 = vmatpush.msra.mxu0 0.0
        %1822 = vmatpush.msra.mxu0 0.0
        %1823 = vmatpush.msra.mxu0 0.0
        %1824 = vmatpush.msra.mxu0 0.0
        %1825 = vmatpush.msra.mxu0 0.0
        %1826 = vmatpush.msra.mxu0 0.0
        %1827 = vmatpush.msra.mxu0 0.0
        %1828 = vmatpush.msra.mxu0 0.0
        %1829 = vmatpush.msra.mxu0 0.0
        %1830 = vmatpush.msra.mxu0 0.0
        %1831 = vmatpush.msra.mxu0 0.0
        %v1832 = vand.u32 %v1569, 4294901760
        %v1833 = vsub.f32 %v1569, %v1832
        %v1834 = vand.u32 %v1833, 4294901760
        %1835 = vmatpush.msra.mxu0 %v1834
        %v1836 = vand.u32 %v1565, 4294901760
        %1837 = vmatmul.f32.gmra.mxu0 %v1836
        %v1838 = vpop.f32.mrf.mxu0
        %v1839 = vadd.f32 %v1815, %v1838
        %1840 = vdwg.mxu0
        %1841 = vmatpush.msra.mxu0 0.0
        %1842 = vmatpush.msra.mxu0 0.0
        %1843 = vmatpush.msra.mxu0 0.0
        %1844 = vmatpush.msra.mxu0 0.0
        %1845 = vmatpush.msra.mxu0 0.0
        %1846 = vmatpush.msra.mxu0 0.0
        %1847 = vmatpush.msra.mxu0 0.0
        %1848 = vmatpush.msra.mxu0 0.0
        %1849 = vmatpush.msra.mxu0 0.0
        %1850 = vmatpush.msra.mxu0 0.0
        %1851 = vmatpush.msra.mxu0 0.0
        %1852 = vmatpush.msra.mxu0 0.0
        %1853 = vmatpush.msra.mxu0 0.0
        %1854 = vmatpush.msra.mxu0 0.0
        %1855 = vmatpush.msra.mxu0 0.0
        %v1856 = vand.u32 %v1569, 4294901760
        %1857 = vmatpush.msra.mxu0 %v1856
        %v1858 = vand.u32 %v1565, 4294901760
        %1859 = vmatmul.f32.gmra.mxu0 %v1858
        %v1860 = vpop.f32.mrf.mxu0
        %v1861 = vadd.f32 %v1839, %v1860
        %1862 = vdwg.mxu0
        %v1863 = vld [vmem:[#allocation2] sm:$0xff]
        %v1864 = vld [vmem:[#allocation2 + $0x8] sm:$0xf]
        %s1865 = scalar_lea.vmem %s1, 28
        %v1866 = vld [vmem:[%s1865] sm:$0xf]
        %1869 = vst [vmem:[#allocation1] ss:$2 sm:$0xff] %v1863
        %s1870 = scalar_lea.vmem [#allocation1], 16
        %1871 = vst [vmem:[%s1870] ss:$2 sm:$0xff] %v1864
        %v1872 = vld.sshfl [vmem:[#allocation1] sm:$0xff pattern:$0x75316420]
        %v1873 = vld.sshfl [vmem:[#allocation1 + $0x8] sm:$0xff pattern:$0x75316420]
        %v1874 = vld.sshfl [vmem:[#allocation1 + $0x10] sm:$0xff pattern:$0x75316420]
        %1875 = vrot.lane.b32.xlu0 %v1872, 95
        %v1876 = vpop.permute.xlu0 %1875
        %1877 = vrot.lane.b32.xlu0 %v1873, 95
        %v1878 = vpop.permute.xlu0 %1877
        %1879 = vrot.lane.b32.xlu0 %v1874, 95
        %v1880 = vpop.permute.xlu0 %1879
        %vm1881 = vcmask 777216
        %v1882 = vsel %vm1881, %v1876, %v1878
        %v1883 = vsel %vm1881, %v1878, %v1880
        %v1885 = vsel %vm294, %v1866, 0
        %v1887 = vsel %vm298, %v1882, 0
        %v1889 = vsel %vm298, %v1883, 0
        %1891 = vmatpush.msra.mxu0 0.0
        %1892 = vmatpush.msra.mxu0 0.0
        %1893 = vmatpush.msra.mxu0 0.0
        %1894 = vmatpush.msra.mxu0 0.0
        %1895 = vmatpush.msra.mxu0 0.0
        %1896 = vmatpush.msra.mxu0 0.0
        %1897 = vmatpush.msra.mxu0 0.0
        %1898 = vmatpush.msra.mxu0 0.0
        %1899 = vmatpush.msra.mxu0 0.0
        %1900 = vmatpush.msra.mxu0 0.0
        %1901 = vmatpush.msra.mxu0 0.0
        %1902 = vmatpush.msra.mxu0 0.0
        %1903 = vmatpush.msra.mxu0 0.0
        %1904 = vmatpush.msra.mxu0 0.0
        %1905 = vmatpush.msra.mxu0 0.0
        %v1906 = vand.u32 %v1887, 4294901760
        %1907 = vmatpush.msra.mxu0 %v1906
        %v1908 = vand.u32 %v1885, 4294901760
        %v1909 = vsub.f32 %v1885, %v1908
        %v1910 = vand.u32 %v1909, 4294901760
        %v1911 = vsub.f32 %v1909, %v1910
        %v1912 = vand.u32 %v1911, 4294901760
        %1913 = vmatmul.f32.gmra.mxu0 %v1912
        %v1914 = vpop.f32.mrf.mxu0
        %v1915 = vadd.f32 0.0, %v1914
        %1916 = vdwg.mxu0
        %1917 = vmatpush.msra.mxu0 0.0
        %1918 = vmatpush.msra.mxu0 0.0
        %1919 = vmatpush.msra.mxu0 0.0
        %1920 = vmatpush.msra.mxu0 0.0
        %1921 = vmatpush.msra.mxu0 0.0
        %1922 = vmatpush.msra.mxu0 0.0
        %1923 = vmatpush.msra.mxu0 0.0
        %1924 = vmatpush.msra.mxu0 0.0
        %1925 = vmatpush.msra.mxu0 0.0
        %1926 = vmatpush.msra.mxu0 0.0
        %1927 = vmatpush.msra.mxu0 0.0
        %1928 = vmatpush.msra.mxu0 0.0
        %1929 = vmatpush.msra.mxu0 0.0
        %1930 = vmatpush.msra.mxu0 0.0
        %1931 = vmatpush.msra.mxu0 0.0
        %v1932 = vand.u32 %v1887, 4294901760
        %v1933 = vsub.f32 %v1887, %v1932
        %v1934 = vand.u32 %v1933, 4294901760
        %v1935 = vsub.f32 %v1933, %v1934
        %v1936 = vand.u32 %v1935, 4294901760
        %1937 = vmatpush.msra.mxu0 %v1936
        %v1938 = vand.u32 %v1885, 4294901760
        %1939 = vmatmul.f32.gmra.mxu0 %v1938
        %v1940 = vpop.f32.mrf.mxu0
        %v1941 = vadd.f32 %v1915, %v1940
        %1942 = vdwg.mxu0
        %1943 = vmatpush.msra.mxu0 0.0
        %1944 = vmatpush.msra.mxu0 0.0
        %1945 = vmatpush.msra.mxu0 0.0
        %1946 = vmatpush.msra.mxu0 0.0
        %1947 = vmatpush.msra.mxu0 0.0
        %1948 = vmatpush.msra.mxu0 0.0
        %1949 = vmatpush.msra.mxu0 0.0
        %1950 = vmatpush.msra.mxu0 0.0
        %1951 = vmatpush.msra.mxu0 0.0
        %1952 = vmatpush.msra.mxu0 0.0
        %1953 = vmatpush.msra.mxu0 0.0
        %1954 = vmatpush.msra.mxu0 0.0
        %1955 = vmatpush.msra.mxu0 0.0
        %1956 = vmatpush.msra.mxu0 0.0
        %1957 = vmatpush.msra.mxu0 0.0
        %v1958 = vand.u32 %v1887, 4294901760
        %v1959 = vsub.f32 %v1887, %v1958
        %1960 = vmatpush.msra.mxu0 %v1959
        %v1961 = vand.u32 %v1885, 4294901760
        %v1962 = vsub.f32 %v1885, %v1961
        %1963 = vmatmul.f32.gmra.mxu0 %v1962
        %v1964 = vpop.f32.mrf.mxu0
        %v1965 = vadd.f32 %v1941, %v1964
        %1966 = vdwg.mxu0
        %1967 = vmatpush.msra.mxu0 0.0
        %1968 = vmatpush.msra.mxu0 0.0
        %1969 = vmatpush.msra.mxu0 0.0
        %1970 = vmatpush.msra.mxu0 0.0
        %1971 = vmatpush.msra.mxu0 0.0
        %1972 = vmatpush.msra.mxu0 0.0
        %1973 = vmatpush.msra.mxu0 0.0
        %1974 = vmatpush.msra.mxu0 0.0
        %1975 = vmatpush.msra.mxu0 0.0
        %1976 = vmatpush.msra.mxu0 0.0
        %1977 = vmatpush.msra.mxu0 0.0
        %1978 = vmatpush.msra.mxu0 0.0
        %1979 = vmatpush.msra.mxu0 0.0
        %1980 = vmatpush.msra.mxu0 0.0
        %1981 = vmatpush.msra.mxu0 0.0
        %v1982 = vand.u32 %v1887, 4294901760
        %1983 = vmatpush.msra.mxu0 %v1982
        %v1984 = vand.u32 %v1885, 4294901760
        %v1985 = vsub.f32 %v1885, %v1984
        %v1986 = vand.u32 %v1985, 4294901760
        %1987 = vmatmul.f32.gmra.mxu0 %v1986
        %v1988 = vpop.f32.mrf.mxu0
        %v1989 = vadd.f32 %v1965, %v1988
        %1990 = vdwg.mxu0
        %1991 = vmatpush.msra.mxu0 0.0
        %1992 = vmatpush.msra.mxu0 0.0
        %1993 = vmatpush.msra.mxu0 0.0
        %1994 = vmatpush.msra.mxu0 0.0
        %1995 = vmatpush.msra.mxu0 0.0
        %1996 = vmatpush.msra.mxu0 0.0
        %1997 = vmatpush.msra.mxu0 0.0
        %1998 = vmatpush.msra.mxu0 0.0
        %1999 = vmatpush.msra.mxu0 0.0
        %2000 = vmatpush.msra.mxu0 0.0
        %2001 = vmatpush.msra.mxu0 0.0
        %2002 = vmatpush.msra.mxu0 0.0
        %2003 = vmatpush.msra.mxu0 0.0
        %2004 = vmatpush.msra.mxu0 0.0
        %2005 = vmatpush.msra.mxu0 0.0
        %v2006 = vand.u32 %v1887, 4294901760
        %v2007 = vsub.f32 %v1887, %v2006
        %v2008 = vand.u32 %v2007, 4294901760
        %2009 = vmatpush.msra.mxu0 %v2008
        %v2010 = vand.u32 %v1885, 4294901760
        %2011 = vmatmul.f32.gmra.mxu0 %v2010
        %v2012 = vpop.f32.mrf.mxu0
        %v2013 = vadd.f32 %v1989, %v2012
        %2014 = vdwg.mxu0
        %2015 = vmatpush.msra.mxu0 0.0
        %2016 = vmatpush.msra.mxu0 0.0
        %2017 = vmatpush.msra.mxu0 0.0
        %2018 = vmatpush.msra.mxu0 0.0
        %2019 = vmatpush.msra.mxu0 0.0
        %2020 = vmatpush.msra.mxu0 0.0
        %2021 = vmatpush.msra.mxu0 0.0
        %2022 = vmatpush.msra.mxu0 0.0
        %2023 = vmatpush.msra.mxu0 0.0
        %2024 = vmatpush.msra.mxu0 0.0
        %2025 = vmatpush.msra.mxu0 0.0
        %2026 = vmatpush.msra.mxu0 0.0
        %2027 = vmatpush.msra.mxu0 0.0
        %2028 = vmatpush.msra.mxu0 0.0
        %2029 = vmatpush.msra.mxu0 0.0
        %v2030 = vand.u32 %v1887, 4294901760
        %2031 = vmatpush.msra.mxu0 %v2030
        %v2032 = vand.u32 %v1885, 4294901760
        %2033 = vmatmul.f32.gmra.mxu0 %v2032
        %v2034 = vpop.f32.mrf.mxu0
        %v2035 = vadd.f32 %v2013, %v2034
        %2036 = vdwg.mxu0
        %2037 = vmatpush.msra.mxu0 0.0
        %2038 = vmatpush.msra.mxu0 0.0
        %2039 = vmatpush.msra.mxu0 0.0
        %2040 = vmatpush.msra.mxu0 0.0
        %2041 = vmatpush.msra.mxu0 0.0
        %2042 = vmatpush.msra.mxu0 0.0
        %2043 = vmatpush.msra.mxu0 0.0
        %2044 = vmatpush.msra.mxu0 0.0
        %2045 = vmatpush.msra.mxu0 0.0
        %2046 = vmatpush.msra.mxu0 0.0
        %2047 = vmatpush.msra.mxu0 0.0
        %2048 = vmatpush.msra.mxu0 0.0
        %2049 = vmatpush.msra.mxu0 0.0
        %2050 = vmatpush.msra.mxu0 0.0
        %2051 = vmatpush.msra.mxu0 0.0
        %v2052 = vand.u32 %v1889, 4294901760
        %2053 = vmatpush.msra.mxu0 %v2052
        %v2054 = vand.u32 %v1885, 4294901760
        %v2055 = vsub.f32 %v1885, %v2054
        %v2056 = vand.u32 %v2055, 4294901760
        %v2057 = vsub.f32 %v2055, %v2056
        %v2058 = vand.u32 %v2057, 4294901760
        %2059 = vmatmul.f32.gmra.mxu0 %v2058
        %v2060 = vpop.f32.mrf.mxu0
        %v2061 = vadd.f32 0.0, %v2060
        %2062 = vdwg.mxu0
        %2063 = vmatpush.msra.mxu0 0.0
        %2064 = vmatpush.msra.mxu0 0.0
        %2065 = vmatpush.msra.mxu0 0.0
        %2066 = vmatpush.msra.mxu0 0.0
        %2067 = vmatpush.msra.mxu0 0.0
        %2068 = vmatpush.msra.mxu0 0.0
        %2069 = vmatpush.msra.mxu0 0.0
        %2070 = vmatpush.msra.mxu0 0.0
        %2071 = vmatpush.msra.mxu0 0.0
        %2072 = vmatpush.msra.mxu0 0.0
        %2073 = vmatpush.msra.mxu0 0.0
        %2074 = vmatpush.msra.mxu0 0.0
        %2075 = vmatpush.msra.mxu0 0.0
        %2076 = vmatpush.msra.mxu0 0.0
        %2077 = vmatpush.msra.mxu0 0.0
        %v2078 = vand.u32 %v1889, 4294901760
        %v2079 = vsub.f32 %v1889, %v2078
        %v2080 = vand.u32 %v2079, 4294901760
        %v2081 = vsub.f32 %v2079, %v2080
        %v2082 = vand.u32 %v2081, 4294901760
        %2083 = vmatpush.msra.mxu0 %v2082
        %v2084 = vand.u32 %v1885, 4294901760
        %2085 = vmatmul.f32.gmra.mxu0 %v2084
        %v2086 = vpop.f32.mrf.mxu0
        %v2087 = vadd.f32 %v2061, %v2086
        %2088 = vdwg.mxu0
        %2089 = vmatpush.msra.mxu0 0.0
        %2090 = vmatpush.msra.mxu0 0.0
        %2091 = vmatpush.msra.mxu0 0.0
        %2092 = vmatpush.msra.mxu0 0.0
        %2093 = vmatpush.msra.mxu0 0.0
        %2094 = vmatpush.msra.mxu0 0.0
        %2095 = vmatpush.msra.mxu0 0.0
        %2096 = vmatpush.msra.mxu0 0.0
        %2097 = vmatpush.msra.mxu0 0.0
        %2098 = vmatpush.msra.mxu0 0.0
        %2099 = vmatpush.msra.mxu0 0.0
        %2100 = vmatpush.msra.mxu0 0.0
        %2101 = vmatpush.msra.mxu0 0.0
        %2102 = vmatpush.msra.mxu0 0.0
        %2103 = vmatpush.msra.mxu0 0.0
        %v2104 = vand.u32 %v1889, 4294901760
        %v2105 = vsub.f32 %v1889, %v2104
        %2106 = vmatpush.msra.mxu0 %v2105
        %v2107 = vand.u32 %v1885, 4294901760
        %v2108 = vsub.f32 %v1885, %v2107
        %2109 = vmatmul.f32.gmra.mxu0 %v2108
        %v2110 = vpop.f32.mrf.mxu0
        %v2111 = vadd.f32 %v2087, %v2110
        %2112 = vdwg.mxu0
        %2113 = vmatpush.msra.mxu0 0.0
        %2114 = vmatpush.msra.mxu0 0.0
        %2115 = vmatpush.msra.mxu0 0.0
        %2116 = vmatpush.msra.mxu0 0.0
        %2117 = vmatpush.msra.mxu0 0.0
        %2118 = vmatpush.msra.mxu0 0.0
        %2119 = vmatpush.msra.mxu0 0.0
        %2120 = vmatpush.msra.mxu0 0.0
        %2121 = vmatpush.msra.mxu0 0.0
        %2122 = vmatpush.msra.mxu0 0.0
        %2123 = vmatpush.msra.mxu0 0.0
        %2124 = vmatpush.msra.mxu0 0.0
        %2125 = vmatpush.msra.mxu0 0.0
        %2126 = vmatpush.msra.mxu0 0.0
        %2127 = vmatpush.msra.mxu0 0.0
        %v2128 = vand.u32 %v1889, 4294901760
        %2129 = vmatpush.msra.mxu0 %v2128
        %v2130 = vand.u32 %v1885, 4294901760
        %v2131 = vsub.f32 %v1885, %v2130
        %v2132 = vand.u32 %v2131, 4294901760
        %2133 = vmatmul.f32.gmra.mxu0 %v2132
        %v2134 = vpop.f32.mrf.mxu0
        %v2135 = vadd.f32 %v2111, %v2134
        %2136 = vdwg.mxu0
        %2137 = vmatpush.msra.mxu0 0.0
        %2138 = vmatpush.msra.mxu0 0.0
        %2139 = vmatpush.msra.mxu0 0.0
        %2140 = vmatpush.msra.mxu0 0.0
        %2141 = vmatpush.msra.mxu0 0.0
        %2142 = vmatpush.msra.mxu0 0.0
        %2143 = vmatpush.msra.mxu0 0.0
        %2144 = vmatpush.msra.mxu0 0.0
        %2145 = vmatpush.msra.mxu0 0.0
        %2146 = vmatpush.msra.mxu0 0.0
        %2147 = vmatpush.msra.mxu0 0.0
        %2148 = vmatpush.msra.mxu0 0.0
        %2149 = vmatpush.msra.mxu0 0.0
        %2150 = vmatpush.msra.mxu0 0.0
        %2151 = vmatpush.msra.mxu0 0.0
        %v2152 = vand.u32 %v1889, 4294901760
        %v2153 = vsub.f32 %v1889, %v2152
        %v2154 = vand.u32 %v2153, 4294901760
        %2155 = vmatpush.msra.mxu0 %v2154
        %v2156 = vand.u32 %v1885, 4294901760
        %2157 = vmatmul.f32.gmra.mxu0 %v2156
        %v2158 = vpop.f32.mrf.mxu0
        %v2159 = vadd.f32 %v2135, %v2158
        %2160 = vdwg.mxu0
        %2161 = vmatpush.msra.mxu0 0.0
        %2162 = vmatpush.msra.mxu0 0.0
        %2163 = vmatpush.msra.mxu0 0.0
        %2164 = vmatpush.msra.mxu0 0.0
        %2165 = vmatpush.msra.mxu0 0.0
        %2166 = vmatpush.msra.mxu0 0.0
        %2167 = vmatpush.msra.mxu0 0.0
        %2168 = vmatpush.msra.mxu0 0.0
        %2169 = vmatpush.msra.mxu0 0.0
        %2170 = vmatpush.msra.mxu0 0.0
        %2171 = vmatpush.msra.mxu0 0.0
        %2172 = vmatpush.msra.mxu0 0.0
        %2173 = vmatpush.msra.mxu0 0.0
        %2174 = vmatpush.msra.mxu0 0.0
        %2175 = vmatpush.msra.mxu0 0.0
        %v2176 = vand.u32 %v1889, 4294901760
        %2177 = vmatpush.msra.mxu0 %v2176
        %v2178 = vand.u32 %v1885, 4294901760
        %2179 = vmatmul.f32.gmra.mxu0 %v2178
        %v2180 = vpop.f32.mrf.mxu0
        %v2181 = vadd.f32 %v2159, %v2180
        %2182 = vdwg.mxu0
        %v2183 = vadd.f32 %v1715, %v2035
        %v2184 = vadd.f32 %v1861, %v2181
        %v2185 = vadd.f32 %v1225, %v2183
        %v2186 = vadd.f32 %v1226, %v2184
        %v2187 = vld [vmem:[#allocation2] sm:$0xff]
        %v2188 = vld [vmem:[#allocation2 + $0x8] sm:$0xf]
        %s2189 = scalar_lea.vmem %s1, 8
        %v2190 = vld [vmem:[%s2189] sm:$0xf]
        %s2191 = scalar_lea.vmem %s1, 20
        %v2192 = vld [vmem:[%s2191] sm:$0xf]
        %2195 = vst [vmem:[#allocation1] ss:$2 sm:$0xff] %v2187
        %s2196 = scalar_lea.vmem [#allocation1], 16
        %2197 = vst [vmem:[%s2196] ss:$2 sm:$0xff] %v2188
        %v2198 = vld.sshfl [vmem:[#allocation1] sm:$0xff pattern:$0x75316420]
        %v2199 = vld.sshfl [vmem:[#allocation1 + $0x8] sm:$0xff pattern:$0x75316420]
        %v2200 = vld.sshfl [vmem:[#allocation1 + $0x10] sm:$0xff pattern:$0x75316420]
        %2201 = vrot.lane.b32.xlu0 %v2198, 110
        %v2202 = vpop.permute.xlu0 %2201
        %2203 = vrot.lane.b32.xlu0 %v2199, 110
        %v2204 = vpop.permute.xlu0 %2203
        %2205 = vrot.lane.b32.xlu0 %v2200, 110
        %v2206 = vpop.permute.xlu0 %2205
        %vm2207 = vcmask 900096
        %v2208 = vsel %vm2207, %v2202, %v2204
        %v2209 = vsel %vm2207, %v2204, %v2206
        %v2211 = vsel %vm294, %v2192, 0
        %v2213 = vsel %vm298, %v2208, 0
        %v2215 = vsel %vm298, %v2209, 0
        %2217 = vmatpush.msra.mxu0 0.0
        %2218 = vmatpush.msra.mxu0 0.0
        %2219 = vmatpush.msra.mxu0 0.0
        %2220 = vmatpush.msra.mxu0 0.0
        %2221 = vmatpush.msra.mxu0 0.0
        %2222 = vmatpush.msra.mxu0 0.0
        %2223 = vmatpush.msra.mxu0 0.0
        %2224 = vmatpush.msra.mxu0 0.0
        %2225 = vmatpush.msra.mxu0 0.0
        %2226 = vmatpush.msra.mxu0 0.0
        %2227 = vmatpush.msra.mxu0 0.0
        %2228 = vmatpush.msra.mxu0 0.0
        %2229 = vmatpush.msra.mxu0 0.0
        %2230 = vmatpush.msra.mxu0 0.0
        %2231 = vmatpush.msra.mxu0 0.0
        %v2232 = vand.u32 %v2213, 4294901760
        %2233 = vmatpush.msra.mxu0 %v2232
        %v2234 = vand.u32 %v2211, 4294901760
        %v2235 = vsub.f32 %v2211, %v2234
        %v2236 = vand.u32 %v2235, 4294901760
        %v2237 = vsub.f32 %v2235, %v2236
        %v2238 = vand.u32 %v2237, 4294901760
        %2239 = vmatmul.f32.gmra.mxu0 %v2238
        %v2240 = vpop.f32.mrf.mxu0
        %v2241 = vadd.f32 0.0, %v2240
        %2242 = vdwg.mxu0
        %2243 = vmatpush.msra.mxu0 0.0
        %2244 = vmatpush.msra.mxu0 0.0
        %2245 = vmatpush.msra.mxu0 0.0
        %2246 = vmatpush.msra.mxu0 0.0
        %2247 = vmatpush.msra.mxu0 0.0
        %2248 = vmatpush.msra.mxu0 0.0
        %2249 = vmatpush.msra.mxu0 0.0
        %2250 = vmatpush.msra.mxu0 0.0
        %2251 = vmatpush.msra.mxu0 0.0
        %2252 = vmatpush.msra.mxu0 0.0
        %2253 = vmatpush.msra.mxu0 0.0
        %2254 = vmatpush.msra.mxu0 0.0
        %2255 = vmatpush.msra.mxu0 0.0
        %2256 = vmatpush.msra.mxu0 0.0
        %2257 = vmatpush.msra.mxu0 0.0
        %v2258 = vand.u32 %v2213, 4294901760
        %v2259 = vsub.f32 %v2213, %v2258
        %v2260 = vand.u32 %v2259, 4294901760
        %v2261 = vsub.f32 %v2259, %v2260
        %v2262 = vand.u32 %v2261, 4294901760
        %2263 = vmatpush.msra.mxu0 %v2262
        %v2264 = vand.u32 %v2211, 4294901760
        %2265 = vmatmul.f32.gmra.mxu0 %v2264
        %v2266 = vpop.f32.mrf.mxu0
        %v2267 = vadd.f32 %v2241, %v2266
        %2268 = vdwg.mxu0
        %2269 = vmatpush.msra.mxu0 0.0
        %2270 = vmatpush.msra.mxu0 0.0
        %2271 = vmatpush.msra.mxu0 0.0
        %2272 = vmatpush.msra.mxu0 0.0
        %2273 = vmatpush.msra.mxu0 0.0
        %2274 = vmatpush.msra.mxu0 0.0
        %2275 = vmatpush.msra.mxu0 0.0
        %2276 = vmatpush.msra.mxu0 0.0
        %2277 = vmatpush.msra.mxu0 0.0
        %2278 = vmatpush.msra.mxu0 0.0
        %2279 = vmatpush.msra.mxu0 0.0
        %2280 = vmatpush.msra.mxu0 0.0
        %2281 = vmatpush.msra.mxu0 0.0
        %2282 = vmatpush.msra.mxu0 0.0
        %2283 = vmatpush.msra.mxu0 0.0
        %v2284 = vand.u32 %v2213, 4294901760
        %v2285 = vsub.f32 %v2213, %v2284
        %2286 = vmatpush.msra.mxu0 %v2285
        %v2287 = vand.u32 %v2211, 4294901760
        %v2288 = vsub.f32 %v2211, %v2287
        %2289 = vmatmul.f32.gmra.mxu0 %v2288
        %v2290 = vpop.f32.mrf.mxu0
        %v2291 = vadd.f32 %v2267, %v2290
        %2292 = vdwg.mxu0
        %2293 = vmatpush.msra.mxu0 0.0
        %2294 = vmatpush.msra.mxu0 0.0
        %2295 = vmatpush.msra.mxu0 0.0
        %2296 = vmatpush.msra.mxu0 0.0
        %2297 = vmatpush.msra.mxu0 0.0
        %2298 = vmatpush.msra.mxu0 0.0
        %2299 = vmatpush.msra.mxu0 0.0
        %2300 = vmatpush.msra.mxu0 0.0
        %2301 = vmatpush.msra.mxu0 0.0
        %2302 = vmatpush.msra.mxu0 0.0
        %2303 = vmatpush.msra.mxu0 0.0
        %2304 = vmatpush.msra.mxu0 0.0
        %2305 = vmatpush.msra.mxu0 0.0
        %2306 = vmatpush.msra.mxu0 0.0
        %2307 = vmatpush.msra.mxu0 0.0
        %v2308 = vand.u32 %v2213, 4294901760
        %2309 = vmatpush.msra.mxu0 %v2308
        %v2310 = vand.u32 %v2211, 4294901760
        %v2311 = vsub.f32 %v2211, %v2310
        %v2312 = vand.u32 %v2311, 4294901760
        %2313 = vmatmul.f32.gmra.mxu0 %v2312
        %v2314 = vpop.f32.mrf.mxu0
        %v2315 = vadd.f32 %v2291, %v2314
        %2316 = vdwg.mxu0
        %2317 = vmatpush.msra.mxu0 0.0
        %2318 = vmatpush.msra.mxu0 0.0
        %2319 = vmatpush.msra.mxu0 0.0
        %2320 = vmatpush.msra.mxu0 0.0
        %2321 = vmatpush.msra.mxu0 0.0
        %2322 = vmatpush.msra.mxu0 0.0
        %2323 = vmatpush.msra.mxu0 0.0
        %2324 = vmatpush.msra.mxu0 0.0
        %2325 = vmatpush.msra.mxu0 0.0
        %2326 = vmatpush.msra.mxu0 0.0
        %2327 = vmatpush.msra.mxu0 0.0
        %2328 = vmatpush.msra.mxu0 0.0
        %2329 = vmatpush.msra.mxu0 0.0
        %2330 = vmatpush.msra.mxu0 0.0
        %2331 = vmatpush.msra.mxu0 0.0
        %v2332 = vand.u32 %v2213, 4294901760
        %v2333 = vsub.f32 %v2213, %v2332
        %v2334 = vand.u32 %v2333, 4294901760
        %2335 = vmatpush.msra.mxu0 %v2334
        %v2336 = vand.u32 %v2211, 4294901760
        %2337 = vmatmul.f32.gmra.mxu0 %v2336
        %v2338 = vpop.f32.mrf.mxu0
        %v2339 = vadd.f32 %v2315, %v2338
        %2340 = vdwg.mxu0
        %2341 = vmatpush.msra.mxu0 0.0
        %2342 = vmatpush.msra.mxu0 0.0
        %2343 = vmatpush.msra.mxu0 0.0
        %2344 = vmatpush.msra.mxu0 0.0
        %2345 = vmatpush.msra.mxu0 0.0
        %2346 = vmatpush.msra.mxu0 0.0
        %2347 = vmatpush.msra.mxu0 0.0
        %2348 = vmatpush.msra.mxu0 0.0
        %2349 = vmatpush.msra.mxu0 0.0
        %2350 = vmatpush.msra.mxu0 0.0
        %2351 = vmatpush.msra.mxu0 0.0
        %2352 = vmatpush.msra.mxu0 0.0
        %2353 = vmatpush.msra.mxu0 0.0
        %2354 = vmatpush.msra.mxu0 0.0
        %2355 = vmatpush.msra.mxu0 0.0
        %v2356 = vand.u32 %v2213, 4294901760
        %2357 = vmatpush.msra.mxu0 %v2356
        %v2358 = vand.u32 %v2211, 4294901760
        %2359 = vmatmul.f32.gmra.mxu0 %v2358
        %v2360 = vpop.f32.mrf.mxu0
        %v2361 = vadd.f32 %v2339, %v2360
        %2362 = vdwg.mxu0
        %2363 = vmatpush.msra.mxu0 0.0
        %2364 = vmatpush.msra.mxu0 0.0
        %2365 = vmatpush.msra.mxu0 0.0
        %2366 = vmatpush.msra.mxu0 0.0
        %2367 = vmatpush.msra.mxu0 0.0
        %2368 = vmatpush.msra.mxu0 0.0
        %2369 = vmatpush.msra.mxu0 0.0
        %2370 = vmatpush.msra.mxu0 0.0
        %2371 = vmatpush.msra.mxu0 0.0
        %2372 = vmatpush.msra.mxu0 0.0
        %2373 = vmatpush.msra.mxu0 0.0
        %2374 = vmatpush.msra.mxu0 0.0
        %2375 = vmatpush.msra.mxu0 0.0
        %2376 = vmatpush.msra.mxu0 0.0
        %2377 = vmatpush.msra.mxu0 0.0
        %v2378 = vand.u32 %v2215, 4294901760
        %2379 = vmatpush.msra.mxu0 %v2378
        %v2380 = vand.u32 %v2211, 4294901760
        %v2381 = vsub.f32 %v2211, %v2380
        %v2382 = vand.u32 %v2381, 4294901760
        %v2383 = vsub.f32 %v2381, %v2382
        %v2384 = vand.u32 %v2383, 4294901760
        %2385 = vmatmul.f32.gmra.mxu0 %v2384
        %v2386 = vpop.f32.mrf.mxu0
        %v2387 = vadd.f32 0.0, %v2386
        %2388 = vdwg.mxu0
        %2389 = vmatpush.msra.mxu0 0.0
        %2390 = vmatpush.msra.mxu0 0.0
        %2391 = vmatpush.msra.mxu0 0.0
        %2392 = vmatpush.msra.mxu0 0.0
        %2393 = vmatpush.msra.mxu0 0.0
        %2394 = vmatpush.msra.mxu0 0.0
        %2395 = vmatpush.msra.mxu0 0.0
        %2396 = vmatpush.msra.mxu0 0.0
        %2397 = vmatpush.msra.mxu0 0.0
        %2398 = vmatpush.msra.mxu0 0.0
        %2399 = vmatpush.msra.mxu0 0.0
        %2400 = vmatpush.msra.mxu0 0.0
        %2401 = vmatpush.msra.mxu0 0.0
        %2402 = vmatpush.msra.mxu0 0.0
        %2403 = vmatpush.msra.mxu0 0.0
        %v2404 = vand.u32 %v2215, 4294901760
        %v2405 = vsub.f32 %v2215, %v2404
        %v2406 = vand.u32 %v2405, 4294901760
        %v2407 = vsub.f32 %v2405, %v2406
        %v2408 = vand.u32 %v2407, 4294901760
        %2409 = vmatpush.msra.mxu0 %v2408
        %v2410 = vand.u32 %v2211, 4294901760
        %2411 = vmatmul.f32.gmra.mxu0 %v2410
        %v2412 = vpop.f32.mrf.mxu0
        %v2413 = vadd.f32 %v2387, %v2412
        %2414 = vdwg.mxu0
        %2415 = vmatpush.msra.mxu0 0.0
        %2416 = vmatpush.msra.mxu0 0.0
        %2417 = vmatpush.msra.mxu0 0.0
        %2418 = vmatpush.msra.mxu0 0.0
        %2419 = vmatpush.msra.mxu0 0.0
        %2420 = vmatpush.msra.mxu0 0.0
        %2421 = vmatpush.msra.mxu0 0.0
        %2422 = vmatpush.msra.mxu0 0.0
        %2423 = vmatpush.msra.mxu0 0.0
        %2424 = vmatpush.msra.mxu0 0.0
        %2425 = vmatpush.msra.mxu0 0.0
        %2426 = vmatpush.msra.mxu0 0.0
        %2427 = vmatpush.msra.mxu0 0.0
        %2428 = vmatpush.msra.mxu0 0.0
        %2429 = vmatpush.msra.mxu0 0.0
        %v2430 = vand.u32 %v2215, 4294901760
        %v2431 = vsub.f32 %v2215, %v2430
        %2432 = vmatpush.msra.mxu0 %v2431
        %v2433 = vand.u32 %v2211, 4294901760
        %v2434 = vsub.f32 %v2211, %v2433
        %2435 = vmatmul.f32.gmra.mxu0 %v2434
        %v2436 = vpop.f32.mrf.mxu0
        %v2437 = vadd.f32 %v2413, %v2436
        %2438 = vdwg.mxu0
        %2439 = vmatpush.msra.mxu0 0.0
        %2440 = vmatpush.msra.mxu0 0.0
        %2441 = vmatpush.msra.mxu0 0.0
        %2442 = vmatpush.msra.mxu0 0.0
        %2443 = vmatpush.msra.mxu0 0.0
        %2444 = vmatpush.msra.mxu0 0.0
        %2445 = vmatpush.msra.mxu0 0.0
        %2446 = vmatpush.msra.mxu0 0.0
        %2447 = vmatpush.msra.mxu0 0.0
        %2448 = vmatpush.msra.mxu0 0.0
        %2449 = vmatpush.msra.mxu0 0.0
        %2450 = vmatpush.msra.mxu0 0.0
        %2451 = vmatpush.msra.mxu0 0.0
        %2452 = vmatpush.msra.mxu0 0.0
        %2453 = vmatpush.msra.mxu0 0.0
        %v2454 = vand.u32 %v2215, 4294901760
        %2455 = vmatpush.msra.mxu0 %v2454
        %v2456 = vand.u32 %v2211, 4294901760
        %v2457 = vsub.f32 %v2211, %v2456
        %v2458 = vand.u32 %v2457, 4294901760
        %2459 = vmatmul.f32.gmra.mxu0 %v2458
        %v2460 = vpop.f32.mrf.mxu0
        %v2461 = vadd.f32 %v2437, %v2460
        %2462 = vdwg.mxu0
        %2463 = vmatpush.msra.mxu0 0.0
        %2464 = vmatpush.msra.mxu0 0.0
        %2465 = vmatpush.msra.mxu0 0.0
        %2466 = vmatpush.msra.mxu0 0.0
        %2467 = vmatpush.msra.mxu0 0.0
        %2468 = vmatpush.msra.mxu0 0.0
        %2469 = vmatpush.msra.mxu0 0.0
        %2470 = vmatpush.msra.mxu0 0.0
        %2471 = vmatpush.msra.mxu0 0.0
        %2472 = vmatpush.msra.mxu0 0.0
        %2473 = vmatpush.msra.mxu0 0.0
        %2474 = vmatpush.msra.mxu0 0.0
        %2475 = vmatpush.msra.mxu0 0.0
        %2476 = vmatpush.msra.mxu0 0.0
        %2477 = vmatpush.msra.mxu0 0.0
        %v2478 = vand.u32 %v2215, 4294901760
        %v2479 = vsub.f32 %v2215, %v2478
        %v2480 = vand.u32 %v2479, 4294901760
        %2481 = vmatpush.msra.mxu0 %v2480
        %v2482 = vand.u32 %v2211, 4294901760
        %2483 = vmatmul.f32.gmra.mxu0 %v2482
        %v2484 = vpop.f32.mrf.mxu0
        %v2485 = vadd.f32 %v2461, %v2484
        %2486 = vdwg.mxu0
        %2487 = vmatpush.msra.mxu0 0.0
        %2488 = vmatpush.msra.mxu0 0.0
        %2489 = vmatpush.msra.mxu0 0.0
        %2490 = vmatpush.msra.mxu0 0.0
        %2491 = vmatpush.msra.mxu0 0.0
        %2492 = vmatpush.msra.mxu0 0.0
        %2493 = vmatpush.msra.mxu0 0.0
        %2494 = vmatpush.msra.mxu0 0.0
        %2495 = vmatpush.msra.mxu0 0.0
        %2496 = vmatpush.msra.mxu0 0.0
        %2497 = vmatpush.msra.mxu0 0.0
        %2498 = vmatpush.msra.mxu0 0.0
        %2499 = vmatpush.msra.mxu0 0.0
        %2500 = vmatpush.msra.mxu0 0.0
        %2501 = vmatpush.msra.mxu0 0.0
        %v2502 = vand.u32 %v2215, 4294901760
        %2503 = vmatpush.msra.mxu0 %v2502
        %v2504 = vand.u32 %v2211, 4294901760
        %2505 = vmatmul.f32.gmra.mxu0 %v2504
        %v2506 = vpop.f32.mrf.mxu0
        %v2507 = vadd.f32 %v2485, %v2506
        %2508 = vdwg.mxu0
        %2509 = vst [vmem:[#allocation1] ss:$2 sm:$0xff] %v2187
        %s2510 = scalar_lea.vmem [#allocation1], 16
        %2511 = vst [vmem:[%s2510] ss:$2 sm:$0xff] %v2188
        %v2512 = vld.sshfl [vmem:[#allocation1] sm:$0xff pattern:$0x75316420]
        %v2513 = vld.sshfl [vmem:[#allocation1 + $0x8] sm:$0xff pattern:$0x75316420]
        %v2514 = vld.sshfl [vmem:[#allocation1 + $0x10] sm:$0xff pattern:$0x75316420]
        %2515 = vrot.lane.b32.xlu0 %v2512, 126
        %v2516 = vpop.permute.xlu0 %2515
        %2517 = vrot.lane.b32.xlu0 %v2513, 126
        %v2518 = vpop.permute.xlu0 %2517
        %2519 = vrot.lane.b32.xlu0 %v2514, 126
        %v2520 = vpop.permute.xlu0 %2519
        %vm2521 = vcmask 1031168
        %v2522 = vsel %vm2521, %v2516, %v2518
        %v2523 = vsel %vm2521, %v2518, %v2520
        %v2525 = vsel %vm294, %v2190, 0
        %v2527 = vsel %vm298, %v2522, 0
        %v2529 = vsel %vm298, %v2523, 0
        %2531 = vmatpush.msra.mxu0 0.0
        %2532 = vmatpush.msra.mxu0 0.0
        %2533 = vmatpush.msra.mxu0 0.0
        %2534 = vmatpush.msra.mxu0 0.0
        %2535 = vmatpush.msra.mxu0 0.0
        %2536 = vmatpush.msra.mxu0 0.0
        %2537 = vmatpush.msra.mxu0 0.0
        %2538 = vmatpush.msra.mxu0 0.0
        %2539 = vmatpush.msra.mxu0 0.0
        %2540 = vmatpush.msra.mxu0 0.0
        %2541 = vmatpush.msra.mxu0 0.0
        %2542 = vmatpush.msra.mxu0 0.0
        %2543 = vmatpush.msra.mxu0 0.0
        %2544 = vmatpush.msra.mxu0 0.0
        %2545 = vmatpush.msra.mxu0 0.0
        %v2546 = vand.u32 %v2527, 4294901760
        %2547 = vmatpush.msra.mxu0 %v2546
        %v2548 = vand.u32 %v2525, 4294901760
        %v2549 = vsub.f32 %v2525, %v2548
        %v2550 = vand.u32 %v2549, 4294901760
        %v2551 = vsub.f32 %v2549, %v2550
        %v2552 = vand.u32 %v2551, 4294901760
        %2553 = vmatmul.f32.gmra.mxu0 %v2552
        %v2554 = vpop.f32.mrf.mxu0
        %v2555 = vadd.f32 %v2361, %v2554
        %2556 = vdwg.mxu0
        %2557 = vmatpush.msra.mxu0 0.0
        %2558 = vmatpush.msra.mxu0 0.0
        %2559 = vmatpush.msra.mxu0 0.0
        %2560 = vmatpush.msra.mxu0 0.0
        %2561 = vmatpush.msra.mxu0 0.0
        %2562 = vmatpush.msra.mxu0 0.0
        %2563 = vmatpush.msra.mxu0 0.0
        %2564 = vmatpush.msra.mxu0 0.0
        %2565 = vmatpush.msra.mxu0 0.0
        %2566 = vmatpush.msra.mxu0 0.0
        %2567 = vmatpush.msra.mxu0 0.0
        %2568 = vmatpush.msra.mxu0 0.0
        %2569 = vmatpush.msra.mxu0 0.0
        %2570 = vmatpush.msra.mxu0 0.0
        %2571 = vmatpush.msra.mxu0 0.0
        %v2572 = vand.u32 %v2527, 4294901760
        %v2573 = vsub.f32 %v2527, %v2572
        %v2574 = vand.u32 %v2573, 4294901760
        %v2575 = vsub.f32 %v2573, %v2574
        %v2576 = vand.u32 %v2575, 4294901760
        %2577 = vmatpush.msra.mxu0 %v2576
        %v2578 = vand.u32 %v2525, 4294901760
        %2579 = vmatmul.f32.gmra.mxu0 %v2578
        %v2580 = vpop.f32.mrf.mxu0
        %v2581 = vadd.f32 %v2555, %v2580
        %2582 = vdwg.mxu0
        %2583 = vmatpush.msra.mxu0 0.0
        %2584 = vmatpush.msra.mxu0 0.0
        %2585 = vmatpush.msra.mxu0 0.0
        %2586 = vmatpush.msra.mxu0 0.0
        %2587 = vmatpush.msra.mxu0 0.0
        %2588 = vmatpush.msra.mxu0 0.0
        %2589 = vmatpush.msra.mxu0 0.0
        %2590 = vmatpush.msra.mxu0 0.0
        %2591 = vmatpush.msra.mxu0 0.0
        %2592 = vmatpush.msra.mxu0 0.0
        %2593 = vmatpush.msra.mxu0 0.0
        %2594 = vmatpush.msra.mxu0 0.0
        %2595 = vmatpush.msra.mxu0 0.0
        %2596 = vmatpush.msra.mxu0 0.0
        %2597 = vmatpush.msra.mxu0 0.0
        %v2598 = vand.u32 %v2527, 4294901760
        %v2599 = vsub.f32 %v2527, %v2598
        %2600 = vmatpush.msra.mxu0 %v2599
        %v2601 = vand.u32 %v2525, 4294901760
        %v2602 = vsub.f32 %v2525, %v2601
        %2603 = vmatmul.f32.gmra.mxu0 %v2602
        %v2604 = vpop.f32.mrf.mxu0
        %v2605 = vadd.f32 %v2581, %v2604
        %2606 = vdwg.mxu0
        %2607 = vmatpush.msra.mxu0 0.0
        %2608 = vmatpush.msra.mxu0 0.0
        %2609 = vmatpush.msra.mxu0 0.0
        %2610 = vmatpush.msra.mxu0 0.0
        %2611 = vmatpush.msra.mxu0 0.0
        %2612 = vmatpush.msra.mxu0 0.0
        %2613 = vmatpush.msra.mxu0 0.0
        %2614 = vmatpush.msra.mxu0 0.0
        %2615 = vmatpush.msra.mxu0 0.0
        %2616 = vmatpush.msra.mxu0 0.0
        %2617 = vmatpush.msra.mxu0 0.0
        %2618 = vmatpush.msra.mxu0 0.0
        %2619 = vmatpush.msra.mxu0 0.0
        %2620 = vmatpush.msra.mxu0 0.0
        %2621 = vmatpush.msra.mxu0 0.0
        %v2622 = vand.u32 %v2527, 4294901760
        %2623 = vmatpush.msra.mxu0 %v2622
        %v2624 = vand.u32 %v2525, 4294901760
        %v2625 = vsub.f32 %v2525, %v2624
        %v2626 = vand.u32 %v2625, 4294901760
        %2627 = vmatmul.f32.gmra.mxu0 %v2626
        %v2628 = vpop.f32.mrf.mxu0
        %v2629 = vadd.f32 %v2605, %v2628
        %2630 = vdwg.mxu0
        %2631 = vmatpush.msra.mxu0 0.0
        %2632 = vmatpush.msra.mxu0 0.0
        %2633 = vmatpush.msra.mxu0 0.0
        %2634 = vmatpush.msra.mxu0 0.0
        %2635 = vmatpush.msra.mxu0 0.0
        %2636 = vmatpush.msra.mxu0 0.0
        %2637 = vmatpush.msra.mxu0 0.0
        %2638 = vmatpush.msra.mxu0 0.0
        %2639 = vmatpush.msra.mxu0 0.0
        %2640 = vmatpush.msra.mxu0 0.0
        %2641 = vmatpush.msra.mxu0 0.0
        %2642 = vmatpush.msra.mxu0 0.0
        %2643 = vmatpush.msra.mxu0 0.0
        %2644 = vmatpush.msra.mxu0 0.0
        %2645 = vmatpush.msra.mxu0 0.0
        %v2646 = vand.u32 %v2527, 4294901760
        %v2647 = vsub.f32 %v2527, %v2646
        %v2648 = vand.u32 %v2647, 4294901760
        %2649 = vmatpush.msra.mxu0 %v2648
        %v2650 = vand.u32 %v2525, 4294901760
        %2651 = vmatmul.f32.gmra.mxu0 %v2650
        %v2652 = vpop.f32.mrf.mxu0
        %v2653 = vadd.f32 %v2629, %v2652
        %2654 = vdwg.mxu0
        %2655 = vmatpush.msra.mxu0 0.0
        %2656 = vmatpush.msra.mxu0 0.0
        %2657 = vmatpush.msra.mxu0 0.0
        %2658 = vmatpush.msra.mxu0 0.0
        %2659 = vmatpush.msra.mxu0 0.0
        %2660 = vmatpush.msra.mxu0 0.0
        %2661 = vmatpush.msra.mxu0 0.0
        %2662 = vmatpush.msra.mxu0 0.0
        %2663 = vmatpush.msra.mxu0 0.0
        %2664 = vmatpush.msra.mxu0 0.0
        %2665 = vmatpush.msra.mxu0 0.0
        %2666 = vmatpush.msra.mxu0 0.0
        %2667 = vmatpush.msra.mxu0 0.0
        %2668 = vmatpush.msra.mxu0 0.0
        %2669 = vmatpush.msra.mxu0 0.0
        %v2670 = vand.u32 %v2527, 4294901760
        %2671 = vmatpush.msra.mxu0 %v2670
        %v2672 = vand.u32 %v2525, 4294901760
        %2673 = vmatmul.f32.gmra.mxu0 %v2672
        %v2674 = vpop.f32.mrf.mxu0
        %v2675 = vadd.f32 %v2653, %v2674
        %2676 = vdwg.mxu0
        %2677 = vmatpush.msra.mxu0 0.0
        %2678 = vmatpush.msra.mxu0 0.0
        %2679 = vmatpush.msra.mxu0 0.0
        %2680 = vmatpush.msra.mxu0 0.0
        %2681 = vmatpush.msra.mxu0 0.0
        %2682 = vmatpush.msra.mxu0 0.0
        %2683 = vmatpush.msra.mxu0 0.0
        %2684 = vmatpush.msra.mxu0 0.0
        %2685 = vmatpush.msra.mxu0 0.0
        %2686 = vmatpush.msra.mxu0 0.0
        %2687 = vmatpush.msra.mxu0 0.0
        %2688 = vmatpush.msra.mxu0 0.0
        %2689 = vmatpush.msra.mxu0 0.0
        %2690 = vmatpush.msra.mxu0 0.0
        %2691 = vmatpush.msra.mxu0 0.0
        %v2692 = vand.u32 %v2529, 4294901760
        %2693 = vmatpush.msra.mxu0 %v2692
        %v2694 = vand.u32 %v2525, 4294901760
        %v2695 = vsub.f32 %v2525, %v2694
        %v2696 = vand.u32 %v2695, 4294901760
        %v2697 = vsub.f32 %v2695, %v2696
        %v2698 = vand.u32 %v2697, 4294901760
        %2699 = vmatmul.f32.gmra.mxu0 %v2698
        %v2700 = vpop.f32.mrf.mxu0
        %v2701 = vadd.f32 %v2507, %v2700
        %2702 = vdwg.mxu0
        %2703 = vmatpush.msra.mxu0 0.0
        %2704 = vmatpush.msra.mxu0 0.0
        %2705 = vmatpush.msra.mxu0 0.0
        %2706 = vmatpush.msra.mxu0 0.0
        %2707 = vmatpush.msra.mxu0 0.0
        %2708 = vmatpush.msra.mxu0 0.0
        %2709 = vmatpush.msra.mxu0 0.0
        %2710 = vmatpush.msra.mxu0 0.0
        %2711 = vmatpush.msra.mxu0 0.0
        %2712 = vmatpush.msra.mxu0 0.0
        %2713 = vmatpush.msra.mxu0 0.0
        %2714 = vmatpush.msra.mxu0 0.0
        %2715 = vmatpush.msra.mxu0 0.0
        %2716 = vmatpush.msra.mxu0 0.0
        %2717 = vmatpush.msra.mxu0 0.0
        %v2718 = vand.u32 %v2529, 4294901760
        %v2719 = vsub.f32 %v2529, %v2718
        %v2720 = vand.u32 %v2719, 4294901760
        %v2721 = vsub.f32 %v2719, %v2720
        %v2722 = vand.u32 %v2721, 4294901760
        %2723 = vmatpush.msra.mxu0 %v2722
        %v2724 = vand.u32 %v2525, 4294901760
        %2725 = vmatmul.f32.gmra.mxu0 %v2724
        %v2726 = vpop.f32.mrf.mxu0
        %v2727 = vadd.f32 %v2701, %v2726
        %2728 = vdwg.mxu0
        %2729 = vmatpush.msra.mxu0 0.0
        %2730 = vmatpush.msra.mxu0 0.0
        %2731 = vmatpush.msra.mxu0 0.0
        %2732 = vmatpush.msra.mxu0 0.0
        %2733 = vmatpush.msra.mxu0 0.0
        %2734 = vmatpush.msra.mxu0 0.0
        %2735 = vmatpush.msra.mxu0 0.0
        %2736 = vmatpush.msra.mxu0 0.0
        %2737 = vmatpush.msra.mxu0 0.0
        %2738 = vmatpush.msra.mxu0 0.0
        %2739 = vmatpush.msra.mxu0 0.0
        %2740 = vmatpush.msra.mxu0 0.0
        %2741 = vmatpush.msra.mxu0 0.0
        %2742 = vmatpush.msra.mxu0 0.0
        %2743 = vmatpush.msra.mxu0 0.0
        %v2744 = vand.u32 %v2529, 4294901760
        %v2745 = vsub.f32 %v2529, %v2744
        %2746 = vmatpush.msra.mxu0 %v2745
        %v2747 = vand.u32 %v2525, 4294901760
        %v2748 = vsub.f32 %v2525, %v2747
        %2749 = vmatmul.f32.gmra.mxu0 %v2748
        %v2750 = vpop.f32.mrf.mxu0
        %v2751 = vadd.f32 %v2727, %v2750
        %2752 = vdwg.mxu0
        %2753 = vmatpush.msra.mxu0 0.0
        %2754 = vmatpush.msra.mxu0 0.0
        %2755 = vmatpush.msra.mxu0 0.0
        %2756 = vmatpush.msra.mxu0 0.0
        %2757 = vmatpush.msra.mxu0 0.0
        %2758 = vmatpush.msra.mxu0 0.0
        %2759 = vmatpush.msra.mxu0 0.0
        %2760 = vmatpush.msra.mxu0 0.0
        %2761 = vmatpush.msra.mxu0 0.0
        %2762 = vmatpush.msra.mxu0 0.0
        %2763 = vmatpush.msra.mxu0 0.0
        %2764 = vmatpush.msra.mxu0 0.0
        %2765 = vmatpush.msra.mxu0 0.0
        %2766 = vmatpush.msra.mxu0 0.0
        %2767 = vmatpush.msra.mxu0 0.0
        %v2768 = vand.u32 %v2529, 4294901760
        %2769 = vmatpush.msra.mxu0 %v2768
        %v2770 = vand.u32 %v2525, 4294901760
        %v2771 = vsub.f32 %v2525, %v2770
        %v2772 = vand.u32 %v2771, 4294901760
        %2773 = vmatmul.f32.gmra.mxu0 %v2772
        %v2774 = vpop.f32.mrf.mxu0
        %v2775 = vadd.f32 %v2751, %v2774
        %2776 = vdwg.mxu0
        %2777 = vmatpush.msra.mxu0 0.0
        %2778 = vmatpush.msra.mxu0 0.0
        %2779 = vmatpush.msra.mxu0 0.0
        %2780 = vmatpush.msra.mxu0 0.0
        %2781 = vmatpush.msra.mxu0 0.0
        %2782 = vmatpush.msra.mxu0 0.0
        %2783 = vmatpush.msra.mxu0 0.0
        %2784 = vmatpush.msra.mxu0 0.0
        %2785 = vmatpush.msra.mxu0 0.0
        %2786 = vmatpush.msra.mxu0 0.0
        %2787 = vmatpush.msra.mxu0 0.0
        %2788 = vmatpush.msra.mxu0 0.0
        %2789 = vmatpush.msra.mxu0 0.0
        %2790 = vmatpush.msra.mxu0 0.0
        %2791 = vmatpush.msra.mxu0 0.0
        %v2792 = vand.u32 %v2529, 4294901760
        %v2793 = vsub.f32 %v2529, %v2792
        %v2794 = vand.u32 %v2793, 4294901760
        %2795 = vmatpush.msra.mxu0 %v2794
        %v2796 = vand.u32 %v2525, 4294901760
        %2797 = vmatmul.f32.gmra.mxu0 %v2796
        %v2798 = vpop.f32.mrf.mxu0
        %v2799 = vadd.f32 %v2775, %v2798
        %2800 = vdwg.mxu0
        %2801 = vmatpush.msra.mxu0 0.0
        %2802 = vmatpush.msra.mxu0 0.0
        %2803 = vmatpush.msra.mxu0 0.0
        %2804 = vmatpush.msra.mxu0 0.0
        %2805 = vmatpush.msra.mxu0 0.0
        %2806 = vmatpush.msra.mxu0 0.0
        %2807 = vmatpush.msra.mxu0 0.0
        %2808 = vmatpush.msra.mxu0 0.0
        %2809 = vmatpush.msra.mxu0 0.0
        %2810 = vmatpush.msra.mxu0 0.0
        %2811 = vmatpush.msra.mxu0 0.0
        %2812 = vmatpush.msra.mxu0 0.0
        %2813 = vmatpush.msra.mxu0 0.0
        %2814 = vmatpush.msra.mxu0 0.0
        %2815 = vmatpush.msra.mxu0 0.0
        %v2816 = vand.u32 %v2529, 4294901760
        %2817 = vmatpush.msra.mxu0 %v2816
        %v2818 = vand.u32 %v2525, 4294901760
        %2819 = vmatmul.f32.gmra.mxu0 %v2818
        %v2820 = vpop.f32.mrf.mxu0
        %v2821 = vadd.f32 %v2799, %v2820
        %2822 = vdwg.mxu0
        %v2823 = vld [vmem:[#allocation2] sm:$0xff]
        %v2824 = vld [vmem:[#allocation2 + $0x8] sm:$0xf]
        %s2825 = scalar_lea.vmem %s1, 32
        %v2826 = vld [vmem:[%s2825] sm:$0xf]
        %2829 = vst [vmem:[#allocation1] ss:$2 sm:$0xff] %v2823
        %s2830 = scalar_lea.vmem [#allocation1], 16
        %2831 = vst [vmem:[%s2830] ss:$2 sm:$0xff] %v2824
        %v2832 = vld.sshfl [vmem:[#allocation1] sm:$0xff pattern:$0x75316420]
        %v2833 = vld.sshfl [vmem:[#allocation1 + $0x8] sm:$0xff pattern:$0x75316420]
        %v2834 = vld.sshfl [vmem:[#allocation1 + $0x10] sm:$0xff pattern:$0x75316420]
        %2835 = vrot.lane.b32.xlu0 %v2832, 94
        %v2836 = vpop.permute.xlu0 %2835
        %2837 = vrot.lane.b32.xlu0 %v2833, 94
        %v2838 = vpop.permute.xlu0 %2837
        %2839 = vrot.lane.b32.xlu0 %v2834, 94
        %v2840 = vpop.permute.xlu0 %2839
        %vm2841 = vcmask 769024
        %v2842 = vsel %vm2841, %v2836, %v2838
        %v2843 = vsel %vm2841, %v2838, %v2840
        %v2845 = vsel %vm294, %v2826, 0
        %v2847 = vsel %vm298, %v2842, 0
        %v2849 = vsel %vm298, %v2843, 0
        %2851 = vmatpush.msra.mxu0 0.0
        %2852 = vmatpush.msra.mxu0 0.0
        %2853 = vmatpush.msra.mxu0 0.0
        %2854 = vmatpush.msra.mxu0 0.0
        %2855 = vmatpush.msra.mxu0 0.0
        %2856 = vmatpush.msra.mxu0 0.0
        %2857 = vmatpush.msra.mxu0 0.0
        %2858 = vmatpush.msra.mxu0 0.0
        %2859 = vmatpush.msra.mxu0 0.0
        %2860 = vmatpush.msra.mxu0 0.0
        %2861 = vmatpush.msra.mxu0 0.0
        %2862 = vmatpush.msra.mxu0 0.0
        %2863 = vmatpush.msra.mxu0 0.0
        %2864 = vmatpush.msra.mxu0 0.0
        %2865 = vmatpush.msra.mxu0 0.0
        %v2866 = vand.u32 %v2847, 4294901760
        %2867 = vmatpush.msra.mxu0 %v2866
        %v2868 = vand.u32 %v2845, 4294901760
        %v2869 = vsub.f32 %v2845, %v2868
        %v2870 = vand.u32 %v2869, 4294901760
        %v2871 = vsub.f32 %v2869, %v2870
        %v2872 = vand.u32 %v2871, 4294901760
        %2873 = vmatmul.f32.gmra.mxu0 %v2872
        %v2874 = vpop.f32.mrf.mxu0
        %v2875 = vadd.f32 0.0, %v2874
        %2876 = vdwg.mxu0
        %2877 = vmatpush.msra.mxu0 0.0
        %2878 = vmatpush.msra.mxu0 0.0
        %2879 = vmatpush.msra.mxu0 0.0
        %2880 = vmatpush.msra.mxu0 0.0
        %2881 = vmatpush.msra.mxu0 0.0
        %2882 = vmatpush.msra.mxu0 0.0
        %2883 = vmatpush.msra.mxu0 0.0
        %2884 = vmatpush.msra.mxu0 0.0
        %2885 = vmatpush.msra.mxu0 0.0
        %2886 = vmatpush.msra.mxu0 0.0
        %2887 = vmatpush.msra.mxu0 0.0
        %2888 = vmatpush.msra.mxu0 0.0
        %2889 = vmatpush.msra.mxu0 0.0
        %2890 = vmatpush.msra.mxu0 0.0
        %2891 = vmatpush.msra.mxu0 0.0
        %v2892 = vand.u32 %v2847, 4294901760
        %v2893 = vsub.f32 %v2847, %v2892
        %v2894 = vand.u32 %v2893, 4294901760
        %v2895 = vsub.f32 %v2893, %v2894
        %v2896 = vand.u32 %v2895, 4294901760
        %2897 = vmatpush.msra.mxu0 %v2896
        %v2898 = vand.u32 %v2845, 4294901760
        %2899 = vmatmul.f32.gmra.mxu0 %v2898
        %v2900 = vpop.f32.mrf.mxu0
        %v2901 = vadd.f32 %v2875, %v2900
        %2902 = vdwg.mxu0
        %2903 = vmatpush.msra.mxu0 0.0
        %2904 = vmatpush.msra.mxu0 0.0
        %2905 = vmatpush.msra.mxu0 0.0
        %2906 = vmatpush.msra.mxu0 0.0
        %2907 = vmatpush.msra.mxu0 0.0
        %2908 = vmatpush.msra.mxu0 0.0
        %2909 = vmatpush.msra.mxu0 0.0
        %2910 = vmatpush.msra.mxu0 0.0
        %2911 = vmatpush.msra.mxu0 0.0
        %2912 = vmatpush.msra.mxu0 0.0
        %2913 = vmatpush.msra.mxu0 0.0
        %2914 = vmatpush.msra.mxu0 0.0
        %2915 = vmatpush.msra.mxu0 0.0
        %2916 = vmatpush.msra.mxu0 0.0
        %2917 = vmatpush.msra.mxu0 0.0
        %v2918 = vand.u32 %v2847, 4294901760
        %v2919 = vsub.f32 %v2847, %v2918
        %2920 = vmatpush.msra.mxu0 %v2919
        %v2921 = vand.u32 %v2845, 4294901760
        %v2922 = vsub.f32 %v2845, %v2921
        %2923 = vmatmul.f32.gmra.mxu0 %v2922
        %v2924 = vpop.f32.mrf.mxu0
        %v2925 = vadd.f32 %v2901, %v2924
        %2926 = vdwg.mxu0
        %2927 = vmatpush.msra.mxu0 0.0
        %2928 = vmatpush.msra.mxu0 0.0
        %2929 = vmatpush.msra.mxu0 0.0
        %2930 = vmatpush.msra.mxu0 0.0
        %2931 = vmatpush.msra.mxu0 0.0
        %2932 = vmatpush.msra.mxu0 0.0
        %2933 = vmatpush.msra.mxu0 0.0
        %2934 = vmatpush.msra.mxu0 0.0
        %2935 = vmatpush.msra.mxu0 0.0
        %2936 = vmatpush.msra.mxu0 0.0
        %2937 = vmatpush.msra.mxu0 0.0
        %2938 = vmatpush.msra.mxu0 0.0
        %2939 = vmatpush.msra.mxu0 0.0
        %2940 = vmatpush.msra.mxu0 0.0
        %2941 = vmatpush.msra.mxu0 0.0
        %v2942 = vand.u32 %v2847, 4294901760
        %2943 = vmatpush.msra.mxu0 %v2942
        %v2944 = vand.u32 %v2845, 4294901760
        %v2945 = vsub.f32 %v2845, %v2944
        %v2946 = vand.u32 %v2945, 4294901760
        %2947 = vmatmul.f32.gmra.mxu0 %v2946
        %v2948 = vpop.f32.mrf.mxu0
        %v2949 = vadd.f32 %v2925, %v2948
        %2950 = vdwg.mxu0
        %2951 = vmatpush.msra.mxu0 0.0
        %2952 = vmatpush.msra.mxu0 0.0
        %2953 = vmatpush.msra.mxu0 0.0
        %2954 = vmatpush.msra.mxu0 0.0
        %2955 = vmatpush.msra.mxu0 0.0
        %2956 = vmatpush.msra.mxu0 0.0
        %2957 = vmatpush.msra.mxu0 0.0
        %2958 = vmatpush.msra.mxu0 0.0
        %2959 = vmatpush.msra.mxu0 0.0
        %2960 = vmatpush.msra.mxu0 0.0
        %2961 = vmatpush.msra.mxu0 0.0
        %2962 = vmatpush.msra.mxu0 0.0
        %2963 = vmatpush.msra.mxu0 0.0
        %2964 = vmatpush.msra.mxu0 0.0
        %2965 = vmatpush.msra.mxu0 0.0
        %v2966 = vand.u32 %v2847, 4294901760
        %v2967 = vsub.f32 %v2847, %v2966
        %v2968 = vand.u32 %v2967, 4294901760
        %2969 = vmatpush.msra.mxu0 %v2968
        %v2970 = vand.u32 %v2845, 4294901760
        %2971 = vmatmul.f32.gmra.mxu0 %v2970
        %v2972 = vpop.f32.mrf.mxu0
        %v2973 = vadd.f32 %v2949, %v2972
        %2974 = vdwg.mxu0
        %2975 = vmatpush.msra.mxu0 0.0
        %2976 = vmatpush.msra.mxu0 0.0
        %2977 = vmatpush.msra.mxu0 0.0
        %2978 = vmatpush.msra.mxu0 0.0
        %2979 = vmatpush.msra.mxu0 0.0
        %2980 = vmatpush.msra.mxu0 0.0
        %2981 = vmatpush.msra.mxu0 0.0
        %2982 = vmatpush.msra.mxu0 0.0
        %2983 = vmatpush.msra.mxu0 0.0
        %2984 = vmatpush.msra.mxu0 0.0
        %2985 = vmatpush.msra.mxu0 0.0
        %2986 = vmatpush.msra.mxu0 0.0
        %2987 = vmatpush.msra.mxu0 0.0
        %2988 = vmatpush.msra.mxu0 0.0
        %2989 = vmatpush.msra.mxu0 0.0
        %v2990 = vand.u32 %v2847, 4294901760
        %2991 = vmatpush.msra.mxu0 %v2990
        %v2992 = vand.u32 %v2845, 4294901760
        %2993 = vmatmul.f32.gmra.mxu0 %v2992
        %v2994 = vpop.f32.mrf.mxu0
        %v2995 = vadd.f32 %v2973, %v2994
        %2996 = vdwg.mxu0
        %2997 = vmatpush.msra.mxu0 0.0
        %2998 = vmatpush.msra.mxu0 0.0
        %2999 = vmatpush.msra.mxu0 0.0
        %3000 = vmatpush.msra.mxu0 0.0
        %3001 = vmatpush.msra.mxu0 0.0
        %3002 = vmatpush.msra.mxu0 0.0
        %3003 = vmatpush.msra.mxu0 0.0
        %3004 = vmatpush.msra.mxu0 0.0
        %3005 = vmatpush.msra.mxu0 0.0
        %3006 = vmatpush.msra.mxu0 0.0
        %3007 = vmatpush.msra.mxu0 0.0
        %3008 = vmatpush.msra.mxu0 0.0
        %3009 = vmatpush.msra.mxu0 0.0
        %3010 = vmatpush.msra.mxu0 0.0
        %3011 = vmatpush.msra.mxu0 0.0
        %v3012 = vand.u32 %v2849, 4294901760
        %3013 = vmatpush.msra.mxu0 %v3012
        %v3014 = vand.u32 %v2845, 4294901760
        %v3015 = vsub.f32 %v2845, %v3014
        %v3016 = vand.u32 %v3015, 4294901760
        %v3017 = vsub.f32 %v3015, %v3016
        %v3018 = vand.u32 %v3017, 4294901760
        %3019 = vmatmul.f32.gmra.mxu0 %v3018
        %v3020 = vpop.f32.mrf.mxu0
        %v3021 = vadd.f32 0.0, %v3020
        %3022 = vdwg.mxu0
        %3023 = vmatpush.msra.mxu0 0.0
        %3024 = vmatpush.msra.mxu0 0.0
        %3025 = vmatpush.msra.mxu0 0.0
        %3026 = vmatpush.msra.mxu0 0.0
        %3027 = vmatpush.msra.mxu0 0.0
        %3028 = vmatpush.msra.mxu0 0.0
        %3029 = vmatpush.msra.mxu0 0.0
        %3030 = vmatpush.msra.mxu0 0.0
        %3031 = vmatpush.msra.mxu0 0.0
        %3032 = vmatpush.msra.mxu0 0.0
        %3033 = vmatpush.msra.mxu0 0.0
        %3034 = vmatpush.msra.mxu0 0.0
        %3035 = vmatpush.msra.mxu0 0.0
        %3036 = vmatpush.msra.mxu0 0.0
        %3037 = vmatpush.msra.mxu0 0.0
        %v3038 = vand.u32 %v2849, 4294901760
        %v3039 = vsub.f32 %v2849, %v3038
        %v3040 = vand.u32 %v3039, 4294901760
        %v3041 = vsub.f32 %v3039, %v3040
        %v3042 = vand.u32 %v3041, 4294901760
        %3043 = vmatpush.msra.mxu0 %v3042
        %v3044 = vand.u32 %v2845, 4294901760
        %3045 = vmatmul.f32.gmra.mxu0 %v3044
        %v3046 = vpop.f32.mrf.mxu0
        %v3047 = vadd.f32 %v3021, %v3046
        %3048 = vdwg.mxu0
        %3049 = vmatpush.msra.mxu0 0.0
        %3050 = vmatpush.msra.mxu0 0.0
        %3051 = vmatpush.msra.mxu0 0.0
        %3052 = vmatpush.msra.mxu0 0.0
        %3053 = vmatpush.msra.mxu0 0.0
        %3054 = vmatpush.msra.mxu0 0.0
        %3055 = vmatpush.msra.mxu0 0.0
        %3056 = vmatpush.msra.mxu0 0.0
        %3057 = vmatpush.msra.mxu0 0.0
        %3058 = vmatpush.msra.mxu0 0.0
        %3059 = vmatpush.msra.mxu0 0.0
        %3060 = vmatpush.msra.mxu0 0.0
        %3061 = vmatpush.msra.mxu0 0.0
        %3062 = vmatpush.msra.mxu0 0.0
        %3063 = vmatpush.msra.mxu0 0.0
        %v3064 = vand.u32 %v2849, 4294901760
        %v3065 = vsub.f32 %v2849, %v3064
        %3066 = vmatpush.msra.mxu0 %v3065
        %v3067 = vand.u32 %v2845, 4294901760
        %v3068 = vsub.f32 %v2845, %v3067
        %3069 = vmatmul.f32.gmra.mxu0 %v3068
        %v3070 = vpop.f32.mrf.mxu0
        %v3071 = vadd.f32 %v3047, %v3070
        %3072 = vdwg.mxu0
        %3073 = vmatpush.msra.mxu0 0.0
        %3074 = vmatpush.msra.mxu0 0.0
        %3075 = vmatpush.msra.mxu0 0.0
        %3076 = vmatpush.msra.mxu0 0.0
        %3077 = vmatpush.msra.mxu0 0.0
        %3078 = vmatpush.msra.mxu0 0.0
        %3079 = vmatpush.msra.mxu0 0.0
        %3080 = vmatpush.msra.mxu0 0.0
        %3081 = vmatpush.msra.mxu0 0.0
        %3082 = vmatpush.msra.mxu0 0.0
        %3083 = vmatpush.msra.mxu0 0.0
        %3084 = vmatpush.msra.mxu0 0.0
        %3085 = vmatpush.msra.mxu0 0.0
        %3086 = vmatpush.msra.mxu0 0.0
        %3087 = vmatpush.msra.mxu0 0.0
        %v3088 = vand.u32 %v2849, 4294901760
        %3089 = vmatpush.msra.mxu0 %v3088
        %v3090 = vand.u32 %v2845, 4294901760
        %v3091 = vsub.f32 %v2845, %v3090
        %v3092 = vand.u32 %v3091, 4294901760
        %3093 = vmatmul.f32.gmra.mxu0 %v3092
        %v3094 = vpop.f32.mrf.mxu0
        %v3095 = vadd.f32 %v3071, %v3094
        %3096 = vdwg.mxu0
        %3097 = vmatpush.msra.mxu0 0.0
        %3098 = vmatpush.msra.mxu0 0.0
        %3099 = vmatpush.msra.mxu0 0.0
        %3100 = vmatpush.msra.mxu0 0.0
        %3101 = vmatpush.msra.mxu0 0.0
        %3102 = vmatpush.msra.mxu0 0.0
        %3103 = vmatpush.msra.mxu0 0.0
        %3104 = vmatpush.msra.mxu0 0.0
        %3105 = vmatpush.msra.mxu0 0.0
        %3106 = vmatpush.msra.mxu0 0.0
        %3107 = vmatpush.msra.mxu0 0.0
        %3108 = vmatpush.msra.mxu0 0.0
        %3109 = vmatpush.msra.mxu0 0.0
        %3110 = vmatpush.msra.mxu0 0.0
        %3111 = vmatpush.msra.mxu0 0.0
        %v3112 = vand.u32 %v2849, 4294901760
        %v3113 = vsub.f32 %v2849, %v3112
        %v3114 = vand.u32 %v3113, 4294901760
        %3115 = vmatpush.msra.mxu0 %v3114
        %v3116 = vand.u32 %v2845, 4294901760
        %3117 = vmatmul.f32.gmra.mxu0 %v3116
        %v3118 = vpop.f32.mrf.mxu0
        %v3119 = vadd.f32 %v3095, %v3118
        %3120 = vdwg.mxu0
        %3121 = vmatpush.msra.mxu0 0.0
        %3122 = vmatpush.msra.mxu0 0.0
        %3123 = vmatpush.msra.mxu0 0.0
        %3124 = vmatpush.msra.mxu0 0.0
        %3125 = vmatpush.msra.mxu0 0.0
        %3126 = vmatpush.msra.mxu0 0.0
        %3127 = vmatpush.msra.mxu0 0.0
        %3128 = vmatpush.msra.mxu0 0.0
        %3129 = vmatpush.msra.mxu0 0.0
        %3130 = vmatpush.msra.mxu0 0.0
        %3131 = vmatpush.msra.mxu0 0.0
        %3132 = vmatpush.msra.mxu0 0.0
        %3133 = vmatpush.msra.mxu0 0.0
        %3134 = vmatpush.msra.mxu0 0.0
        %3135 = vmatpush.msra.mxu0 0.0
        %v3136 = vand.u32 %v2849, 4294901760
        %3137 = vmatpush.msra.mxu0 %v3136
        %v3138 = vand.u32 %v2845, 4294901760
        %3139 = vmatmul.f32.gmra.mxu0 %v3138
        %v3140 = vpop.f32.mrf.mxu0
        %v3141 = vadd.f32 %v3119, %v3140
        %3142 = vdwg.mxu0
        %v3143 = vadd.f32 %v2675, %v2995
        %v3144 = vadd.f32 %v2821, %v3141
        %v3145 = vsel %vm252, 1, 0
        %v3146 = vsel %vm253, 1, 0
        %vm3147 = vcmp.eq.s32.totalorder %v3145, 1
        %vm3148 = vcmp.eq.s32.totalorder %v3146, 1
        %v3149 = vsel %vm3147, %v3143, 0.0
        %v3150 = vsel %vm3148, %v3144, 0.0
        %v3151 = vadd.f32 %v2185, %v3149
        %v3152 = vadd.f32 %v2186, %v3150
        %v3153 = vld [vmem:[%s2] sm:$0xf]
        %3155 = vset.pattern.permute.xlu0 0
        %3156 = vperm.xlu0 %3155, %v3153
        %v3157 = vpop.permute.xlu0 %3156
        %v3159 = vadd.f32 %v3151, %v3157
        %v3160 = vadd.f32 %v3152, %v3157
        %v3161 = vmax.f32 %v3159, 0.0
        %v3162 = vmax.f32 %v3160, 0.0
        %v3165 = vrot.slane %v3162, 4
        %v3166 = vsel %vm298, %v3161, %v3165
        %3167 = vrot.lane.b32.xlu0 %v3166, 17
        %v3168 = vpop.permute.xlu0 %3167
        %v3169 = vrot.slane %v3168, 4
        %v3170 = vsel %vm262, %v3169, %v3168
        %3173 = vst.msk [vmem:[#allocation2] sm:$0xff] %vm268, %v3170
        %3174 = vst.msk [vmem:[#allocation2 + $0x8] sm:$0xf] %vm270, %v3169
        %v3175 = vld [vmem:[#allocation2] sm:$0xff]
        %v3176 = vld [vmem:[%s3] sm:$0xf]
        %v3177 = vld [vmem:[#allocation2 + $0x8] sm:$0xf]
        %s3178 = scalar_lea.vmem %s3, 12
        %v3179 = vld [vmem:[%s3178] sm:$0xf]
        %3182 = vst [vmem:[#allocation1] ss:$2 sm:$0xff] %v3175
        %s3183 = scalar_lea.vmem [#allocation1], 16
        %3184 = vst [vmem:[%s3183] ss:$2 sm:$0xff] %v3177
        %v3185 = vld.sshfl [vmem:[#allocation1] sm:$0xff pattern:$0x75316420]
        %v3186 = vld.sshfl [vmem:[#allocation1 + $0x8] sm:$0xff pattern:$0x75316420]
        %v3187 = vld.sshfl [vmem:[#allocation1 + $0x10] sm:$0xff pattern:$0x75316420]
        %3188 = vrot.lane.b32.xlu0 %v3185, 112
        %v3189 = vpop.permute.xlu0 %3188
        %3190 = vrot.lane.b32.xlu0 %v3186, 112
        %v3191 = vpop.permute.xlu0 %3190
        %3192 = vrot.lane.b32.xlu0 %v3187, 112
        %v3193 = vpop.permute.xlu0 %3192
        %v3194 = vsel %vm291, %v3189, %v3191
        %v3195 = vsel %vm291, %v3191, %v3193
        %v3197 = vsel %vm294, %v3179, 0
        %v3199 = vsel %vm298, %v3194, 0
        %v3201 = vsel %vm298, %v3195, 0
        %3203 = vmatpush.msra.mxu0 0.0
        %3204 = vmatpush.msra.mxu0 0.0
        %3205 = vmatpush.msra.mxu0 0.0
        %3206 = vmatpush.msra.mxu0 0.0
        %3207 = vmatpush.msra.mxu0 0.0
        %3208 = vmatpush.msra.mxu0 0.0
        %3209 = vmatpush.msra.mxu0 0.0
        %3210 = vmatpush.msra.mxu0 0.0
        %3211 = vmatpush.msra.mxu0 0.0
        %3212 = vmatpush.msra.mxu0 0.0
        %3213 = vmatpush.msra.mxu0 0.0
        %3214 = vmatpush.msra.mxu0 0.0
        %3215 = vmatpush.msra.mxu0 0.0
        %3216 = vmatpush.msra.mxu0 0.0
        %3217 = vmatpush.msra.mxu0 0.0
        %v3218 = vand.u32 %v3199, 4294901760
        %3219 = vmatpush.msra.mxu0 %v3218
        %v3220 = vand.u32 %v3197, 4294901760
        %v3221 = vsub.f32 %v3197, %v3220
        %v3222 = vand.u32 %v3221, 4294901760
        %v3223 = vsub.f32 %v3221, %v3222
        %v3224 = vand.u32 %v3223, 4294901760
        %3225 = vmatmul.f32.gmra.mxu0 %v3224
        %v3226 = vpop.f32.mrf.mxu0
        %v3227 = vadd.f32 0.0, %v3226
        %3228 = vdwg.mxu0
        %3229 = vmatpush.msra.mxu0 0.0
        %3230 = vmatpush.msra.mxu0 0.0
        %3231 = vmatpush.msra.mxu0 0.0
        %3232 = vmatpush.msra.mxu0 0.0
        %3233 = vmatpush.msra.mxu0 0.0
        %3234 = vmatpush.msra.mxu0 0.0
        %3235 = vmatpush.msra.mxu0 0.0
        %3236 = vmatpush.msra.mxu0 0.0
        %3237 = vmatpush.msra.mxu0 0.0
        %3238 = vmatpush.msra.mxu0 0.0
        %3239 = vmatpush.msra.mxu0 0.0
        %3240 = vmatpush.msra.mxu0 0.0
        %3241 = vmatpush.msra.mxu0 0.0
        %3242 = vmatpush.msra.mxu0 0.0
        %3243 = vmatpush.msra.mxu0 0.0
        %v3244 = vand.u32 %v3199, 4294901760
        %v3245 = vsub.f32 %v3199, %v3244
        %v3246 = vand.u32 %v3245, 4294901760
        %v3247 = vsub.f32 %v3245, %v3246
        %v3248 = vand.u32 %v3247, 4294901760
        %3249 = vmatpush.msra.mxu0 %v3248
        %v3250 = vand.u32 %v3197, 4294901760
        %3251 = vmatmul.f32.gmra.mxu0 %v3250
        %v3252 = vpop.f32.mrf.mxu0
        %v3253 = vadd.f32 %v3227, %v3252
        %3254 = vdwg.mxu0
        %3255 = vmatpush.msra.mxu0 0.0
        %3256 = vmatpush.msra.mxu0 0.0
        %3257 = vmatpush.msra.mxu0 0.0
        %3258 = vmatpush.msra.mxu0 0.0
        %3259 = vmatpush.msra.mxu0 0.0
        %3260 = vmatpush.msra.mxu0 0.0
        %3261 = vmatpush.msra.mxu0 0.0
        %3262 = vmatpush.msra.mxu0 0.0
        %3263 = vmatpush.msra.mxu0 0.0
        %3264 = vmatpush.msra.mxu0 0.0
        %3265 = vmatpush.msra.mxu0 0.0
        %3266 = vmatpush.msra.mxu0 0.0
        %3267 = vmatpush.msra.mxu0 0.0
        %3268 = vmatpush.msra.mxu0 0.0
        %3269 = vmatpush.msra.mxu0 0.0
        %v3270 = vand.u32 %v3199, 4294901760
        %v3271 = vsub.f32 %v3199, %v3270
        %3272 = vmatpush.msra.mxu0 %v3271
        %v3273 = vand.u32 %v3197, 4294901760
        %v3274 = vsub.f32 %v3197, %v3273
        %3275 = vmatmul.f32.gmra.mxu0 %v3274
        %v3276 = vpop.f32.mrf.mxu0
        %v3277 = vadd.f32 %v3253, %v3276
        %3278 = vdwg.mxu0
        %3279 = vmatpush.msra.mxu0 0.0
        %3280 = vmatpush.msra.mxu0 0.0
        %3281 = vmatpush.msra.mxu0 0.0
        %3282 = vmatpush.msra.mxu0 0.0
        %3283 = vmatpush.msra.mxu0 0.0
        %3284 = vmatpush.msra.mxu0 0.0
        %3285 = vmatpush.msra.mxu0 0.0
        %3286 = vmatpush.msra.mxu0 0.0
        %3287 = vmatpush.msra.mxu0 0.0
        %3288 = vmatpush.msra.mxu0 0.0
        %3289 = vmatpush.msra.mxu0 0.0
        %3290 = vmatpush.msra.mxu0 0.0
        %3291 = vmatpush.msra.mxu0 0.0
        %3292 = vmatpush.msra.mxu0 0.0
        %3293 = vmatpush.msra.mxu0 0.0
        %v3294 = vand.u32 %v3199, 4294901760
        %3295 = vmatpush.msra.mxu0 %v3294
        %v3296 = vand.u32 %v3197, 4294901760
        %v3297 = vsub.f32 %v3197, %v3296
        %v3298 = vand.u32 %v3297, 4294901760
        %3299 = vmatmul.f32.gmra.mxu0 %v3298
        %v3300 = vpop.f32.mrf.mxu0
        %v3301 = vadd.f32 %v3277, %v3300
        %3302 = vdwg.mxu0
        %3303 = vmatpush.msra.mxu0 0.0
        %3304 = vmatpush.msra.mxu0 0.0
        %3305 = vmatpush.msra.mxu0 0.0
        %3306 = vmatpush.msra.mxu0 0.0
        %3307 = vmatpush.msra.mxu0 0.0
        %3308 = vmatpush.msra.mxu0 0.0
        %3309 = vmatpush.msra.mxu0 0.0
        %3310 = vmatpush.msra.mxu0 0.0
        %3311 = vmatpush.msra.mxu0 0.0
        %3312 = vmatpush.msra.mxu0 0.0
        %3313 = vmatpush.msra.mxu0 0.0
        %3314 = vmatpush.msra.mxu0 0.0
        %3315 = vmatpush.msra.mxu0 0.0
        %3316 = vmatpush.msra.mxu0 0.0
        %3317 = vmatpush.msra.mxu0 0.0
        %v3318 = vand.u32 %v3199, 4294901760
        %v3319 = vsub.f32 %v3199, %v3318
        %v3320 = vand.u32 %v3319, 4294901760
        %3321 = vmatpush.msra.mxu0 %v3320
        %v3322 = vand.u32 %v3197, 4294901760
        %3323 = vmatmul.f32.gmra.mxu0 %v3322
        %v3324 = vpop.f32.mrf.mxu0
        %v3325 = vadd.f32 %v3301, %v3324
        %3326 = vdwg.mxu0
        %3327 = vmatpush.msra.mxu0 0.0
        %3328 = vmatpush.msra.mxu0 0.0
        %3329 = vmatpush.msra.mxu0 0.0
        %3330 = vmatpush.msra.mxu0 0.0
        %3331 = vmatpush.msra.mxu0 0.0
        %3332 = vmatpush.msra.mxu0 0.0
        %3333 = vmatpush.msra.mxu0 0.0
        %3334 = vmatpush.msra.mxu0 0.0
        %3335 = vmatpush.msra.mxu0 0.0
        %3336 = vmatpush.msra.mxu0 0.0
        %3337 = vmatpush.msra.mxu0 0.0
        %3338 = vmatpush.msra.mxu0 0.0
        %3339 = vmatpush.msra.mxu0 0.0
        %3340 = vmatpush.msra.mxu0 0.0
        %3341 = vmatpush.msra.mxu0 0.0
        %v3342 = vand.u32 %v3199, 4294901760
        %3343 = vmatpush.msra.mxu0 %v3342
        %v3344 = vand.u32 %v3197, 4294901760
        %3345 = vmatmul.f32.gmra.mxu0 %v3344
        %v3346 = vpop.f32.mrf.mxu0
        %v3347 = vadd.f32 %v3325, %v3346
        %3348 = vdwg.mxu0
        %3349 = vmatpush.msra.mxu0 0.0
        %3350 = vmatpush.msra.mxu0 0.0
        %3351 = vmatpush.msra.mxu0 0.0
        %3352 = vmatpush.msra.mxu0 0.0
        %3353 = vmatpush.msra.mxu0 0.0
        %3354 = vmatpush.msra.mxu0 0.0
        %3355 = vmatpush.msra.mxu0 0.0
        %3356 = vmatpush.msra.mxu0 0.0
        %3357 = vmatpush.msra.mxu0 0.0
        %3358 = vmatpush.msra.mxu0 0.0
        %3359 = vmatpush.msra.mxu0 0.0
        %3360 = vmatpush.msra.mxu0 0.0
        %3361 = vmatpush.msra.mxu0 0.0
        %3362 = vmatpush.msra.mxu0 0.0
        %3363 = vmatpush.msra.mxu0 0.0
        %v3364 = vand.u32 %v3201, 4294901760
        %3365 = vmatpush.msra.mxu0 %v3364
        %v3366 = vand.u32 %v3197, 4294901760
        %v3367 = vsub.f32 %v3197, %v3366
        %v3368 = vand.u32 %v3367, 4294901760
        %v3369 = vsub.f32 %v3367, %v3368
        %v3370 = vand.u32 %v3369, 4294901760
        %3371 = vmatmul.f32.gmra.mxu0 %v3370
        %v3372 = vpop.f32.mrf.mxu0
        %v3373 = vadd.f32 0.0, %v3372
        %3374 = vdwg.mxu0
        %3375 = vmatpush.msra.mxu0 0.0
        %3376 = vmatpush.msra.mxu0 0.0
        %3377 = vmatpush.msra.mxu0 0.0
        %3378 = vmatpush.msra.mxu0 0.0
        %3379 = vmatpush.msra.mxu0 0.0
        %3380 = vmatpush.msra.mxu0 0.0
        %3381 = vmatpush.msra.mxu0 0.0
        %3382 = vmatpush.msra.mxu0 0.0
        %3383 = vmatpush.msra.mxu0 0.0
        %3384 = vmatpush.msra.mxu0 0.0
        %3385 = vmatpush.msra.mxu0 0.0
        %3386 = vmatpush.msra.mxu0 0.0
        %3387 = vmatpush.msra.mxu0 0.0
        %3388 = vmatpush.msra.mxu0 0.0
        %3389 = vmatpush.msra.mxu0 0.0
        %v3390 = vand.u32 %v3201, 4294901760
        %v3391 = vsub.f32 %v3201, %v3390
        %v3392 = vand.u32 %v3391, 4294901760
        %v3393 = vsub.f32 %v3391, %v3392
        %v3394 = vand.u32 %v3393, 4294901760
        %3395 = vmatpush.msra.mxu0 %v3394
        %v3396 = vand.u32 %v3197, 4294901760
        %3397 = vmatmul.f32.gmra.mxu0 %v3396
        %v3398 = vpop.f32.mrf.mxu0
        %v3399 = vadd.f32 %v3373, %v3398
        %3400 = vdwg.mxu0
        %3401 = vmatpush.msra.mxu0 0.0
        %3402 = vmatpush.msra.mxu0 0.0
        %3403 = vmatpush.msra.mxu0 0.0
        %3404 = vmatpush.msra.mxu0 0.0
        %3405 = vmatpush.msra.mxu0 0.0
        %3406 = vmatpush.msra.mxu0 0.0
        %3407 = vmatpush.msra.mxu0 0.0
        %3408 = vmatpush.msra.mxu0 0.0
        %3409 = vmatpush.msra.mxu0 0.0
        %3410 = vmatpush.msra.mxu0 0.0
        %3411 = vmatpush.msra.mxu0 0.0
        %3412 = vmatpush.msra.mxu0 0.0
        %3413 = vmatpush.msra.mxu0 0.0
        %3414 = vmatpush.msra.mxu0 0.0
        %3415 = vmatpush.msra.mxu0 0.0
        %v3416 = vand.u32 %v3201, 4294901760
        %v3417 = vsub.f32 %v3201, %v3416
        %3418 = vmatpush.msra.mxu0 %v3417
        %v3419 = vand.u32 %v3197, 4294901760
        %v3420 = vsub.f32 %v3197, %v3419
        %3421 = vmatmul.f32.gmra.mxu0 %v3420
        %v3422 = vpop.f32.mrf.mxu0
        %v3423 = vadd.f32 %v3399, %v3422
        %3424 = vdwg.mxu0
        %3425 = vmatpush.msra.mxu0 0.0
        %3426 = vmatpush.msra.mxu0 0.0
        %3427 = vmatpush.msra.mxu0 0.0
        %3428 = vmatpush.msra.mxu0 0.0
        %3429 = vmatpush.msra.mxu0 0.0
        %3430 = vmatpush.msra.mxu0 0.0
        %3431 = vmatpush.msra.mxu0 0.0
        %3432 = vmatpush.msra.mxu0 0.0
        %3433 = vmatpush.msra.mxu0 0.0
        %3434 = vmatpush.msra.mxu0 0.0
        %3435 = vmatpush.msra.mxu0 0.0
        %3436 = vmatpush.msra.mxu0 0.0
        %3437 = vmatpush.msra.mxu0 0.0
        %3438 = vmatpush.msra.mxu0 0.0
        %3439 = vmatpush.msra.mxu0 0.0
        %v3440 = vand.u32 %v3201, 4294901760
        %3441 = vmatpush.msra.mxu0 %v3440
        %v3442 = vand.u32 %v3197, 4294901760
        %v3443 = vsub.f32 %v3197, %v3442
        %v3444 = vand.u32 %v3443, 4294901760
        %3445 = vmatmul.f32.gmra.mxu0 %v3444
        %v3446 = vpop.f32.mrf.mxu0
        %v3447 = vadd.f32 %v3423, %v3446
        %3448 = vdwg.mxu0
        %3449 = vmatpush.msra.mxu0 0.0
        %3450 = vmatpush.msra.mxu0 0.0
        %3451 = vmatpush.msra.mxu0 0.0
        %3452 = vmatpush.msra.mxu0 0.0
        %3453 = vmatpush.msra.mxu0 0.0
        %3454 = vmatpush.msra.mxu0 0.0
        %3455 = vmatpush.msra.mxu0 0.0
        %3456 = vmatpush.msra.mxu0 0.0
        %3457 = vmatpush.msra.mxu0 0.0
        %3458 = vmatpush.msra.mxu0 0.0
        %3459 = vmatpush.msra.mxu0 0.0
        %3460 = vmatpush.msra.mxu0 0.0
        %3461 = vmatpush.msra.mxu0 0.0
        %3462 = vmatpush.msra.mxu0 0.0
        %3463 = vmatpush.msra.mxu0 0.0
        %v3464 = vand.u32 %v3201, 4294901760
        %v3465 = vsub.f32 %v3201, %v3464
        %v3466 = vand.u32 %v3465, 4294901760
        %3467 = vmatpush.msra.mxu0 %v3466
        %v3468 = vand.u32 %v3197, 4294901760
        %3469 = vmatmul.f32.gmra.mxu0 %v3468
        %v3470 = vpop.f32.mrf.mxu0
        %v3471 = vadd.f32 %v3447, %v3470
        %3472 = vdwg.mxu0
        %3473 = vmatpush.msra.mxu0 0.0
        %3474 = vmatpush.msra.mxu0 0.0
        %3475 = vmatpush.msra.mxu0 0.0
        %3476 = vmatpush.msra.mxu0 0.0
        %3477 = vmatpush.msra.mxu0 0.0
        %3478 = vmatpush.msra.mxu0 0.0
        %3479 = vmatpush.msra.mxu0 0.0
        %3480 = vmatpush.msra.mxu0 0.0
        %3481 = vmatpush.msra.mxu0 0.0
        %3482 = vmatpush.msra.mxu0 0.0
        %3483 = vmatpush.msra.mxu0 0.0
        %3484 = vmatpush.msra.mxu0 0.0
        %3485 = vmatpush.msra.mxu0 0.0
        %3486 = vmatpush.msra.mxu0 0.0
        %3487 = vmatpush.msra.mxu0 0.0
        %v3488 = vand.u32 %v3201, 4294901760
        %3489 = vmatpush.msra.mxu0 %v3488
        %v3490 = vand.u32 %v3197, 4294901760
        %3491 = vmatmul.f32.gmra.mxu0 %v3490
        %v3492 = vpop.f32.mrf.mxu0
        %v3493 = vadd.f32 %v3471, %v3492
        %3494 = vdwg.mxu0
        %3495 = vst [vmem:[#allocation1] ss:$2 sm:$0xff] %v3175
        %v3496 = vld.sshfl [vmem:[#allocation1] sm:$0xff pattern:$0x75316420]
        %v3497 = vld.sshfl [vmem:[#allocation1 + $0x8] sm:$0xff pattern:$0x75316420]
        %v3499 = vsel %vm294, %v3176, 0
        %v3501 = vsel %vm298, %v3496, 0
        %v3503 = vsel %vm298, %v3497, 0
        %3505 = vmatpush.msra.mxu0 0.0
        %3506 = vmatpush.msra.mxu0 0.0
        %3507 = vmatpush.msra.mxu0 0.0
        %3508 = vmatpush.msra.mxu0 0.0
        %3509 = vmatpush.msra.mxu0 0.0
        %3510 = vmatpush.msra.mxu0 0.0
        %3511 = vmatpush.msra.mxu0 0.0
        %3512 = vmatpush.msra.mxu0 0.0
        %3513 = vmatpush.msra.mxu0 0.0
        %3514 = vmatpush.msra.mxu0 0.0
        %3515 = vmatpush.msra.mxu0 0.0
        %3516 = vmatpush.msra.mxu0 0.0
        %3517 = vmatpush.msra.mxu0 0.0
        %3518 = vmatpush.msra.mxu0 0.0
        %3519 = vmatpush.msra.mxu0 0.0
        %v3520 = vand.u32 %v3501, 4294901760
        %3521 = vmatpush.msra.mxu0 %v3520
        %v3522 = vand.u32 %v3499, 4294901760
        %v3523 = vsub.f32 %v3499, %v3522
        %v3524 = vand.u32 %v3523, 4294901760
        %v3525 = vsub.f32 %v3523, %v3524
        %v3526 = vand.u32 %v3525, 4294901760
        %3527 = vmatmul.f32.gmra.mxu0 %v3526
        %v3528 = vpop.f32.mrf.mxu0
        %v3529 = vadd.f32 %v3347, %v3528
        %3530 = vdwg.mxu0
        %3531 = vmatpush.msra.mxu0 0.0
        %3532 = vmatpush.msra.mxu0 0.0
        %3533 = vmatpush.msra.mxu0 0.0
        %3534 = vmatpush.msra.mxu0 0.0
        %3535 = vmatpush.msra.mxu0 0.0
        %3536 = vmatpush.msra.mxu0 0.0
        %3537 = vmatpush.msra.mxu0 0.0
        %3538 = vmatpush.msra.mxu0 0.0
        %3539 = vmatpush.msra.mxu0 0.0
        %3540 = vmatpush.msra.mxu0 0.0
        %3541 = vmatpush.msra.mxu0 0.0
        %3542 = vmatpush.msra.mxu0 0.0
        %3543 = vmatpush.msra.mxu0 0.0
        %3544 = vmatpush.msra.mxu0 0.0
        %3545 = vmatpush.msra.mxu0 0.0
        %v3546 = vand.u32 %v3501, 4294901760
        %v3547 = vsub.f32 %v3501, %v3546
        %v3548 = vand.u32 %v3547, 4294901760
        %v3549 = vsub.f32 %v3547, %v3548
        %v3550 = vand.u32 %v3549, 4294901760
        %3551 = vmatpush.msra.mxu0 %v3550
        %v3552 = vand.u32 %v3499, 4294901760
        %3553 = vmatmul.f32.gmra.mxu0 %v3552
        %v3554 = vpop.f32.mrf.mxu0
        %v3555 = vadd.f32 %v3529, %v3554
        %3556 = vdwg.mxu0
        %3557 = vmatpush.msra.mxu0 0.0
        %3558 = vmatpush.msra.mxu0 0.0
        %3559 = vmatpush.msra.mxu0 0.0
        %3560 = vmatpush.msra.mxu0 0.0
        %3561 = vmatpush.msra.mxu0 0.0
        %3562 = vmatpush.msra.mxu0 0.0
        %3563 = vmatpush.msra.mxu0 0.0
        %3564 = vmatpush.msra.mxu0 0.0
        %3565 = vmatpush.msra.mxu0 0.0
        %3566 = vmatpush.msra.mxu0 0.0
        %3567 = vmatpush.msra.mxu0 0.0
        %3568 = vmatpush.msra.mxu0 0.0
        %3569 = vmatpush.msra.mxu0 0.0
        %3570 = vmatpush.msra.mxu0 0.0
        %3571 = vmatpush.msra.mxu0 0.0
        %v3572 = vand.u32 %v3501, 4294901760
        %v3573 = vsub.f32 %v3501, %v3572
        %3574 = vmatpush.msra.mxu0 %v3573
        %v3575 = vand.u32 %v3499, 4294901760
        %v3576 = vsub.f32 %v3499, %v3575
        %3577 = vmatmul.f32.gmra.mxu0 %v3576
        %v3578 = vpop.f32.mrf.mxu0
        %v3579 = vadd.f32 %v3555, %v3578
        %3580 = vdwg.mxu0
        %3581 = vmatpush.msra.mxu0 0.0
        %3582 = vmatpush.msra.mxu0 0.0
        %3583 = vmatpush.msra.mxu0 0.0
        %3584 = vmatpush.msra.mxu0 0.0
        %3585 = vmatpush.msra.mxu0 0.0
        %3586 = vmatpush.msra.mxu0 0.0
        %3587 = vmatpush.msra.mxu0 0.0
        %3588 = vmatpush.msra.mxu0 0.0
        %3589 = vmatpush.msra.mxu0 0.0
        %3590 = vmatpush.msra.mxu0 0.0
        %3591 = vmatpush.msra.mxu0 0.0
        %3592 = vmatpush.msra.mxu0 0.0
        %3593 = vmatpush.msra.mxu0 0.0
        %3594 = vmatpush.msra.mxu0 0.0
        %3595 = vmatpush.msra.mxu0 0.0
        %v3596 = vand.u32 %v3501, 4294901760
        %3597 = vmatpush.msra.mxu0 %v3596
        %v3598 = vand.u32 %v3499, 4294901760
        %v3599 = vsub.f32 %v3499, %v3598
        %v3600 = vand.u32 %v3599, 4294901760
        %3601 = vmatmul.f32.gmra.mxu0 %v3600
        %v3602 = vpop.f32.mrf.mxu0
        %v3603 = vadd.f32 %v3579, %v3602
        %3604 = vdwg.mxu0
        %3605 = vmatpush.msra.mxu0 0.0
        %3606 = vmatpush.msra.mxu0 0.0
        %3607 = vmatpush.msra.mxu0 0.0
        %3608 = vmatpush.msra.mxu0 0.0
        %3609 = vmatpush.msra.mxu0 0.0
        %3610 = vmatpush.msra.mxu0 0.0
        %3611 = vmatpush.msra.mxu0 0.0
        %3612 = vmatpush.msra.mxu0 0.0
        %3613 = vmatpush.msra.mxu0 0.0
        %3614 = vmatpush.msra.mxu0 0.0
        %3615 = vmatpush.msra.mxu0 0.0
        %3616 = vmatpush.msra.mxu0 0.0
        %3617 = vmatpush.msra.mxu0 0.0
        %3618 = vmatpush.msra.mxu0 0.0
        %3619 = vmatpush.msra.mxu0 0.0
        %v3620 = vand.u32 %v3501, 4294901760
        %v3621 = vsub.f32 %v3501, %v3620
        %v3622 = vand.u32 %v3621, 4294901760
        %3623 = vmatpush.msra.mxu0 %v3622
        %v3624 = vand.u32 %v3499, 4294901760
        %3625 = vmatmul.f32.gmra.mxu0 %v3624
        %v3626 = vpop.f32.mrf.mxu0
        %v3627 = vadd.f32 %v3603, %v3626
        %3628 = vdwg.mxu0
        %3629 = vmatpush.msra.mxu0 0.0
        %3630 = vmatpush.msra.mxu0 0.0
        %3631 = vmatpush.msra.mxu0 0.0
        %3632 = vmatpush.msra.mxu0 0.0
        %3633 = vmatpush.msra.mxu0 0.0
        %3634 = vmatpush.msra.mxu0 0.0
        %3635 = vmatpush.msra.mxu0 0.0
        %3636 = vmatpush.msra.mxu0 0.0
        %3637 = vmatpush.msra.mxu0 0.0
        %3638 = vmatpush.msra.mxu0 0.0
        %3639 = vmatpush.msra.mxu0 0.0
        %3640 = vmatpush.msra.mxu0 0.0
        %3641 = vmatpush.msra.mxu0 0.0
        %3642 = vmatpush.msra.mxu0 0.0
        %3643 = vmatpush.msra.mxu0 0.0
        %v3644 = vand.u32 %v3501, 4294901760
        %3645 = vmatpush.msra.mxu0 %v3644
        %v3646 = vand.u32 %v3499, 4294901760
        %3647 = vmatmul.f32.gmra.mxu0 %v3646
        %v3648 = vpop.f32.mrf.mxu0
        %v3649 = vadd.f32 %v3627, %v3648
        %3650 = vdwg.mxu0
        %3651 = vmatpush.msra.mxu0 0.0
        %3652 = vmatpush.msra.mxu0 0.0
        %3653 = vmatpush.msra.mxu0 0.0
        %3654 = vmatpush.msra.mxu0 0.0
        %3655 = vmatpush.msra.mxu0 0.0
        %3656 = vmatpush.msra.mxu0 0.0
        %3657 = vmatpush.msra.mxu0 0.0
        %3658 = vmatpush.msra.mxu0 0.0
        %3659 = vmatpush.msra.mxu0 0.0
        %3660 = vmatpush.msra.mxu0 0.0
        %3661 = vmatpush.msra.mxu0 0.0
        %3662 = vmatpush.msra.mxu0 0.0
        %3663 = vmatpush.msra.mxu0 0.0
        %3664 = vmatpush.msra.mxu0 0.0
        %3665 = vmatpush.msra.mxu0 0.0
        %v3666 = vand.u32 %v3503, 4294901760
        %3667 = vmatpush.msra.mxu0 %v3666
        %v3668 = vand.u32 %v3499, 4294901760
        %v3669 = vsub.f32 %v3499, %v3668
        %v3670 = vand.u32 %v3669, 4294901760
        %v3671 = vsub.f32 %v3669, %v3670
        %v3672 = vand.u32 %v3671, 4294901760
        %3673 = vmatmul.f32.gmra.mxu0 %v3672
        %v3674 = vpop.f32.mrf.mxu0
        %v3675 = vadd.f32 %v3493, %v3674
        %3676 = vdwg.mxu0
        %3677 = vmatpush.msra.mxu0 0.0
        %3678 = vmatpush.msra.mxu0 0.0
        %3679 = vmatpush.msra.mxu0 0.0
        %3680 = vmatpush.msra.mxu0 0.0
        %3681 = vmatpush.msra.mxu0 0.0
        %3682 = vmatpush.msra.mxu0 0.0
        %3683 = vmatpush.msra.mxu0 0.0
        %3684 = vmatpush.msra.mxu0 0.0
        %3685 = vmatpush.msra.mxu0 0.0
        %3686 = vmatpush.msra.mxu0 0.0
        %3687 = vmatpush.msra.mxu0 0.0
        %3688 = vmatpush.msra.mxu0 0.0
        %3689 = vmatpush.msra.mxu0 0.0
        %3690 = vmatpush.msra.mxu0 0.0
        %3691 = vmatpush.msra.mxu0 0.0
        %v3692 = vand.u32 %v3503, 4294901760
        %v3693 = vsub.f32 %v3503, %v3692
        %v3694 = vand.u32 %v3693, 4294901760
        %v3695 = vsub.f32 %v3693, %v3694
        %v3696 = vand.u32 %v3695, 4294901760
        %3697 = vmatpush.msra.mxu0 %v3696
        %v3698 = vand.u32 %v3499, 4294901760
        %3699 = vmatmul.f32.gmra.mxu0 %v3698
        %v3700 = vpop.f32.mrf.mxu0
        %v3701 = vadd.f32 %v3675, %v3700
        %3702 = vdwg.mxu0
        %3703 = vmatpush.msra.mxu0 0.0
        %3704 = vmatpush.msra.mxu0 0.0
        %3705 = vmatpush.msra.mxu0 0.0
        %3706 = vmatpush.msra.mxu0 0.0
        %3707 = vmatpush.msra.mxu0 0.0
        %3708 = vmatpush.msra.mxu0 0.0
        %3709 = vmatpush.msra.mxu0 0.0
        %3710 = vmatpush.msra.mxu0 0.0
        %3711 = vmatpush.msra.mxu0 0.0
        %3712 = vmatpush.msra.mxu0 0.0
        %3713 = vmatpush.msra.mxu0 0.0
        %3714 = vmatpush.msra.mxu0 0.0
        %3715 = vmatpush.msra.mxu0 0.0
        %3716 = vmatpush.msra.mxu0 0.0
        %3717 = vmatpush.msra.mxu0 0.0
        %v3718 = vand.u32 %v3503, 4294901760
        %v3719 = vsub.f32 %v3503, %v3718
        %3720 = vmatpush.msra.mxu0 %v3719
        %v3721 = vand.u32 %v3499, 4294901760
        %v3722 = vsub.f32 %v3499, %v3721
        %3723 = vmatmul.f32.gmra.mxu0 %v3722
        %v3724 = vpop.f32.mrf.mxu0
        %v3725 = vadd.f32 %v3701, %v3724
        %3726 = vdwg.mxu0
        %3727 = vmatpush.msra.mxu0 0.0
        %3728 = vmatpush.msra.mxu0 0.0
        %3729 = vmatpush.msra.mxu0 0.0
        %3730 = vmatpush.msra.mxu0 0.0
        %3731 = vmatpush.msra.mxu0 0.0
        %3732 = vmatpush.msra.mxu0 0.0
        %3733 = vmatpush.msra.mxu0 0.0
        %3734 = vmatpush.msra.mxu0 0.0
        %3735 = vmatpush.msra.mxu0 0.0
        %3736 = vmatpush.msra.mxu0 0.0
        %3737 = vmatpush.msra.mxu0 0.0
        %3738 = vmatpush.msra.mxu0 0.0
        %3739 = vmatpush.msra.mxu0 0.0
        %3740 = vmatpush.msra.mxu0 0.0
        %3741 = vmatpush.msra.mxu0 0.0
        %v3742 = vand.u32 %v3503, 4294901760
        %3743 = vmatpush.msra.mxu0 %v3742
        %v3744 = vand.u32 %v3499, 4294901760
        %v3745 = vsub.f32 %v3499, %v3744
        %v3746 = vand.u32 %v3745, 4294901760
        %3747 = vmatmul.f32.gmra.mxu0 %v3746
        %v3748 = vpop.f32.mrf.mxu0
        %v3749 = vadd.f32 %v3725, %v3748
        %3750 = vdwg.mxu0
        %3751 = vmatpush.msra.mxu0 0.0
        %3752 = vmatpush.msra.mxu0 0.0
        %3753 = vmatpush.msra.mxu0 0.0
        %3754 = vmatpush.msra.mxu0 0.0
        %3755 = vmatpush.msra.mxu0 0.0
        %3756 = vmatpush.msra.mxu0 0.0
        %3757 = vmatpush.msra.mxu0 0.0
        %3758 = vmatpush.msra.mxu0 0.0
        %3759 = vmatpush.msra.mxu0 0.0
        %3760 = vmatpush.msra.mxu0 0.0
        %3761 = vmatpush.msra.mxu0 0.0
        %3762 = vmatpush.msra.mxu0 0.0
        %3763 = vmatpush.msra.mxu0 0.0
        %3764 = vmatpush.msra.mxu0 0.0
        %3765 = vmatpush.msra.mxu0 0.0
        %v3766 = vand.u32 %v3503, 4294901760
        %v3767 = vsub.f32 %v3503, %v3766
        %v3768 = vand.u32 %v3767, 4294901760
        %3769 = vmatpush.msra.mxu0 %v3768
        %v3770 = vand.u32 %v3499, 4294901760
        %3771 = vmatmul.f32.gmra.mxu0 %v3770
        %v3772 = vpop.f32.mrf.mxu0
        %v3773 = vadd.f32 %v3749, %v3772
        %3774 = vdwg.mxu0
        %3775 = vmatpush.msra.mxu0 0.0
        %3776 = vmatpush.msra.mxu0 0.0
        %3777 = vmatpush.msra.mxu0 0.0
        %3778 = vmatpush.msra.mxu0 0.0
        %3779 = vmatpush.msra.mxu0 0.0
        %3780 = vmatpush.msra.mxu0 0.0
        %3781 = vmatpush.msra.mxu0 0.0
        %3782 = vmatpush.msra.mxu0 0.0
        %3783 = vmatpush.msra.mxu0 0.0
        %3784 = vmatpush.msra.mxu0 0.0
        %3785 = vmatpush.msra.mxu0 0.0
        %3786 = vmatpush.msra.mxu0 0.0
        %3787 = vmatpush.msra.mxu0 0.0
        %3788 = vmatpush.msra.mxu0 0.0
        %3789 = vmatpush.msra.mxu0 0.0
        %v3790 = vand.u32 %v3503, 4294901760
        %3791 = vmatpush.msra.mxu0 %v3790
        %v3792 = vand.u32 %v3499, 4294901760
        %3793 = vmatmul.f32.gmra.mxu0 %v3792
        %v3794 = vpop.f32.mrf.mxu0
        %v3795 = vadd.f32 %v3773, %v3794
        %3796 = vdwg.mxu0
        %v3797 = vld [vmem:[#allocation2] sm:$0xff]
        %v3798 = vld [vmem:[#allocation2 + $0x8] sm:$0xf]
        %s3799 = scalar_lea.vmem %s3, 24
        %v3800 = vld [vmem:[%s3799] sm:$0xf]
        %3803 = vst [vmem:[#allocation1] ss:$2 sm:$0xff] %v3797
        %s3804 = scalar_lea.vmem [#allocation1], 16
        %3805 = vst [vmem:[%s3804] ss:$2 sm:$0xff] %v3798
        %v3806 = vld.sshfl [vmem:[#allocation1] sm:$0xff pattern:$0x75316420]
        %v3807 = vld.sshfl [vmem:[#allocation1 + $0x8] sm:$0xff pattern:$0x75316420]
        %v3808 = vld.sshfl [vmem:[#allocation1 + $0x10] sm:$0xff pattern:$0x75316420]
        %3809 = vrot.lane.b32.xlu0 %v3806, 96
        %v3810 = vpop.permute.xlu0 %3809
        %3811 = vrot.lane.b32.xlu0 %v3807, 96
        %v3812 = vpop.permute.xlu0 %3811
        %3813 = vrot.lane.b32.xlu0 %v3808, 96
        %v3814 = vpop.permute.xlu0 %3813
        %v3815 = vsel %vm915, %v3810, %v3812
        %v3816 = vsel %vm915, %v3812, %v3814
        %v3818 = vsel %vm294, %v3800, 0
        %v3820 = vsel %vm298, %v3815, 0
        %v3822 = vsel %vm298, %v3816, 0
        %3824 = vmatpush.msra.mxu0 0.0
        %3825 = vmatpush.msra.mxu0 0.0
        %3826 = vmatpush.msra.mxu0 0.0
        %3827 = vmatpush.msra.mxu0 0.0
        %3828 = vmatpush.msra.mxu0 0.0
        %3829 = vmatpush.msra.mxu0 0.0
        %3830 = vmatpush.msra.mxu0 0.0
        %3831 = vmatpush.msra.mxu0 0.0
        %3832 = vmatpush.msra.mxu0 0.0
        %3833 = vmatpush.msra.mxu0 0.0
        %3834 = vmatpush.msra.mxu0 0.0
        %3835 = vmatpush.msra.mxu0 0.0
        %3836 = vmatpush.msra.mxu0 0.0
        %3837 = vmatpush.msra.mxu0 0.0
        %3838 = vmatpush.msra.mxu0 0.0
        %v3839 = vand.u32 %v3820, 4294901760
        %3840 = vmatpush.msra.mxu0 %v3839
        %v3841 = vand.u32 %v3818, 4294901760
        %v3842 = vsub.f32 %v3818, %v3841
        %v3843 = vand.u32 %v3842, 4294901760
        %v3844 = vsub.f32 %v3842, %v3843
        %v3845 = vand.u32 %v3844, 4294901760
        %3846 = vmatmul.f32.gmra.mxu0 %v3845
        %v3847 = vpop.f32.mrf.mxu0
        %v3848 = vadd.f32 0.0, %v3847
        %3849 = vdwg.mxu0
        %3850 = vmatpush.msra.mxu0 0.0
        %3851 = vmatpush.msra.mxu0 0.0
        %3852 = vmatpush.msra.mxu0 0.0
        %3853 = vmatpush.msra.mxu0 0.0
        %3854 = vmatpush.msra.mxu0 0.0
        %3855 = vmatpush.msra.mxu0 0.0
        %3856 = vmatpush.msra.mxu0 0.0
        %3857 = vmatpush.msra.mxu0 0.0
        %3858 = vmatpush.msra.mxu0 0.0
        %3859 = vmatpush.msra.mxu0 0.0
        %3860 = vmatpush.msra.mxu0 0.0
        %3861 = vmatpush.msra.mxu0 0.0
        %3862 = vmatpush.msra.mxu0 0.0
        %3863 = vmatpush.msra.mxu0 0.0
        %3864 = vmatpush.msra.mxu0 0.0
        %v3865 = vand.u32 %v3820, 4294901760
        %v3866 = vsub.f32 %v3820, %v3865
        %v3867 = vand.u32 %v3866, 4294901760
        %v3868 = vsub.f32 %v3866, %v3867
        %v3869 = vand.u32 %v3868, 4294901760
        %3870 = vmatpush.msra.mxu0 %v3869
        %v3871 = vand.u32 %v3818, 4294901760
        %3872 = vmatmul.f32.gmra.mxu0 %v3871
        %v3873 = vpop.f32.mrf.mxu0
        %v3874 = vadd.f32 %v3848, %v3873
        %3875 = vdwg.mxu0
        %3876 = vmatpush.msra.mxu0 0.0
        %3877 = vmatpush.msra.mxu0 0.0
        %3878 = vmatpush.msra.mxu0 0.0
        %3879 = vmatpush.msra.mxu0 0.0
        %3880 = vmatpush.msra.mxu0 0.0
        %3881 = vmatpush.msra.mxu0 0.0
        %3882 = vmatpush.msra.mxu0 0.0
        %3883 = vmatpush.msra.mxu0 0.0
        %3884 = vmatpush.msra.mxu0 0.0
        %3885 = vmatpush.msra.mxu0 0.0
        %3886 = vmatpush.msra.mxu0 0.0
        %3887 = vmatpush.msra.mxu0 0.0
        %3888 = vmatpush.msra.mxu0 0.0
        %3889 = vmatpush.msra.mxu0 0.0
        %3890 = vmatpush.msra.mxu0 0.0
        %v3891 = vand.u32 %v3820, 4294901760
        %v3892 = vsub.f32 %v3820, %v3891
        %3893 = vmatpush.msra.mxu0 %v3892
        %v3894 = vand.u32 %v3818, 4294901760
        %v3895 = vsub.f32 %v3818, %v3894
        %3896 = vmatmul.f32.gmra.mxu0 %v3895
        %v3897 = vpop.f32.mrf.mxu0
        %v3898 = vadd.f32 %v3874, %v3897
        %3899 = vdwg.mxu0
        %3900 = vmatpush.msra.mxu0 0.0
        %3901 = vmatpush.msra.mxu0 0.0
        %3902 = vmatpush.msra.mxu0 0.0
        %3903 = vmatpush.msra.mxu0 0.0
        %3904 = vmatpush.msra.mxu0 0.0
        %3905 = vmatpush.msra.mxu0 0.0
        %3906 = vmatpush.msra.mxu0 0.0
        %3907 = vmatpush.msra.mxu0 0.0
        %3908 = vmatpush.msra.mxu0 0.0
        %3909 = vmatpush.msra.mxu0 0.0
        %3910 = vmatpush.msra.mxu0 0.0
        %3911 = vmatpush.msra.mxu0 0.0
        %3912 = vmatpush.msra.mxu0 0.0
        %3913 = vmatpush.msra.mxu0 0.0
        %3914 = vmatpush.msra.mxu0 0.0
        %v3915 = vand.u32 %v3820, 4294901760
        %3916 = vmatpush.msra.mxu0 %v3915
        %v3917 = vand.u32 %v3818, 4294901760
        %v3918 = vsub.f32 %v3818, %v3917
        %v3919 = vand.u32 %v3918, 4294901760
        %3920 = vmatmul.f32.gmra.mxu0 %v3919
        %v3921 = vpop.f32.mrf.mxu0
        %v3922 = vadd.f32 %v3898, %v3921
        %3923 = vdwg.mxu0
        %3924 = vmatpush.msra.mxu0 0.0
        %3925 = vmatpush.msra.mxu0 0.0
        %3926 = vmatpush.msra.mxu0 0.0
        %3927 = vmatpush.msra.mxu0 0.0
        %3928 = vmatpush.msra.mxu0 0.0
        %3929 = vmatpush.msra.mxu0 0.0
        %3930 = vmatpush.msra.mxu0 0.0
        %3931 = vmatpush.msra.mxu0 0.0
        %3932 = vmatpush.msra.mxu0 0.0
        %3933 = vmatpush.msra.mxu0 0.0
        %3934 = vmatpush.msra.mxu0 0.0
        %3935 = vmatpush.msra.mxu0 0.0
        %3936 = vmatpush.msra.mxu0 0.0
        %3937 = vmatpush.msra.mxu0 0.0
        %3938 = vmatpush.msra.mxu0 0.0
        %v3939 = vand.u32 %v3820, 4294901760
        %v3940 = vsub.f32 %v3820, %v3939
        %v3941 = vand.u32 %v3940, 4294901760
        %3942 = vmatpush.msra.mxu0 %v3941
        %v3943 = vand.u32 %v3818, 4294901760
        %3944 = vmatmul.f32.gmra.mxu0 %v3943
        %v3945 = vpop.f32.mrf.mxu0
        %v3946 = vadd.f32 %v3922, %v3945
        %3947 = vdwg.mxu0
        %3948 = vmatpush.msra.mxu0 0.0
        %3949 = vmatpush.msra.mxu0 0.0
        %3950 = vmatpush.msra.mxu0 0.0
        %3951 = vmatpush.msra.mxu0 0.0
        %3952 = vmatpush.msra.mxu0 0.0
        %3953 = vmatpush.msra.mxu0 0.0
        %3954 = vmatpush.msra.mxu0 0.0
        %3955 = vmatpush.msra.mxu0 0.0
        %3956 = vmatpush.msra.mxu0 0.0
        %3957 = vmatpush.msra.mxu0 0.0
        %3958 = vmatpush.msra.mxu0 0.0
        %3959 = vmatpush.msra.mxu0 0.0
        %3960 = vmatpush.msra.mxu0 0.0
        %3961 = vmatpush.msra.mxu0 0.0
        %3962 = vmatpush.msra.mxu0 0.0
        %v3963 = vand.u32 %v3820, 4294901760
        %3964 = vmatpush.msra.mxu0 %v3963
        %v3965 = vand.u32 %v3818, 4294901760
        %3966 = vmatmul.f32.gmra.mxu0 %v3965
        %v3967 = vpop.f32.mrf.mxu0
        %v3968 = vadd.f32 %v3946, %v3967
        %3969 = vdwg.mxu0
        %3970 = vmatpush.msra.mxu0 0.0
        %3971 = vmatpush.msra.mxu0 0.0
        %3972 = vmatpush.msra.mxu0 0.0
        %3973 = vmatpush.msra.mxu0 0.0
        %3974 = vmatpush.msra.mxu0 0.0
        %3975 = vmatpush.msra.mxu0 0.0
        %3976 = vmatpush.msra.mxu0 0.0
        %3977 = vmatpush.msra.mxu0 0.0
        %3978 = vmatpush.msra.mxu0 0.0
        %3979 = vmatpush.msra.mxu0 0.0
        %3980 = vmatpush.msra.mxu0 0.0
        %3981 = vmatpush.msra.mxu0 0.0
        %3982 = vmatpush.msra.mxu0 0.0
        %3983 = vmatpush.msra.mxu0 0.0
        %3984 = vmatpush.msra.mxu0 0.0
        %v3985 = vand.u32 %v3822, 4294901760
        %3986 = vmatpush.msra.mxu0 %v3985
        %v3987 = vand.u32 %v3818, 4294901760
        %v3988 = vsub.f32 %v3818, %v3987
        %v3989 = vand.u32 %v3988, 4294901760
        %v3990 = vsub.f32 %v3988, %v3989
        %v3991 = vand.u32 %v3990, 4294901760
        %3992 = vmatmul.f32.gmra.mxu0 %v3991
        %v3993 = vpop.f32.mrf.mxu0
        %v3994 = vadd.f32 0.0, %v3993
        %3995 = vdwg.mxu0
        %3996 = vmatpush.msra.mxu0 0.0
        %3997 = vmatpush.msra.mxu0 0.0
        %3998 = vmatpush.msra.mxu0 0.0
        %3999 = vmatpush.msra.mxu0 0.0
        %4000 = vmatpush.msra.mxu0 0.0
        %4001 = vmatpush.msra.mxu0 0.0
        %4002 = vmatpush.msra.mxu0 0.0
        %4003 = vmatpush.msra.mxu0 0.0
        %4004 = vmatpush.msra.mxu0 0.0
        %4005 = vmatpush.msra.mxu0 0.0
        %4006 = vmatpush.msra.mxu0 0.0
        %4007 = vmatpush.msra.mxu0 0.0
        %4008 = vmatpush.msra.mxu0 0.0
        %4009 = vmatpush.msra.mxu0 0.0
        %4010 = vmatpush.msra.mxu0 0.0
        %v4011 = vand.u32 %v3822, 4294901760
        %v4012 = vsub.f32 %v3822, %v4011
        %v4013 = vand.u32 %v4012, 4294901760
        %v4014 = vsub.f32 %v4012, %v4013
        %v4015 = vand.u32 %v4014, 4294901760
        %4016 = vmatpush.msra.mxu0 %v4015
        %v4017 = vand.u32 %v3818, 4294901760
        %4018 = vmatmul.f32.gmra.mxu0 %v4017
        %v4019 = vpop.f32.mrf.mxu0
        %v4020 = vadd.f32 %v3994, %v4019
        %4021 = vdwg.mxu0
        %4022 = vmatpush.msra.mxu0 0.0
        %4023 = vmatpush.msra.mxu0 0.0
        %4024 = vmatpush.msra.mxu0 0.0
        %4025 = vmatpush.msra.mxu0 0.0
        %4026 = vmatpush.msra.mxu0 0.0
        %4027 = vmatpush.msra.mxu0 0.0
        %4028 = vmatpush.msra.mxu0 0.0
        %4029 = vmatpush.msra.mxu0 0.0
        %4030 = vmatpush.msra.mxu0 0.0
        %4031 = vmatpush.msra.mxu0 0.0
        %4032 = vmatpush.msra.mxu0 0.0
        %4033 = vmatpush.msra.mxu0 0.0
        %4034 = vmatpush.msra.mxu0 0.0
        %4035 = vmatpush.msra.mxu0 0.0
        %4036 = vmatpush.msra.mxu0 0.0
        %v4037 = vand.u32 %v3822, 4294901760
        %v4038 = vsub.f32 %v3822, %v4037
        %4039 = vmatpush.msra.mxu0 %v4038
        %v4040 = vand.u32 %v3818, 4294901760
        %v4041 = vsub.f32 %v3818, %v4040
        %4042 = vmatmul.f32.gmra.mxu0 %v4041
        %v4043 = vpop.f32.mrf.mxu0
        %v4044 = vadd.f32 %v4020, %v4043
        %4045 = vdwg.mxu0
        %4046 = vmatpush.msra.mxu0 0.0
        %4047 = vmatpush.msra.mxu0 0.0
        %4048 = vmatpush.msra.mxu0 0.0
        %4049 = vmatpush.msra.mxu0 0.0
        %4050 = vmatpush.msra.mxu0 0.0
        %4051 = vmatpush.msra.mxu0 0.0
        %4052 = vmatpush.msra.mxu0 0.0
        %4053 = vmatpush.msra.mxu0 0.0
        %4054 = vmatpush.msra.mxu0 0.0
        %4055 = vmatpush.msra.mxu0 0.0
        %4056 = vmatpush.msra.mxu0 0.0
        %4057 = vmatpush.msra.mxu0 0.0
        %4058 = vmatpush.msra.mxu0 0.0
        %4059 = vmatpush.msra.mxu0 0.0
        %4060 = vmatpush.msra.mxu0 0.0
        %v4061 = vand.u32 %v3822, 4294901760
        %4062 = vmatpush.msra.mxu0 %v4061
        %v4063 = vand.u32 %v3818, 4294901760
        %v4064 = vsub.f32 %v3818, %v4063
        %v4065 = vand.u32 %v4064, 4294901760
        %4066 = vmatmul.f32.gmra.mxu0 %v4065
        %v4067 = vpop.f32.mrf.mxu0
        %v4068 = vadd.f32 %v4044, %v4067
        %4069 = vdwg.mxu0
        %4070 = vmatpush.msra.mxu0 0.0
        %4071 = vmatpush.msra.mxu0 0.0
        %4072 = vmatpush.msra.mxu0 0.0
        %4073 = vmatpush.msra.mxu0 0.0
        %4074 = vmatpush.msra.mxu0 0.0
        %4075 = vmatpush.msra.mxu0 0.0
        %4076 = vmatpush.msra.mxu0 0.0
        %4077 = vmatpush.msra.mxu0 0.0
        %4078 = vmatpush.msra.mxu0 0.0
        %4079 = vmatpush.msra.mxu0 0.0
        %4080 = vmatpush.msra.mxu0 0.0
        %4081 = vmatpush.msra.mxu0 0.0
        %4082 = vmatpush.msra.mxu0 0.0
        %4083 = vmatpush.msra.mxu0 0.0
        %4084 = vmatpush.msra.mxu0 0.0
        %v4085 = vand.u32 %v3822, 4294901760
        %v4086 = vsub.f32 %v3822, %v4085
        %v4087 = vand.u32 %v4086, 4294901760
        %4088 = vmatpush.msra.mxu0 %v4087
        %v4089 = vand.u32 %v3818, 4294901760
        %4090 = vmatmul.f32.gmra.mxu0 %v4089
        %v4091 = vpop.f32.mrf.mxu0
        %v4092 = vadd.f32 %v4068, %v4091
        %4093 = vdwg.mxu0
        %4094 = vmatpush.msra.mxu0 0.0
        %4095 = vmatpush.msra.mxu0 0.0
        %4096 = vmatpush.msra.mxu0 0.0
        %4097 = vmatpush.msra.mxu0 0.0
        %4098 = vmatpush.msra.mxu0 0.0
        %4099 = vmatpush.msra.mxu0 0.0
        %4100 = vmatpush.msra.mxu0 0.0
        %4101 = vmatpush.msra.mxu0 0.0
        %4102 = vmatpush.msra.mxu0 0.0
        %4103 = vmatpush.msra.mxu0 0.0
        %4104 = vmatpush.msra.mxu0 0.0
        %4105 = vmatpush.msra.mxu0 0.0
        %4106 = vmatpush.msra.mxu0 0.0
        %4107 = vmatpush.msra.mxu0 0.0
        %4108 = vmatpush.msra.mxu0 0.0
        %v4109 = vand.u32 %v3822, 4294901760
        %4110 = vmatpush.msra.mxu0 %v4109
        %v4111 = vand.u32 %v3818, 4294901760
        %4112 = vmatmul.f32.gmra.mxu0 %v4111
        %v4113 = vpop.f32.mrf.mxu0
        %v4114 = vadd.f32 %v4092, %v4113
        %4115 = vdwg.mxu0
        %v4116 = vadd.f32 %v3649, %v3968
        %v4117 = vadd.f32 %v3795, %v4114
        %v4118 = vsel %vm1221, %v4116, 0.0
        %v4119 = vsel %vm1222, %v4117, 0.0
        %v4120 = vadd.f32 %v4118, 0.0
        %v4121 = vadd.f32 %v4119, 0.0
        %v4122 = vld [vmem:[#allocation2] sm:$0xff]
        %v4123 = vld [vmem:[#allocation2 + $0x8] sm:$0xf]
        %s4124 = scalar_lea.vmem %s3, 4
        %v4125 = vld [vmem:[%s4124] sm:$0xf]
        %s4126 = scalar_lea.vmem %s3, 16
        %v4127 = vld [vmem:[%s4126] sm:$0xf]
        %4130 = vst [vmem:[#allocation1] ss:$2 sm:$0xff] %v4122
        %s4131 = scalar_lea.vmem [#allocation1], 16
        %4132 = vst [vmem:[%s4131] ss:$2 sm:$0xff] %v4123
        %v4133 = vld.sshfl [vmem:[#allocation1] sm:$0xff pattern:$0x75316420]
        %v4134 = vld.sshfl [vmem:[#allocation1 + $0x8] sm:$0xff pattern:$0x75316420]
        %v4135 = vld.sshfl [vmem:[#allocation1 + $0x10] sm:$0xff pattern:$0x75316420]
        %4136 = vrot.lane.b32.xlu0 %v4133, 111
        %v4137 = vpop.permute.xlu0 %4136
        %4138 = vrot.lane.b32.xlu0 %v4134, 111
        %v4139 = vpop.permute.xlu0 %4138
        %4140 = vrot.lane.b32.xlu0 %v4135, 111
        %v4141 = vpop.permute.xlu0 %4140
        %v4142 = vsel %vm1247, %v4137, %v4139
        %v4143 = vsel %vm1247, %v4139, %v4141
        %v4145 = vsel %vm294, %v4127, 0
        %v4147 = vsel %vm298, %v4142, 0
        %v4149 = vsel %vm298, %v4143, 0
        %4151 = vmatpush.msra.mxu0 0.0
        %4152 = vmatpush.msra.mxu0 0.0
        %4153 = vmatpush.msra.mxu0 0.0
        %4154 = vmatpush.msra.mxu0 0.0
        %4155 = vmatpush.msra.mxu0 0.0
        %4156 = vmatpush.msra.mxu0 0.0
        %4157 = vmatpush.msra.mxu0 0.0
        %4158 = vmatpush.msra.mxu0 0.0
        %4159 = vmatpush.msra.mxu0 0.0
        %4160 = vmatpush.msra.mxu0 0.0
        %4161 = vmatpush.msra.mxu0 0.0
        %4162 = vmatpush.msra.mxu0 0.0
        %4163 = vmatpush.msra.mxu0 0.0
        %4164 = vmatpush.msra.mxu0 0.0
        %4165 = vmatpush.msra.mxu0 0.0
        %v4166 = vand.u32 %v4147, 4294901760
        %4167 = vmatpush.msra.mxu0 %v4166
        %v4168 = vand.u32 %v4145, 4294901760
        %v4169 = vsub.f32 %v4145, %v4168
        %v4170 = vand.u32 %v4169, 4294901760
        %v4171 = vsub.f32 %v4169, %v4170
        %v4172 = vand.u32 %v4171, 4294901760
        %4173 = vmatmul.f32.gmra.mxu0 %v4172
        %v4174 = vpop.f32.mrf.mxu0
        %v4175 = vadd.f32 0.0, %v4174
        %4176 = vdwg.mxu0
        %4177 = vmatpush.msra.mxu0 0.0
        %4178 = vmatpush.msra.mxu0 0.0
        %4179 = vmatpush.msra.mxu0 0.0
        %4180 = vmatpush.msra.mxu0 0.0
        %4181 = vmatpush.msra.mxu0 0.0
        %4182 = vmatpush.msra.mxu0 0.0
        %4183 = vmatpush.msra.mxu0 0.0
        %4184 = vmatpush.msra.mxu0 0.0
        %4185 = vmatpush.msra.mxu0 0.0
        %4186 = vmatpush.msra.mxu0 0.0
        %4187 = vmatpush.msra.mxu0 0.0
        %4188 = vmatpush.msra.mxu0 0.0
        %4189 = vmatpush.msra.mxu0 0.0
        %4190 = vmatpush.msra.mxu0 0.0
        %4191 = vmatpush.msra.mxu0 0.0
        %v4192 = vand.u32 %v4147, 4294901760
        %v4193 = vsub.f32 %v4147, %v4192
        %v4194 = vand.u32 %v4193, 4294901760
        %v4195 = vsub.f32 %v4193, %v4194
        %v4196 = vand.u32 %v4195, 4294901760
        %4197 = vmatpush.msra.mxu0 %v4196
        %v4198 = vand.u32 %v4145, 4294901760
        %4199 = vmatmul.f32.gmra.mxu0 %v4198
        %v4200 = vpop.f32.mrf.mxu0
        %v4201 = vadd.f32 %v4175, %v4200
        %4202 = vdwg.mxu0
        %4203 = vmatpush.msra.mxu0 0.0
        %4204 = vmatpush.msra.mxu0 0.0
        %4205 = vmatpush.msra.mxu0 0.0
        %4206 = vmatpush.msra.mxu0 0.0
        %4207 = vmatpush.msra.mxu0 0.0
        %4208 = vmatpush.msra.mxu0 0.0
        %4209 = vmatpush.msra.mxu0 0.0
        %4210 = vmatpush.msra.mxu0 0.0
        %4211 = vmatpush.msra.mxu0 0.0
        %4212 = vmatpush.msra.mxu0 0.0
        %4213 = vmatpush.msra.mxu0 0.0
        %4214 = vmatpush.msra.mxu0 0.0
        %4215 = vmatpush.msra.mxu0 0.0
        %4216 = vmatpush.msra.mxu0 0.0
        %4217 = vmatpush.msra.mxu0 0.0
        %v4218 = vand.u32 %v4147, 4294901760
        %v4219 = vsub.f32 %v4147, %v4218
        %4220 = vmatpush.msra.mxu0 %v4219
        %v4221 = vand.u32 %v4145, 4294901760
        %v4222 = vsub.f32 %v4145, %v4221
        %4223 = vmatmul.f32.gmra.mxu0 %v4222
        %v4224 = vpop.f32.mrf.mxu0
        %v4225 = vadd.f32 %v4201, %v4224
        %4226 = vdwg.mxu0
        %4227 = vmatpush.msra.mxu0 0.0
        %4228 = vmatpush.msra.mxu0 0.0
        %4229 = vmatpush.msra.mxu0 0.0
        %4230 = vmatpush.msra.mxu0 0.0
        %4231 = vmatpush.msra.mxu0 0.0
        %4232 = vmatpush.msra.mxu0 0.0
        %4233 = vmatpush.msra.mxu0 0.0
        %4234 = vmatpush.msra.mxu0 0.0
        %4235 = vmatpush.msra.mxu0 0.0
        %4236 = vmatpush.msra.mxu0 0.0
        %4237 = vmatpush.msra.mxu0 0.0
        %4238 = vmatpush.msra.mxu0 0.0
        %4239 = vmatpush.msra.mxu0 0.0
        %4240 = vmatpush.msra.mxu0 0.0
        %4241 = vmatpush.msra.mxu0 0.0
        %v4242 = vand.u32 %v4147, 4294901760
        %4243 = vmatpush.msra.mxu0 %v4242
        %v4244 = vand.u32 %v4145, 4294901760
        %v4245 = vsub.f32 %v4145, %v4244
        %v4246 = vand.u32 %v4245, 4294901760
        %4247 = vmatmul.f32.gmra.mxu0 %v4246
        %v4248 = vpop.f32.mrf.mxu0
        %v4249 = vadd.f32 %v4225, %v4248
        %4250 = vdwg.mxu0
        %4251 = vmatpush.msra.mxu0 0.0
        %4252 = vmatpush.msra.mxu0 0.0
        %4253 = vmatpush.msra.mxu0 0.0
        %4254 = vmatpush.msra.mxu0 0.0
        %4255 = vmatpush.msra.mxu0 0.0
        %4256 = vmatpush.msra.mxu0 0.0
        %4257 = vmatpush.msra.mxu0 0.0
        %4258 = vmatpush.msra.mxu0 0.0
        %4259 = vmatpush.msra.mxu0 0.0
        %4260 = vmatpush.msra.mxu0 0.0
        %4261 = vmatpush.msra.mxu0 0.0
        %4262 = vmatpush.msra.mxu0 0.0
        %4263 = vmatpush.msra.mxu0 0.0
        %4264 = vmatpush.msra.mxu0 0.0
        %4265 = vmatpush.msra.mxu0 0.0
        %v4266 = vand.u32 %v4147, 4294901760
        %v4267 = vsub.f32 %v4147, %v4266
        %v4268 = vand.u32 %v4267, 4294901760
        %4269 = vmatpush.msra.mxu0 %v4268
        %v4270 = vand.u32 %v4145, 4294901760
        %4271 = vmatmul.f32.gmra.mxu0 %v4270
        %v4272 = vpop.f32.mrf.mxu0
        %v4273 = vadd.f32 %v4249, %v4272
        %4274 = vdwg.mxu0
        %4275 = vmatpush.msra.mxu0 0.0
        %4276 = vmatpush.msra.mxu0 0.0
        %4277 = vmatpush.msra.mxu0 0.0
        %4278 = vmatpush.msra.mxu0 0.0
        %4279 = vmatpush.msra.mxu0 0.0
        %4280 = vmatpush.msra.mxu0 0.0
        %4281 = vmatpush.msra.mxu0 0.0
        %4282 = vmatpush.msra.mxu0 0.0
        %4283 = vmatpush.msra.mxu0 0.0
        %4284 = vmatpush.msra.mxu0 0.0
        %4285 = vmatpush.msra.mxu0 0.0
        %4286 = vmatpush.msra.mxu0 0.0
        %4287 = vmatpush.msra.mxu0 0.0
        %4288 = vmatpush.msra.mxu0 0.0
        %4289 = vmatpush.msra.mxu0 0.0
        %v4290 = vand.u32 %v4147, 4294901760
        %4291 = vmatpush.msra.mxu0 %v4290
        %v4292 = vand.u32 %v4145, 4294901760
        %4293 = vmatmul.f32.gmra.mxu0 %v4292
        %v4294 = vpop.f32.mrf.mxu0
        %v4295 = vadd.f32 %v4273, %v4294
        %4296 = vdwg.mxu0
        %4297 = vmatpush.msra.mxu0 0.0
        %4298 = vmatpush.msra.mxu0 0.0
        %4299 = vmatpush.msra.mxu0 0.0
        %4300 = vmatpush.msra.mxu0 0.0
        %4301 = vmatpush.msra.mxu0 0.0
        %4302 = vmatpush.msra.mxu0 0.0
        %4303 = vmatpush.msra.mxu0 0.0
        %4304 = vmatpush.msra.mxu0 0.0
        %4305 = vmatpush.msra.mxu0 0.0
        %4306 = vmatpush.msra.mxu0 0.0
        %4307 = vmatpush.msra.mxu0 0.0
        %4308 = vmatpush.msra.mxu0 0.0
        %4309 = vmatpush.msra.mxu0 0.0
        %4310 = vmatpush.msra.mxu0 0.0
        %4311 = vmatpush.msra.mxu0 0.0
        %v4312 = vand.u32 %v4149, 4294901760
        %4313 = vmatpush.msra.mxu0 %v4312
        %v4314 = vand.u32 %v4145, 4294901760
        %v4315 = vsub.f32 %v4145, %v4314
        %v4316 = vand.u32 %v4315, 4294901760
        %v4317 = vsub.f32 %v4315, %v4316
        %v4318 = vand.u32 %v4317, 4294901760
        %4319 = vmatmul.f32.gmra.mxu0 %v4318
        %v4320 = vpop.f32.mrf.mxu0
        %v4321 = vadd.f32 0.0, %v4320
        %4322 = vdwg.mxu0
        %4323 = vmatpush.msra.mxu0 0.0
        %4324 = vmatpush.msra.mxu0 0.0
        %4325 = vmatpush.msra.mxu0 0.0
        %4326 = vmatpush.msra.mxu0 0.0
        %4327 = vmatpush.msra.mxu0 0.0
        %4328 = vmatpush.msra.mxu0 0.0
        %4329 = vmatpush.msra.mxu0 0.0
        %4330 = vmatpush.msra.mxu0 0.0
        %4331 = vmatpush.msra.mxu0 0.0
        %4332 = vmatpush.msra.mxu0 0.0
        %4333 = vmatpush.msra.mxu0 0.0
        %4334 = vmatpush.msra.mxu0 0.0
        %4335 = vmatpush.msra.mxu0 0.0
        %4336 = vmatpush.msra.mxu0 0.0
        %4337 = vmatpush.msra.mxu0 0.0
        %v4338 = vand.u32 %v4149, 4294901760
        %v4339 = vsub.f32 %v4149, %v4338
        %v4340 = vand.u32 %v4339, 4294901760
        %v4341 = vsub.f32 %v4339, %v4340
        %v4342 = vand.u32 %v4341, 4294901760
        %4343 = vmatpush.msra.mxu0 %v4342
        %v4344 = vand.u32 %v4145, 4294901760
        %4345 = vmatmul.f32.gmra.mxu0 %v4344
        %v4346 = vpop.f32.mrf.mxu0
        %v4347 = vadd.f32 %v4321, %v4346
        %4348 = vdwg.mxu0
        %4349 = vmatpush.msra.mxu0 0.0
        %4350 = vmatpush.msra.mxu0 0.0
        %4351 = vmatpush.msra.mxu0 0.0
        %4352 = vmatpush.msra.mxu0 0.0
        %4353 = vmatpush.msra.mxu0 0.0
        %4354 = vmatpush.msra.mxu0 0.0
        %4355 = vmatpush.msra.mxu0 0.0
        %4356 = vmatpush.msra.mxu0 0.0
        %4357 = vmatpush.msra.mxu0 0.0
        %4358 = vmatpush.msra.mxu0 0.0
        %4359 = vmatpush.msra.mxu0 0.0
        %4360 = vmatpush.msra.mxu0 0.0
        %4361 = vmatpush.msra.mxu0 0.0
        %4362 = vmatpush.msra.mxu0 0.0
        %4363 = vmatpush.msra.mxu0 0.0
        %v4364 = vand.u32 %v4149, 4294901760
        %v4365 = vsub.f32 %v4149, %v4364
        %4366 = vmatpush.msra.mxu0 %v4365
        %v4367 = vand.u32 %v4145, 4294901760
        %v4368 = vsub.f32 %v4145, %v4367
        %4369 = vmatmul.f32.gmra.mxu0 %v4368
        %v4370 = vpop.f32.mrf.mxu0
        %v4371 = vadd.f32 %v4347, %v4370
        %4372 = vdwg.mxu0
        %4373 = vmatpush.msra.mxu0 0.0
        %4374 = vmatpush.msra.mxu0 0.0
        %4375 = vmatpush.msra.mxu0 0.0
        %4376 = vmatpush.msra.mxu0 0.0
        %4377 = vmatpush.msra.mxu0 0.0
        %4378 = vmatpush.msra.mxu0 0.0
        %4379 = vmatpush.msra.mxu0 0.0
        %4380 = vmatpush.msra.mxu0 0.0
        %4381 = vmatpush.msra.mxu0 0.0
        %4382 = vmatpush.msra.mxu0 0.0
        %4383 = vmatpush.msra.mxu0 0.0
        %4384 = vmatpush.msra.mxu0 0.0
        %4385 = vmatpush.msra.mxu0 0.0
        %4386 = vmatpush.msra.mxu0 0.0
        %4387 = vmatpush.msra.mxu0 0.0
        %v4388 = vand.u32 %v4149, 4294901760
        %4389 = vmatpush.msra.mxu0 %v4388
        %v4390 = vand.u32 %v4145, 4294901760
        %v4391 = vsub.f32 %v4145, %v4390
        %v4392 = vand.u32 %v4391, 4294901760
        %4393 = vmatmul.f32.gmra.mxu0 %v4392
        %v4394 = vpop.f32.mrf.mxu0
        %v4395 = vadd.f32 %v4371, %v4394
        %4396 = vdwg.mxu0
        %4397 = vmatpush.msra.mxu0 0.0
        %4398 = vmatpush.msra.mxu0 0.0
        %4399 = vmatpush.msra.mxu0 0.0
        %4400 = vmatpush.msra.mxu0 0.0
        %4401 = vmatpush.msra.mxu0 0.0
        %4402 = vmatpush.msra.mxu0 0.0
        %4403 = vmatpush.msra.mxu0 0.0
        %4404 = vmatpush.msra.mxu0 0.0
        %4405 = vmatpush.msra.mxu0 0.0
        %4406 = vmatpush.msra.mxu0 0.0
        %4407 = vmatpush.msra.mxu0 0.0
        %4408 = vmatpush.msra.mxu0 0.0
        %4409 = vmatpush.msra.mxu0 0.0
        %4410 = vmatpush.msra.mxu0 0.0
        %4411 = vmatpush.msra.mxu0 0.0
        %v4412 = vand.u32 %v4149, 4294901760
        %v4413 = vsub.f32 %v4149, %v4412
        %v4414 = vand.u32 %v4413, 4294901760
        %4415 = vmatpush.msra.mxu0 %v4414
        %v4416 = vand.u32 %v4145, 4294901760
        %4417 = vmatmul.f32.gmra.mxu0 %v4416
        %v4418 = vpop.f32.mrf.mxu0
        %v4419 = vadd.f32 %v4395, %v4418
        %4420 = vdwg.mxu0
        %4421 = vmatpush.msra.mxu0 0.0
        %4422 = vmatpush.msra.mxu0 0.0
        %4423 = vmatpush.msra.mxu0 0.0
        %4424 = vmatpush.msra.mxu0 0.0
        %4425 = vmatpush.msra.mxu0 0.0
        %4426 = vmatpush.msra.mxu0 0.0
        %4427 = vmatpush.msra.mxu0 0.0
        %4428 = vmatpush.msra.mxu0 0.0
        %4429 = vmatpush.msra.mxu0 0.0
        %4430 = vmatpush.msra.mxu0 0.0
        %4431 = vmatpush.msra.mxu0 0.0
        %4432 = vmatpush.msra.mxu0 0.0
        %4433 = vmatpush.msra.mxu0 0.0
        %4434 = vmatpush.msra.mxu0 0.0
        %4435 = vmatpush.msra.mxu0 0.0
        %v4436 = vand.u32 %v4149, 4294901760
        %4437 = vmatpush.msra.mxu0 %v4436
        %v4438 = vand.u32 %v4145, 4294901760
        %4439 = vmatmul.f32.gmra.mxu0 %v4438
        %v4440 = vpop.f32.mrf.mxu0
        %v4441 = vadd.f32 %v4419, %v4440
        %4442 = vdwg.mxu0
        %4443 = vst [vmem:[#allocation1] ss:$2 sm:$0xff] %v4122
        %s4444 = scalar_lea.vmem [#allocation1], 16
        %4445 = vst [vmem:[%s4444] ss:$2 sm:$0xff] %v4123
        %v4446 = vld.sshfl [vmem:[#allocation1] sm:$0xff pattern:$0x75316420]
        %v4447 = vld.sshfl [vmem:[#allocation1 + $0x8] sm:$0xff pattern:$0x75316420]
        %v4448 = vld.sshfl [vmem:[#allocation1 + $0x10] sm:$0xff pattern:$0x75316420]
        %4449 = vrot.lane.b32.xlu0 %v4446, 127
        %v4450 = vpop.permute.xlu0 %4449
        %4451 = vrot.lane.b32.xlu0 %v4447, 127
        %v4452 = vpop.permute.xlu0 %4451
        %4453 = vrot.lane.b32.xlu0 %v4448, 127
        %v4454 = vpop.permute.xlu0 %4453
        %v4455 = vsel %vm1561, %v4450, %v4452
        %v4456 = vsel %vm1561, %v4452, %v4454
        %v4458 = vsel %vm294, %v4125, 0
        %v4460 = vsel %vm298, %v4455, 0
        %v4462 = vsel %vm298, %v4456, 0
        %4464 = vmatpush.msra.mxu0 0.0
        %4465 = vmatpush.msra.mxu0 0.0
        %4466 = vmatpush.msra.mxu0 0.0
        %4467 = vmatpush.msra.mxu0 0.0
        %4468 = vmatpush.msra.mxu0 0.0
        %4469 = vmatpush.msra.mxu0 0.0
        %4470 = vmatpush.msra.mxu0 0.0
        %4471 = vmatpush.msra.mxu0 0.0
        %4472 = vmatpush.msra.mxu0 0.0
        %4473 = vmatpush.msra.mxu0 0.0
        %4474 = vmatpush.msra.mxu0 0.0
        %4475 = vmatpush.msra.mxu0 0.0
        %4476 = vmatpush.msra.mxu0 0.0
        %4477 = vmatpush.msra.mxu0 0.0
        %4478 = vmatpush.msra.mxu0 0.0
        %v4479 = vand.u32 %v4460, 4294901760
        %4480 = vmatpush.msra.mxu0 %v4479
        %v4481 = vand.u32 %v4458, 4294901760
        %v4482 = vsub.f32 %v4458, %v4481
        %v4483 = vand.u32 %v4482, 4294901760
        %v4484 = vsub.f32 %v4482, %v4483
        %v4485 = vand.u32 %v4484, 4294901760
        %4486 = vmatmul.f32.gmra.mxu0 %v4485
        %v4487 = vpop.f32.mrf.mxu0
        %v4488 = vadd.f32 %v4295, %v4487
        %4489 = vdwg.mxu0
        %4490 = vmatpush.msra.mxu0 0.0
        %4491 = vmatpush.msra.mxu0 0.0
        %4492 = vmatpush.msra.mxu0 0.0
        %4493 = vmatpush.msra.mxu0 0.0
        %4494 = vmatpush.msra.mxu0 0.0
        %4495 = vmatpush.msra.mxu0 0.0
        %4496 = vmatpush.msra.mxu0 0.0
        %4497 = vmatpush.msra.mxu0 0.0
        %4498 = vmatpush.msra.mxu0 0.0
        %4499 = vmatpush.msra.mxu0 0.0
        %4500 = vmatpush.msra.mxu0 0.0
        %4501 = vmatpush.msra.mxu0 0.0
        %4502 = vmatpush.msra.mxu0 0.0
        %4503 = vmatpush.msra.mxu0 0.0
        %4504 = vmatpush.msra.mxu0 0.0
        %v4505 = vand.u32 %v4460, 4294901760
        %v4506 = vsub.f32 %v4460, %v4505
        %v4507 = vand.u32 %v4506, 4294901760
        %v4508 = vsub.f32 %v4506, %v4507
        %v4509 = vand.u32 %v4508, 4294901760
        %4510 = vmatpush.msra.mxu0 %v4509
        %v4511 = vand.u32 %v4458, 4294901760
        %4512 = vmatmul.f32.gmra.mxu0 %v4511
        %v4513 = vpop.f32.mrf.mxu0
        %v4514 = vadd.f32 %v4488, %v4513
        %4515 = vdwg.mxu0
        %4516 = vmatpush.msra.mxu0 0.0
        %4517 = vmatpush.msra.mxu0 0.0
        %4518 = vmatpush.msra.mxu0 0.0
        %4519 = vmatpush.msra.mxu0 0.0
        %4520 = vmatpush.msra.mxu0 0.0
        %4521 = vmatpush.msra.mxu0 0.0
        %4522 = vmatpush.msra.mxu0 0.0
        %4523 = vmatpush.msra.mxu0 0.0
        %4524 = vmatpush.msra.mxu0 0.0
        %4525 = vmatpush.msra.mxu0 0.0
        %4526 = vmatpush.msra.mxu0 0.0
        %4527 = vmatpush.msra.mxu0 0.0
        %4528 = vmatpush.msra.mxu0 0.0
        %4529 = vmatpush.msra.mxu0 0.0
        %4530 = vmatpush.msra.mxu0 0.0
        %v4531 = vand.u32 %v4460, 4294901760
        %v4532 = vsub.f32 %v4460, %v4531
        %4533 = vmatpush.msra.mxu0 %v4532
        %v4534 = vand.u32 %v4458, 4294901760
        %v4535 = vsub.f32 %v4458, %v4534
        %4536 = vmatmul.f32.gmra.mxu0 %v4535
        %v4537 = vpop.f32.mrf.mxu0
        %v4538 = vadd.f32 %v4514, %v4537
        %4539 = vdwg.mxu0
        %4540 = vmatpush.msra.mxu0 0.0
        %4541 = vmatpush.msra.mxu0 0.0
        %4542 = vmatpush.msra.mxu0 0.0
        %4543 = vmatpush.msra.mxu0 0.0
        %4544 = vmatpush.msra.mxu0 0.0
        %4545 = vmatpush.msra.mxu0 0.0
        %4546 = vmatpush.msra.mxu0 0.0
        %4547 = vmatpush.msra.mxu0 0.0
        %4548 = vmatpush.msra.mxu0 0.0
        %4549 = vmatpush.msra.mxu0 0.0
        %4550 = vmatpush.msra.mxu0 0.0
        %4551 = vmatpush.msra.mxu0 0.0
        %4552 = vmatpush.msra.mxu0 0.0
        %4553 = vmatpush.msra.mxu0 0.0
        %4554 = vmatpush.msra.mxu0 0.0
        %v4555 = vand.u32 %v4460, 4294901760
        %4556 = vmatpush.msra.mxu0 %v4555
        %v4557 = vand.u32 %v4458, 4294901760
        %v4558 = vsub.f32 %v4458, %v4557
        %v4559 = vand.u32 %v4558, 4294901760
        %4560 = vmatmul.f32.gmra.mxu0 %v4559
        %v4561 = vpop.f32.mrf.mxu0
        %v4562 = vadd.f32 %v4538, %v4561
        %4563 = vdwg.mxu0
        %4564 = vmatpush.msra.mxu0 0.0
        %4565 = vmatpush.msra.mxu0 0.0
        %4566 = vmatpush.msra.mxu0 0.0
        %4567 = vmatpush.msra.mxu0 0.0
        %4568 = vmatpush.msra.mxu0 0.0
        %4569 = vmatpush.msra.mxu0 0.0
        %4570 = vmatpush.msra.mxu0 0.0
        %4571 = vmatpush.msra.mxu0 0.0
        %4572 = vmatpush.msra.mxu0 0.0
        %4573 = vmatpush.msra.mxu0 0.0
        %4574 = vmatpush.msra.mxu0 0.0
        %4575 = vmatpush.msra.mxu0 0.0
        %4576 = vmatpush.msra.mxu0 0.0
        %4577 = vmatpush.msra.mxu0 0.0
        %4578 = vmatpush.msra.mxu0 0.0
        %v4579 = vand.u32 %v4460, 4294901760
        %v4580 = vsub.f32 %v4460, %v4579
        %v4581 = vand.u32 %v4580, 4294901760
        %4582 = vmatpush.msra.mxu0 %v4581
        %v4583 = vand.u32 %v4458, 4294901760
        %4584 = vmatmul.f32.gmra.mxu0 %v4583
        %v4585 = vpop.f32.mrf.mxu0
        %v4586 = vadd.f32 %v4562, %v4585
        %4587 = vdwg.mxu0
        %4588 = vmatpush.msra.mxu0 0.0
        %4589 = vmatpush.msra.mxu0 0.0
        %4590 = vmatpush.msra.mxu0 0.0
        %4591 = vmatpush.msra.mxu0 0.0
        %4592 = vmatpush.msra.mxu0 0.0
        %4593 = vmatpush.msra.mxu0 0.0
        %4594 = vmatpush.msra.mxu0 0.0
        %4595 = vmatpush.msra.mxu0 0.0
        %4596 = vmatpush.msra.mxu0 0.0
        %4597 = vmatpush.msra.mxu0 0.0
        %4598 = vmatpush.msra.mxu0 0.0
        %4599 = vmatpush.msra.mxu0 0.0
        %4600 = vmatpush.msra.mxu0 0.0
        %4601 = vmatpush.msra.mxu0 0.0
        %4602 = vmatpush.msra.mxu0 0.0
        %v4603 = vand.u32 %v4460, 4294901760
        %4604 = vmatpush.msra.mxu0 %v4603
        %v4605 = vand.u32 %v4458, 4294901760
        %4606 = vmatmul.f32.gmra.mxu0 %v4605
        %v4607 = vpop.f32.mrf.mxu0
        %v4608 = vadd.f32 %v4586, %v4607
        %4609 = vdwg.mxu0
        %4610 = vmatpush.msra.mxu0 0.0
        %4611 = vmatpush.msra.mxu0 0.0
        %4612 = vmatpush.msra.mxu0 0.0
        %4613 = vmatpush.msra.mxu0 0.0
        %4614 = vmatpush.msra.mxu0 0.0
        %4615 = vmatpush.msra.mxu0 0.0
        %4616 = vmatpush.msra.mxu0 0.0
        %4617 = vmatpush.msra.mxu0 0.0
        %4618 = vmatpush.msra.mxu0 0.0
        %4619 = vmatpush.msra.mxu0 0.0
        %4620 = vmatpush.msra.mxu0 0.0
        %4621 = vmatpush.msra.mxu0 0.0
        %4622 = vmatpush.msra.mxu0 0.0
        %4623 = vmatpush.msra.mxu0 0.0
        %4624 = vmatpush.msra.mxu0 0.0
        %v4625 = vand.u32 %v4462, 4294901760
        %4626 = vmatpush.msra.mxu0 %v4625
        %v4627 = vand.u32 %v4458, 4294901760
        %v4628 = vsub.f32 %v4458, %v4627
        %v4629 = vand.u32 %v4628, 4294901760
        %v4630 = vsub.f32 %v4628, %v4629
        %v4631 = vand.u32 %v4630, 4294901760
        %4632 = vmatmul.f32.gmra.mxu0 %v4631
        %v4633 = vpop.f32.mrf.mxu0
        %v4634 = vadd.f32 %v4441, %v4633
        %4635 = vdwg.mxu0
        %4636 = vmatpush.msra.mxu0 0.0
        %4637 = vmatpush.msra.mxu0 0.0
        %4638 = vmatpush.msra.mxu0 0.0
        %4639 = vmatpush.msra.mxu0 0.0
        %4640 = vmatpush.msra.mxu0 0.0
        %4641 = vmatpush.msra.mxu0 0.0
        %4642 = vmatpush.msra.mxu0 0.0
        %4643 = vmatpush.msra.mxu0 0.0
        %4644 = vmatpush.msra.mxu0 0.0
        %4645 = vmatpush.msra.mxu0 0.0
        %4646 = vmatpush.msra.mxu0 0.0
        %4647 = vmatpush.msra.mxu0 0.0
        %4648 = vmatpush.msra.mxu0 0.0
        %4649 = vmatpush.msra.mxu0 0.0
        %4650 = vmatpush.msra.mxu0 0.0
        %v4651 = vand.u32 %v4462, 4294901760
        %v4652 = vsub.f32 %v4462, %v4651
        %v4653 = vand.u32 %v4652, 4294901760
        %v4654 = vsub.f32 %v4652, %v4653
        %v4655 = vand.u32 %v4654, 4294901760
        %4656 = vmatpush.msra.mxu0 %v4655
        %v4657 = vand.u32 %v4458, 4294901760
        %4658 = vmatmul.f32.gmra.mxu0 %v4657
        %v4659 = vpop.f32.mrf.mxu0
        %v4660 = vadd.f32 %v4634, %v4659
        %4661 = vdwg.mxu0
        %4662 = vmatpush.msra.mxu0 0.0
        %4663 = vmatpush.msra.mxu0 0.0
        %4664 = vmatpush.msra.mxu0 0.0
        %4665 = vmatpush.msra.mxu0 0.0
        %4666 = vmatpush.msra.mxu0 0.0
        %4667 = vmatpush.msra.mxu0 0.0
        %4668 = vmatpush.msra.mxu0 0.0
        %4669 = vmatpush.msra.mxu0 0.0
        %4670 = vmatpush.msra.mxu0 0.0
        %4671 = vmatpush.msra.mxu0 0.0
        %4672 = vmatpush.msra.mxu0 0.0
        %4673 = vmatpush.msra.mxu0 0.0
        %4674 = vmatpush.msra.mxu0 0.0
        %4675 = vmatpush.msra.mxu0 0.0
        %4676 = vmatpush.msra.mxu0 0.0
        %v4677 = vand.u32 %v4462, 4294901760
        %v4678 = vsub.f32 %v4462, %v4677
        %4679 = vmatpush.msra.mxu0 %v4678
        %v4680 = vand.u32 %v4458, 4294901760
        %v4681 = vsub.f32 %v4458, %v4680
        %4682 = vmatmul.f32.gmra.mxu0 %v4681
        %v4683 = vpop.f32.mrf.mxu0
        %v4684 = vadd.f32 %v4660, %v4683
        %4685 = vdwg.mxu0
        %4686 = vmatpush.msra.mxu0 0.0
        %4687 = vmatpush.msra.mxu0 0.0
        %4688 = vmatpush.msra.mxu0 0.0
        %4689 = vmatpush.msra.mxu0 0.0
        %4690 = vmatpush.msra.mxu0 0.0
        %4691 = vmatpush.msra.mxu0 0.0
        %4692 = vmatpush.msra.mxu0 0.0
        %4693 = vmatpush.msra.mxu0 0.0
        %4694 = vmatpush.msra.mxu0 0.0
        %4695 = vmatpush.msra.mxu0 0.0
        %4696 = vmatpush.msra.mxu0 0.0
        %4697 = vmatpush.msra.mxu0 0.0
        %4698 = vmatpush.msra.mxu0 0.0
        %4699 = vmatpush.msra.mxu0 0.0
        %4700 = vmatpush.msra.mxu0 0.0
        %v4701 = vand.u32 %v4462, 4294901760
        %4702 = vmatpush.msra.mxu0 %v4701
        %v4703 = vand.u32 %v4458, 4294901760
        %v4704 = vsub.f32 %v4458, %v4703
        %v4705 = vand.u32 %v4704, 4294901760
        %4706 = vmatmul.f32.gmra.mxu0 %v4705
        %v4707 = vpop.f32.mrf.mxu0
        %v4708 = vadd.f32 %v4684, %v4707
        %4709 = vdwg.mxu0
        %4710 = vmatpush.msra.mxu0 0.0
        %4711 = vmatpush.msra.mxu0 0.0
        %4712 = vmatpush.msra.mxu0 0.0
        %4713 = vmatpush.msra.mxu0 0.0
        %4714 = vmatpush.msra.mxu0 0.0
        %4715 = vmatpush.msra.mxu0 0.0
        %4716 = vmatpush.msra.mxu0 0.0
        %4717 = vmatpush.msra.mxu0 0.0
        %4718 = vmatpush.msra.mxu0 0.0
        %4719 = vmatpush.msra.mxu0 0.0
        %4720 = vmatpush.msra.mxu0 0.0
        %4721 = vmatpush.msra.mxu0 0.0
        %4722 = vmatpush.msra.mxu0 0.0
        %4723 = vmatpush.msra.mxu0 0.0
        %4724 = vmatpush.msra.mxu0 0.0
        %v4725 = vand.u32 %v4462, 4294901760
        %v4726 = vsub.f32 %v4462, %v4725
        %v4727 = vand.u32 %v4726, 4294901760
        %4728 = vmatpush.msra.mxu0 %v4727
        %v4729 = vand.u32 %v4458, 4294901760
        %4730 = vmatmul.f32.gmra.mxu0 %v4729
        %v4731 = vpop.f32.mrf.mxu0
        %v4732 = vadd.f32 %v4708, %v4731
        %4733 = vdwg.mxu0
        %4734 = vmatpush.msra.mxu0 0.0
        %4735 = vmatpush.msra.mxu0 0.0
        %4736 = vmatpush.msra.mxu0 0.0
        %4737 = vmatpush.msra.mxu0 0.0
        %4738 = vmatpush.msra.mxu0 0.0
        %4739 = vmatpush.msra.mxu0 0.0
        %4740 = vmatpush.msra.mxu0 0.0
        %4741 = vmatpush.msra.mxu0 0.0
        %4742 = vmatpush.msra.mxu0 0.0
        %4743 = vmatpush.msra.mxu0 0.0
        %4744 = vmatpush.msra.mxu0 0.0
        %4745 = vmatpush.msra.mxu0 0.0
        %4746 = vmatpush.msra.mxu0 0.0
        %4747 = vmatpush.msra.mxu0 0.0
        %4748 = vmatpush.msra.mxu0 0.0
        %v4749 = vand.u32 %v4462, 4294901760
        %4750 = vmatpush.msra.mxu0 %v4749
        %v4751 = vand.u32 %v4458, 4294901760
        %4752 = vmatmul.f32.gmra.mxu0 %v4751
        %v4753 = vpop.f32.mrf.mxu0
        %v4754 = vadd.f32 %v4732, %v4753
        %4755 = vdwg.mxu0
        %v4756 = vld [vmem:[#allocation2] sm:$0xff]
        %v4757 = vld [vmem:[#allocation2 + $0x8] sm:$0xf]
        %s4758 = scalar_lea.vmem %s3, 28
        %v4759 = vld [vmem:[%s4758] sm:$0xf]
        %4762 = vst [vmem:[#allocation1] ss:$2 sm:$0xff] %v4756
        %s4763 = scalar_lea.vmem [#allocation1], 16
        %4764 = vst [vmem:[%s4763] ss:$2 sm:$0xff] %v4757
        %v4765 = vld.sshfl [vmem:[#allocation1] sm:$0xff pattern:$0x75316420]
        %v4766 = vld.sshfl [vmem:[#allocation1 + $0x8] sm:$0xff pattern:$0x75316420]
        %v4767 = vld.sshfl [vmem:[#allocation1 + $0x10] sm:$0xff pattern:$0x75316420]
        %4768 = vrot.lane.b32.xlu0 %v4765, 95
        %v4769 = vpop.permute.xlu0 %4768
        %4770 = vrot.lane.b32.xlu0 %v4766, 95
        %v4771 = vpop.permute.xlu0 %4770
        %4772 = vrot.lane.b32.xlu0 %v4767, 95
        %v4773 = vpop.permute.xlu0 %4772
        %v4774 = vsel %vm1881, %v4769, %v4771
        %v4775 = vsel %vm1881, %v4771, %v4773
        %v4777 = vsel %vm294, %v4759, 0
        %v4779 = vsel %vm298, %v4774, 0
        %v4781 = vsel %vm298, %v4775, 0
        %4783 = vmatpush.msra.mxu0 0.0
        %4784 = vmatpush.msra.mxu0 0.0
        %4785 = vmatpush.msra.mxu0 0.0
        %4786 = vmatpush.msra.mxu0 0.0
        %4787 = vmatpush.msra.mxu0 0.0
        %4788 = vmatpush.msra.mxu0 0.0
        %4789 = vmatpush.msra.mxu0 0.0
        %4790 = vmatpush.msra.mxu0 0.0
        %4791 = vmatpush.msra.mxu0 0.0
        %4792 = vmatpush.msra.mxu0 0.0
        %4793 = vmatpush.msra.mxu0 0.0
        %4794 = vmatpush.msra.mxu0 0.0
        %4795 = vmatpush.msra.mxu0 0.0
        %4796 = vmatpush.msra.mxu0 0.0
        %4797 = vmatpush.msra.mxu0 0.0
        %v4798 = vand.u32 %v4779, 4294901760
        %4799 = vmatpush.msra.mxu0 %v4798
        %v4800 = vand.u32 %v4777, 4294901760
        %v4801 = vsub.f32 %v4777, %v4800
        %v4802 = vand.u32 %v4801, 4294901760
        %v4803 = vsub.f32 %v4801, %v4802
        %v4804 = vand.u32 %v4803, 4294901760
        %4805 = vmatmul.f32.gmra.mxu0 %v4804
        %v4806 = vpop.f32.mrf.mxu0
        %v4807 = vadd.f32 0.0, %v4806
        %4808 = vdwg.mxu0
        %4809 = vmatpush.msra.mxu0 0.0
        %4810 = vmatpush.msra.mxu0 0.0
        %4811 = vmatpush.msra.mxu0 0.0
        %4812 = vmatpush.msra.mxu0 0.0
        %4813 = vmatpush.msra.mxu0 0.0
        %4814 = vmatpush.msra.mxu0 0.0
        %4815 = vmatpush.msra.mxu0 0.0
        %4816 = vmatpush.msra.mxu0 0.0
        %4817 = vmatpush.msra.mxu0 0.0
        %4818 = vmatpush.msra.mxu0 0.0
        %4819 = vmatpush.msra.mxu0 0.0
        %4820 = vmatpush.msra.mxu0 0.0
        %4821 = vmatpush.msra.mxu0 0.0
        %4822 = vmatpush.msra.mxu0 0.0
        %4823 = vmatpush.msra.mxu0 0.0
        %v4824 = vand.u32 %v4779, 4294901760
        %v4825 = vsub.f32 %v4779, %v4824
        %v4826 = vand.u32 %v4825, 4294901760
        %v4827 = vsub.f32 %v4825, %v4826
        %v4828 = vand.u32 %v4827, 4294901760
        %4829 = vmatpush.msra.mxu0 %v4828
        %v4830 = vand.u32 %v4777, 4294901760
        %4831 = vmatmul.f32.gmra.mxu0 %v4830
        %v4832 = vpop.f32.mrf.mxu0
        %v4833 = vadd.f32 %v4807, %v4832
        %4834 = vdwg.mxu0
        %4835 = vmatpush.msra.mxu0 0.0
        %4836 = vmatpush.msra.mxu0 0.0
        %4837 = vmatpush.msra.mxu0 0.0
        %4838 = vmatpush.msra.mxu0 0.0
        %4839 = vmatpush.msra.mxu0 0.0
        %4840 = vmatpush.msra.mxu0 0.0
        %4841 = vmatpush.msra.mxu0 0.0
        %4842 = vmatpush.msra.mxu0 0.0
        %4843 = vmatpush.msra.mxu0 0.0
        %4844 = vmatpush.msra.mxu0 0.0
        %4845 = vmatpush.msra.mxu0 0.0
        %4846 = vmatpush.msra.mxu0 0.0
        %4847 = vmatpush.msra.mxu0 0.0
        %4848 = vmatpush.msra.mxu0 0.0
        %4849 = vmatpush.msra.mxu0 0.0
        %v4850 = vand.u32 %v4779, 4294901760
        %v4851 = vsub.f32 %v4779, %v4850
        %4852 = vmatpush.msra.mxu0 %v4851
        %v4853 = vand.u32 %v4777, 4294901760
        %v4854 = vsub.f32 %v4777, %v4853
        %4855 = vmatmul.f32.gmra.mxu0 %v4854
        %v4856 = vpop.f32.mrf.mxu0
        %v4857 = vadd.f32 %v4833, %v4856
        %4858 = vdwg.mxu0
        %4859 = vmatpush.msra.mxu0 0.0
        %4860 = vmatpush.msra.mxu0 0.0
        %4861 = vmatpush.msra.mxu0 0.0
        %4862 = vmatpush.msra.mxu0 0.0
        %4863 = vmatpush.msra.mxu0 0.0
        %4864 = vmatpush.msra.mxu0 0.0
        %4865 = vmatpush.msra.mxu0 0.0
        %4866 = vmatpush.msra.mxu0 0.0
        %4867 = vmatpush.msra.mxu0 0.0
        %4868 = vmatpush.msra.mxu0 0.0
        %4869 = vmatpush.msra.mxu0 0.0
        %4870 = vmatpush.msra.mxu0 0.0
        %4871 = vmatpush.msra.mxu0 0.0
        %4872 = vmatpush.msra.mxu0 0.0
        %4873 = vmatpush.msra.mxu0 0.0
        %v4874 = vand.u32 %v4779, 4294901760
        %4875 = vmatpush.msra.mxu0 %v4874
        %v4876 = vand.u32 %v4777, 4294901760
        %v4877 = vsub.f32 %v4777, %v4876
        %v4878 = vand.u32 %v4877, 4294901760
        %4879 = vmatmul.f32.gmra.mxu0 %v4878
        %v4880 = vpop.f32.mrf.mxu0
        %v4881 = vadd.f32 %v4857, %v4880
        %4882 = vdwg.mxu0
        %4883 = vmatpush.msra.mxu0 0.0
        %4884 = vmatpush.msra.mxu0 0.0
        %4885 = vmatpush.msra.mxu0 0.0
        %4886 = vmatpush.msra.mxu0 0.0
        %4887 = vmatpush.msra.mxu0 0.0
        %4888 = vmatpush.msra.mxu0 0.0
        %4889 = vmatpush.msra.mxu0 0.0
        %4890 = vmatpush.msra.mxu0 0.0
        %4891 = vmatpush.msra.mxu0 0.0
        %4892 = vmatpush.msra.mxu0 0.0
        %4893 = vmatpush.msra.mxu0 0.0
        %4894 = vmatpush.msra.mxu0 0.0
        %4895 = vmatpush.msra.mxu0 0.0
        %4896 = vmatpush.msra.mxu0 0.0
        %4897 = vmatpush.msra.mxu0 0.0
        %v4898 = vand.u32 %v4779, 4294901760
        %v4899 = vsub.f32 %v4779, %v4898
        %v4900 = vand.u32 %v4899, 4294901760
        %4901 = vmatpush.msra.mxu0 %v4900
        %v4902 = vand.u32 %v4777, 4294901760
        %4903 = vmatmul.f32.gmra.mxu0 %v4902
        %v4904 = vpop.f32.mrf.mxu0
        %v4905 = vadd.f32 %v4881, %v4904
        %4906 = vdwg.mxu0
        %4907 = vmatpush.msra.mxu0 0.0
        %4908 = vmatpush.msra.mxu0 0.0
        %4909 = vmatpush.msra.mxu0 0.0
        %4910 = vmatpush.msra.mxu0 0.0
        %4911 = vmatpush.msra.mxu0 0.0
        %4912 = vmatpush.msra.mxu0 0.0
        %4913 = vmatpush.msra.mxu0 0.0
        %4914 = vmatpush.msra.mxu0 0.0
        %4915 = vmatpush.msra.mxu0 0.0
        %4916 = vmatpush.msra.mxu0 0.0
        %4917 = vmatpush.msra.mxu0 0.0
        %4918 = vmatpush.msra.mxu0 0.0
        %4919 = vmatpush.msra.mxu0 0.0
        %4920 = vmatpush.msra.mxu0 0.0
        %4921 = vmatpush.msra.mxu0 0.0
        %v4922 = vand.u32 %v4779, 4294901760
        %4923 = vmatpush.msra.mxu0 %v4922
        %v4924 = vand.u32 %v4777, 4294901760
        %4925 = vmatmul.f32.gmra.mxu0 %v4924
        %v4926 = vpop.f32.mrf.mxu0
        %v4927 = vadd.f32 %v4905, %v4926
        %4928 = vdwg.mxu0
        %4929 = vmatpush.msra.mxu0 0.0
        %4930 = vmatpush.msra.mxu0 0.0
        %4931 = vmatpush.msra.mxu0 0.0
        %4932 = vmatpush.msra.mxu0 0.0
        %4933 = vmatpush.msra.mxu0 0.0
        %4934 = vmatpush.msra.mxu0 0.0
        %4935 = vmatpush.msra.mxu0 0.0
        %4936 = vmatpush.msra.mxu0 0.0
        %4937 = vmatpush.msra.mxu0 0.0
        %4938 = vmatpush.msra.mxu0 0.0
        %4939 = vmatpush.msra.mxu0 0.0
        %4940 = vmatpush.msra.mxu0 0.0
        %4941 = vmatpush.msra.mxu0 0.0
        %4942 = vmatpush.msra.mxu0 0.0
        %4943 = vmatpush.msra.mxu0 0.0
        %v4944 = vand.u32 %v4781, 4294901760
        %4945 = vmatpush.msra.mxu0 %v4944
        %v4946 = vand.u32 %v4777, 4294901760
        %v4947 = vsub.f32 %v4777, %v4946
        %v4948 = vand.u32 %v4947, 4294901760
        %v4949 = vsub.f32 %v4947, %v4948
        %v4950 = vand.u32 %v4949, 4294901760
        %4951 = vmatmul.f32.gmra.mxu0 %v4950
        %v4952 = vpop.f32.mrf.mxu0
        %v4953 = vadd.f32 0.0, %v4952
        %4954 = vdwg.mxu0
        %4955 = vmatpush.msra.mxu0 0.0
        %4956 = vmatpush.msra.mxu0 0.0
        %4957 = vmatpush.msra.mxu0 0.0
        %4958 = vmatpush.msra.mxu0 0.0
        %4959 = vmatpush.msra.mxu0 0.0
        %4960 = vmatpush.msra.mxu0 0.0
        %4961 = vmatpush.msra.mxu0 0.0
        %4962 = vmatpush.msra.mxu0 0.0
        %4963 = vmatpush.msra.mxu0 0.0
        %4964 = vmatpush.msra.mxu0 0.0
        %4965 = vmatpush.msra.mxu0 0.0
        %4966 = vmatpush.msra.mxu0 0.0
        %4967 = vmatpush.msra.mxu0 0.0
        %4968 = vmatpush.msra.mxu0 0.0
        %4969 = vmatpush.msra.mxu0 0.0
        %v4970 = vand.u32 %v4781, 4294901760
        %v4971 = vsub.f32 %v4781, %v4970
        %v4972 = vand.u32 %v4971, 4294901760
        %v4973 = vsub.f32 %v4971, %v4972
        %v4974 = vand.u32 %v4973, 4294901760
        %4975 = vmatpush.msra.mxu0 %v4974
        %v4976 = vand.u32 %v4777, 4294901760
        %4977 = vmatmul.f32.gmra.mxu0 %v4976
        %v4978 = vpop.f32.mrf.mxu0
        %v4979 = vadd.f32 %v4953, %v4978
        %4980 = vdwg.mxu0
        %4981 = vmatpush.msra.mxu0 0.0
        %4982 = vmatpush.msra.mxu0 0.0
        %4983 = vmatpush.msra.mxu0 0.0
        %4984 = vmatpush.msra.mxu0 0.0
        %4985 = vmatpush.msra.mxu0 0.0
        %4986 = vmatpush.msra.mxu0 0.0
        %4987 = vmatpush.msra.mxu0 0.0
        %4988 = vmatpush.msra.mxu0 0.0
        %4989 = vmatpush.msra.mxu0 0.0
        %4990 = vmatpush.msra.mxu0 0.0
        %4991 = vmatpush.msra.mxu0 0.0
        %4992 = vmatpush.msra.mxu0 0.0
        %4993 = vmatpush.msra.mxu0 0.0
        %4994 = vmatpush.msra.mxu0 0.0
        %4995 = vmatpush.msra.mxu0 0.0
        %v4996 = vand.u32 %v4781, 4294901760
        %v4997 = vsub.f32 %v4781, %v4996
        %4998 = vmatpush.msra.mxu0 %v4997
        %v4999 = vand.u32 %v4777, 4294901760
        %v5000 = vsub.f32 %v4777, %v4999
        %5001 = vmatmul.f32.gmra.mxu0 %v5000
        %v5002 = vpop.f32.mrf.mxu0
        %v5003 = vadd.f32 %v4979, %v5002
        %5004 = vdwg.mxu0
        %5005 = vmatpush.msra.mxu0 0.0
        %5006 = vmatpush.msra.mxu0 0.0
        %5007 = vmatpush.msra.mxu0 0.0
        %5008 = vmatpush.msra.mxu0 0.0
        %5009 = vmatpush.msra.mxu0 0.0
        %5010 = vmatpush.msra.mxu0 0.0
        %5011 = vmatpush.msra.mxu0 0.0
        %5012 = vmatpush.msra.mxu0 0.0
        %5013 = vmatpush.msra.mxu0 0.0
        %5014 = vmatpush.msra.mxu0 0.0
        %5015 = vmatpush.msra.mxu0 0.0
        %5016 = vmatpush.msra.mxu0 0.0
        %5017 = vmatpush.msra.mxu0 0.0
        %5018 = vmatpush.msra.mxu0 0.0
        %5019 = vmatpush.msra.mxu0 0.0
        %v5020 = vand.u32 %v4781, 4294901760
        %5021 = vmatpush.msra.mxu0 %v5020
        %v5022 = vand.u32 %v4777, 4294901760
        %v5023 = vsub.f32 %v4777, %v5022
        %v5024 = vand.u32 %v5023, 4294901760
        %5025 = vmatmul.f32.gmra.mxu0 %v5024
        %v5026 = vpop.f32.mrf.mxu0
        %v5027 = vadd.f32 %v5003, %v5026
        %5028 = vdwg.mxu0
        %5029 = vmatpush.msra.mxu0 0.0
        %5030 = vmatpush.msra.mxu0 0.0
        %5031 = vmatpush.msra.mxu0 0.0
        %5032 = vmatpush.msra.mxu0 0.0
        %5033 = vmatpush.msra.mxu0 0.0
        %5034 = vmatpush.msra.mxu0 0.0
        %5035 = vmatpush.msra.mxu0 0.0
        %5036 = vmatpush.msra.mxu0 0.0
        %5037 = vmatpush.msra.mxu0 0.0
        %5038 = vmatpush.msra.mxu0 0.0
        %5039 = vmatpush.msra.mxu0 0.0
        %5040 = vmatpush.msra.mxu0 0.0
        %5041 = vmatpush.msra.mxu0 0.0
        %5042 = vmatpush.msra.mxu0 0.0
        %5043 = vmatpush.msra.mxu0 0.0
        %v5044 = vand.u32 %v4781, 4294901760
        %v5045 = vsub.f32 %v4781, %v5044
        %v5046 = vand.u32 %v5045, 4294901760
        %5047 = vmatpush.msra.mxu0 %v5046
        %v5048 = vand.u32 %v4777, 4294901760
        %5049 = vmatmul.f32.gmra.mxu0 %v5048
        %v5050 = vpop.f32.mrf.mxu0
        %v5051 = vadd.f32 %v5027, %v5050
        %5052 = vdwg.mxu0
        %5053 = vmatpush.msra.mxu0 0.0
        %5054 = vmatpush.msra.mxu0 0.0
        %5055 = vmatpush.msra.mxu0 0.0
        %5056 = vmatpush.msra.mxu0 0.0
        %5057 = vmatpush.msra.mxu0 0.0
        %5058 = vmatpush.msra.mxu0 0.0
        %5059 = vmatpush.msra.mxu0 0.0
        %5060 = vmatpush.msra.mxu0 0.0
        %5061 = vmatpush.msra.mxu0 0.0
        %5062 = vmatpush.msra.mxu0 0.0
        %5063 = vmatpush.msra.mxu0 0.0
        %5064 = vmatpush.msra.mxu0 0.0
        %5065 = vmatpush.msra.mxu0 0.0
        %5066 = vmatpush.msra.mxu0 0.0
        %5067 = vmatpush.msra.mxu0 0.0
        %v5068 = vand.u32 %v4781, 4294901760
        %5069 = vmatpush.msra.mxu0 %v5068
        %v5070 = vand.u32 %v4777, 4294901760
        %5071 = vmatmul.f32.gmra.mxu0 %v5070
        %v5072 = vpop.f32.mrf.mxu0
        %v5073 = vadd.f32 %v5051, %v5072
        %5074 = vdwg.mxu0
        %v5075 = vadd.f32 %v4608, %v4927
        %v5076 = vadd.f32 %v4754, %v5073
        %v5077 = vadd.f32 %v4120, %v5075
        %v5078 = vadd.f32 %v4121, %v5076
        %v5079 = vld [vmem:[#allocation2] sm:$0xff]
        %v5080 = vld [vmem:[#allocation2 + $0x8] sm:$0xf]
        %s5081 = scalar_lea.vmem %s3, 8
        %v5082 = vld [vmem:[%s5081] sm:$0xf]
        %s5083 = scalar_lea.vmem %s3, 20
        %v5084 = vld [vmem:[%s5083] sm:$0xf]
        %5087 = vst [vmem:[#allocation1] ss:$2 sm:$0xff] %v5079
        %s5088 = scalar_lea.vmem [#allocation1], 16
        %5089 = vst [vmem:[%s5088] ss:$2 sm:$0xff] %v5080
        %v5090 = vld.sshfl [vmem:[#allocation1] sm:$0xff pattern:$0x75316420]
        %v5091 = vld.sshfl [vmem:[#allocation1 + $0x8] sm:$0xff pattern:$0x75316420]
        %v5092 = vld.sshfl [vmem:[#allocation1 + $0x10] sm:$0xff pattern:$0x75316420]
        %5093 = vrot.lane.b32.xlu0 %v5090, 110
        %v5094 = vpop.permute.xlu0 %5093
        %5095 = vrot.lane.b32.xlu0 %v5091, 110
        %v5096 = vpop.permute.xlu0 %5095
        %5097 = vrot.lane.b32.xlu0 %v5092, 110
        %v5098 = vpop.permute.xlu0 %5097
        %v5099 = vsel %vm2207, %v5094, %v5096
        %v5100 = vsel %vm2207, %v5096, %v5098
        %v5102 = vsel %vm294, %v5084, 0
        %v5104 = vsel %vm298, %v5099, 0
        %v5106 = vsel %vm298, %v5100, 0
        %5108 = vmatpush.msra.mxu0 0.0
        %5109 = vmatpush.msra.mxu0 0.0
        %5110 = vmatpush.msra.mxu0 0.0
        %5111 = vmatpush.msra.mxu0 0.0
        %5112 = vmatpush.msra.mxu0 0.0
        %5113 = vmatpush.msra.mxu0 0.0
        %5114 = vmatpush.msra.mxu0 0.0
        %5115 = vmatpush.msra.mxu0 0.0
        %5116 = vmatpush.msra.mxu0 0.0
        %5117 = vmatpush.msra.mxu0 0.0
        %5118 = vmatpush.msra.mxu0 0.0
        %5119 = vmatpush.msra.mxu0 0.0
        %5120 = vmatpush.msra.mxu0 0.0
        %5121 = vmatpush.msra.mxu0 0.0
        %5122 = vmatpush.msra.mxu0 0.0
        %v5123 = vand.u32 %v5104, 4294901760
        %5124 = vmatpush.msra.mxu0 %v5123
        %v5125 = vand.u32 %v5102, 4294901760
        %v5126 = vsub.f32 %v5102, %v5125
        %v5127 = vand.u32 %v5126, 4294901760
        %v5128 = vsub.f32 %v5126, %v5127
        %v5129 = vand.u32 %v5128, 4294901760
        %5130 = vmatmul.f32.gmra.mxu0 %v5129
        %v5131 = vpop.f32.mrf.mxu0
        %v5132 = vadd.f32 0.0, %v5131
        %5133 = vdwg.mxu0
        %5134 = vmatpush.msra.mxu0 0.0
        %5135 = vmatpush.msra.mxu0 0.0
        %5136 = vmatpush.msra.mxu0 0.0
        %5137 = vmatpush.msra.mxu0 0.0
        %5138 = vmatpush.msra.mxu0 0.0
        %5139 = vmatpush.msra.mxu0 0.0
        %5140 = vmatpush.msra.mxu0 0.0
        %5141 = vmatpush.msra.mxu0 0.0
        %5142 = vmatpush.msra.mxu0 0.0
        %5143 = vmatpush.msra.mxu0 0.0
        %5144 = vmatpush.msra.mxu0 0.0
        %5145 = vmatpush.msra.mxu0 0.0
        %5146 = vmatpush.msra.mxu0 0.0
        %5147 = vmatpush.msra.mxu0 0.0
        %5148 = vmatpush.msra.mxu0 0.0
        %v5149 = vand.u32 %v5104, 4294901760
        %v5150 = vsub.f32 %v5104, %v5149
        %v5151 = vand.u32 %v5150, 4294901760
        %v5152 = vsub.f32 %v5150, %v5151
        %v5153 = vand.u32 %v5152, 4294901760
        %5154 = vmatpush.msra.mxu0 %v5153
        %v5155 = vand.u32 %v5102, 4294901760
        %5156 = vmatmul.f32.gmra.mxu0 %v5155
        %v5157 = vpop.f32.mrf.mxu0
        %v5158 = vadd.f32 %v5132, %v5157
        %5159 = vdwg.mxu0
        %5160 = vmatpush.msra.mxu0 0.0
        %5161 = vmatpush.msra.mxu0 0.0
        %5162 = vmatpush.msra.mxu0 0.0
        %5163 = vmatpush.msra.mxu0 0.0
        %5164 = vmatpush.msra.mxu0 0.0
        %5165 = vmatpush.msra.mxu0 0.0
        %5166 = vmatpush.msra.mxu0 0.0
        %5167 = vmatpush.msra.mxu0 0.0
        %5168 = vmatpush.msra.mxu0 0.0
        %5169 = vmatpush.msra.mxu0 0.0
        %5170 = vmatpush.msra.mxu0 0.0
        %5171 = vmatpush.msra.mxu0 0.0
        %5172 = vmatpush.msra.mxu0 0.0
        %5173 = vmatpush.msra.mxu0 0.0
        %5174 = vmatpush.msra.mxu0 0.0
        %v5175 = vand.u32 %v5104, 4294901760
        %v5176 = vsub.f32 %v5104, %v5175
        %5177 = vmatpush.msra.mxu0 %v5176
        %v5178 = vand.u32 %v5102, 4294901760
        %v5179 = vsub.f32 %v5102, %v5178
        %5180 = vmatmul.f32.gmra.mxu0 %v5179
        %v5181 = vpop.f32.mrf.mxu0
        %v5182 = vadd.f32 %v5158, %v5181
        %5183 = vdwg.mxu0
        %5184 = vmatpush.msra.mxu0 0.0
        %5185 = vmatpush.msra.mxu0 0.0
        %5186 = vmatpush.msra.mxu0 0.0
        %5187 = vmatpush.msra.mxu0 0.0
        %5188 = vmatpush.msra.mxu0 0.0
        %5189 = vmatpush.msra.mxu0 0.0
        %5190 = vmatpush.msra.mxu0 0.0
        %5191 = vmatpush.msra.mxu0 0.0
        %5192 = vmatpush.msra.mxu0 0.0
        %5193 = vmatpush.msra.mxu0 0.0
        %5194 = vmatpush.msra.mxu0 0.0
        %5195 = vmatpush.msra.mxu0 0.0
        %5196 = vmatpush.msra.mxu0 0.0
        %5197 = vmatpush.msra.mxu0 0.0
        %5198 = vmatpush.msra.mxu0 0.0
        %v5199 = vand.u32 %v5104, 4294901760
        %5200 = vmatpush.msra.mxu0 %v5199
        %v5201 = vand.u32 %v5102, 4294901760
        %v5202 = vsub.f32 %v5102, %v5201
        %v5203 = vand.u32 %v5202, 4294901760
        %5204 = vmatmul.f32.gmra.mxu0 %v5203
        %v5205 = vpop.f32.mrf.mxu0
        %v5206 = vadd.f32 %v5182, %v5205
        %5207 = vdwg.mxu0
        %5208 = vmatpush.msra.mxu0 0.0
        %5209 = vmatpush.msra.mxu0 0.0
        %5210 = vmatpush.msra.mxu0 0.0
        %5211 = vmatpush.msra.mxu0 0.0
        %5212 = vmatpush.msra.mxu0 0.0
        %5213 = vmatpush.msra.mxu0 0.0
        %5214 = vmatpush.msra.mxu0 0.0
        %5215 = vmatpush.msra.mxu0 0.0
        %5216 = vmatpush.msra.mxu0 0.0
        %5217 = vmatpush.msra.mxu0 0.0
        %5218 = vmatpush.msra.mxu0 0.0
        %5219 = vmatpush.msra.mxu0 0.0
        %5220 = vmatpush.msra.mxu0 0.0
        %5221 = vmatpush.msra.mxu0 0.0
        %5222 = vmatpush.msra.mxu0 0.0
        %v5223 = vand.u32 %v5104, 4294901760
        %v5224 = vsub.f32 %v5104, %v5223
        %v5225 = vand.u32 %v5224, 4294901760
        %5226 = vmatpush.msra.mxu0 %v5225
        %v5227 = vand.u32 %v5102, 4294901760
        %5228 = vmatmul.f32.gmra.mxu0 %v5227
        %v5229 = vpop.f32.mrf.mxu0
        %v5230 = vadd.f32 %v5206, %v5229
        %5231 = vdwg.mxu0
        %5232 = vmatpush.msra.mxu0 0.0
        %5233 = vmatpush.msra.mxu0 0.0
        %5234 = vmatpush.msra.mxu0 0.0
        %5235 = vmatpush.msra.mxu0 0.0
        %5236 = vmatpush.msra.mxu0 0.0
        %5237 = vmatpush.msra.mxu0 0.0
        %5238 = vmatpush.msra.mxu0 0.0
        %5239 = vmatpush.msra.mxu0 0.0
        %5240 = vmatpush.msra.mxu0 0.0
        %5241 = vmatpush.msra.mxu0 0.0
        %5242 = vmatpush.msra.mxu0 0.0
        %5243 = vmatpush.msra.mxu0 0.0
        %5244 = vmatpush.msra.mxu0 0.0
        %5245 = vmatpush.msra.mxu0 0.0
        %5246 = vmatpush.msra.mxu0 0.0
        %v5247 = vand.u32 %v5104, 4294901760
        %5248 = vmatpush.msra.mxu0 %v5247
        %v5249 = vand.u32 %v5102, 4294901760
        %5250 = vmatmul.f32.gmra.mxu0 %v5249
        %v5251 = vpop.f32.mrf.mxu0
        %v5252 = vadd.f32 %v5230, %v5251
        %5253 = vdwg.mxu0
        %5254 = vmatpush.msra.mxu0 0.0
        %5255 = vmatpush.msra.mxu0 0.0
        %5256 = vmatpush.msra.mxu0 0.0
        %5257 = vmatpush.msra.mxu0 0.0
        %5258 = vmatpush.msra.mxu0 0.0
        %5259 = vmatpush.msra.mxu0 0.0
        %5260 = vmatpush.msra.mxu0 0.0
        %5261 = vmatpush.msra.mxu0 0.0
        %5262 = vmatpush.msra.mxu0 0.0
        %5263 = vmatpush.msra.mxu0 0.0
        %5264 = vmatpush.msra.mxu0 0.0
        %5265 = vmatpush.msra.mxu0 0.0
        %5266 = vmatpush.msra.mxu0 0.0
        %5267 = vmatpush.msra.mxu0 0.0
        %5268 = vmatpush.msra.mxu0 0.0
        %v5269 = vand.u32 %v5106, 4294901760
        %5270 = vmatpush.msra.mxu0 %v5269
        %v5271 = vand.u32 %v5102, 4294901760
        %v5272 = vsub.f32 %v5102, %v5271
        %v5273 = vand.u32 %v5272, 4294901760
        %v5274 = vsub.f32 %v5272, %v5273
        %v5275 = vand.u32 %v5274, 4294901760
        %5276 = vmatmul.f32.gmra.mxu0 %v5275
        %v5277 = vpop.f32.mrf.mxu0
        %v5278 = vadd.f32 0.0, %v5277
        %5279 = vdwg.mxu0
        %5280 = vmatpush.msra.mxu0 0.0
        %5281 = vmatpush.msra.mxu0 0.0
        %5282 = vmatpush.msra.mxu0 0.0
        %5283 = vmatpush.msra.mxu0 0.0
        %5284 = vmatpush.msra.mxu0 0.0
        %5285 = vmatpush.msra.mxu0 0.0
        %5286 = vmatpush.msra.mxu0 0.0
        %5287 = vmatpush.msra.mxu0 0.0
        %5288 = vmatpush.msra.mxu0 0.0
        %5289 = vmatpush.msra.mxu0 0.0
        %5290 = vmatpush.msra.mxu0 0.0
        %5291 = vmatpush.msra.mxu0 0.0
        %5292 = vmatpush.msra.mxu0 0.0
        %5293 = vmatpush.msra.mxu0 0.0
        %5294 = vmatpush.msra.mxu0 0.0
        %v5295 = vand.u32 %v5106, 4294901760
        %v5296 = vsub.f32 %v5106, %v5295
        %v5297 = vand.u32 %v5296, 4294901760
        %v5298 = vsub.f32 %v5296, %v5297
        %v5299 = vand.u32 %v5298, 4294901760
        %5300 = vmatpush.msra.mxu0 %v5299
        %v5301 = vand.u32 %v5102, 4294901760
        %5302 = vmatmul.f32.gmra.mxu0 %v5301
        %v5303 = vpop.f32.mrf.mxu0
        %v5304 = vadd.f32 %v5278, %v5303
        %5305 = vdwg.mxu0
        %5306 = vmatpush.msra.mxu0 0.0
        %5307 = vmatpush.msra.mxu0 0.0
        %5308 = vmatpush.msra.mxu0 0.0
        %5309 = vmatpush.msra.mxu0 0.0
        %5310 = vmatpush.msra.mxu0 0.0
        %5311 = vmatpush.msra.mxu0 0.0
        %5312 = vmatpush.msra.mxu0 0.0
        %5313 = vmatpush.msra.mxu0 0.0
        %5314 = vmatpush.msra.mxu0 0.0
        %5315 = vmatpush.msra.mxu0 0.0
        %5316 = vmatpush.msra.mxu0 0.0
        %5317 = vmatpush.msra.mxu0 0.0
        %5318 = vmatpush.msra.mxu0 0.0
        %5319 = vmatpush.msra.mxu0 0.0
        %5320 = vmatpush.msra.mxu0 0.0
        %v5321 = vand.u32 %v5106, 4294901760
        %v5322 = vsub.f32 %v5106, %v5321
        %5323 = vmatpush.msra.mxu0 %v5322
        %v5324 = vand.u32 %v5102, 4294901760
        %v5325 = vsub.f32 %v5102, %v5324
        %5326 = vmatmul.f32.gmra.mxu0 %v5325
        %v5327 = vpop.f32.mrf.mxu0
        %v5328 = vadd.f32 %v5304, %v5327
        %5329 = vdwg.mxu0
        %5330 = vmatpush.msra.mxu0 0.0
        %5331 = vmatpush.msra.mxu0 0.0
        %5332 = vmatpush.msra.mxu0 0.0
        %5333 = vmatpush.msra.mxu0 0.0
        %5334 = vmatpush.msra.mxu0 0.0
        %5335 = vmatpush.msra.mxu0 0.0
        %5336 = vmatpush.msra.mxu0 0.0
        %5337 = vmatpush.msra.mxu0 0.0
        %5338 = vmatpush.msra.mxu0 0.0
        %5339 = vmatpush.msra.mxu0 0.0
        %5340 = vmatpush.msra.mxu0 0.0
        %5341 = vmatpush.msra.mxu0 0.0
        %5342 = vmatpush.msra.mxu0 0.0
        %5343 = vmatpush.msra.mxu0 0.0
        %5344 = vmatpush.msra.mxu0 0.0
        %v5345 = vand.u32 %v5106, 4294901760
        %5346 = vmatpush.msra.mxu0 %v5345
        %v5347 = vand.u32 %v5102, 4294901760
        %v5348 = vsub.f32 %v5102, %v5347
        %v5349 = vand.u32 %v5348, 4294901760
        %5350 = vmatmul.f32.gmra.mxu0 %v5349
        %v5351 = vpop.f32.mrf.mxu0
        %v5352 = vadd.f32 %v5328, %v5351
        %5353 = vdwg.mxu0
        %5354 = vmatpush.msra.mxu0 0.0
        %5355 = vmatpush.msra.mxu0 0.0
        %5356 = vmatpush.msra.mxu0 0.0
        %5357 = vmatpush.msra.mxu0 0.0
        %5358 = vmatpush.msra.mxu0 0.0
        %5359 = vmatpush.msra.mxu0 0.0
        %5360 = vmatpush.msra.mxu0 0.0
        %5361 = vmatpush.msra.mxu0 0.0
        %5362 = vmatpush.msra.mxu0 0.0
        %5363 = vmatpush.msra.mxu0 0.0
        %5364 = vmatpush.msra.mxu0 0.0
        %5365 = vmatpush.msra.mxu0 0.0
        %5366 = vmatpush.msra.mxu0 0.0
        %5367 = vmatpush.msra.mxu0 0.0
        %5368 = vmatpush.msra.mxu0 0.0
        %v5369 = vand.u32 %v5106, 4294901760
        %v5370 = vsub.f32 %v5106, %v5369
        %v5371 = vand.u32 %v5370, 4294901760
        %5372 = vmatpush.msra.mxu0 %v5371
        %v5373 = vand.u32 %v5102, 4294901760
        %5374 = vmatmul.f32.gmra.mxu0 %v5373
        %v5375 = vpop.f32.mrf.mxu0
        %v5376 = vadd.f32 %v5352, %v5375
        %5377 = vdwg.mxu0
        %5378 = vmatpush.msra.mxu0 0.0
        %5379 = vmatpush.msra.mxu0 0.0
        %5380 = vmatpush.msra.mxu0 0.0
        %5381 = vmatpush.msra.mxu0 0.0
        %5382 = vmatpush.msra.mxu0 0.0
        %5383 = vmatpush.msra.mxu0 0.0
        %5384 = vmatpush.msra.mxu0 0.0
        %5385 = vmatpush.msra.mxu0 0.0
        %5386 = vmatpush.msra.mxu0 0.0
        %5387 = vmatpush.msra.mxu0 0.0
        %5388 = vmatpush.msra.mxu0 0.0
        %5389 = vmatpush.msra.mxu0 0.0
        %5390 = vmatpush.msra.mxu0 0.0
        %5391 = vmatpush.msra.mxu0 0.0
        %5392 = vmatpush.msra.mxu0 0.0
        %v5393 = vand.u32 %v5106, 4294901760
        %5394 = vmatpush.msra.mxu0 %v5393
        %v5395 = vand.u32 %v5102, 4294901760
        %5396 = vmatmul.f32.gmra.mxu0 %v5395
        %v5397 = vpop.f32.mrf.mxu0
        %v5398 = vadd.f32 %v5376, %v5397
        %5399 = vdwg.mxu0
        %5400 = vst [vmem:[#allocation1] ss:$2 sm:$0xff] %v5079
        %s5401 = scalar_lea.vmem [#allocation1], 16
        %5402 = vst [vmem:[%s5401] ss:$2 sm:$0xff] %v5080
        %v5403 = vld.sshfl [vmem:[#allocation1] sm:$0xff pattern:$0x75316420]
        %v5404 = vld.sshfl [vmem:[#allocation1 + $0x8] sm:$0xff pattern:$0x75316420]
        %v5405 = vld.sshfl [vmem:[#allocation1 + $0x10] sm:$0xff pattern:$0x75316420]
        %5406 = vrot.lane.b32.xlu0 %v5403, 126
        %v5407 = vpop.permute.xlu0 %5406
        %5408 = vrot.lane.b32.xlu0 %v5404, 126
        %v5409 = vpop.permute.xlu0 %5408
        %5410 = vrot.lane.b32.xlu0 %v5405, 126
        %v5411 = vpop.permute.xlu0 %5410
        %v5412 = vsel %vm2521, %v5407, %v5409
        %v5413 = vsel %vm2521, %v5409, %v5411
        %v5415 = vsel %vm294, %v5082, 0
        %v5417 = vsel %vm298, %v5412, 0
        %v5419 = vsel %vm298, %v5413, 0
        %5421 = vmatpush.msra.mxu0 0.0
        %5422 = vmatpush.msra.mxu0 0.0
        %5423 = vmatpush.msra.mxu0 0.0
        %5424 = vmatpush.msra.mxu0 0.0
        %5425 = vmatpush.msra.mxu0 0.0
        %5426 = vmatpush.msra.mxu0 0.0
        %5427 = vmatpush.msra.mxu0 0.0
        %5428 = vmatpush.msra.mxu0 0.0
        %5429 = vmatpush.msra.mxu0 0.0
        %5430 = vmatpush.msra.mxu0 0.0
        %5431 = vmatpush.msra.mxu0 0.0
        %5432 = vmatpush.msra.mxu0 0.0
        %5433 = vmatpush.msra.mxu0 0.0
        %5434 = vmatpush.msra.mxu0 0.0
        %5435 = vmatpush.msra.mxu0 0.0
        %v5436 = vand.u32 %v5417, 4294901760
        %5437 = vmatpush.msra.mxu0 %v5436
        %v5438 = vand.u32 %v5415, 4294901760
        %v5439 = vsub.f32 %v5415, %v5438
        %v5440 = vand.u32 %v5439, 4294901760
        %v5441 = vsub.f32 %v5439, %v5440
        %v5442 = vand.u32 %v5441, 4294901760
        %5443 = vmatmul.f32.gmra.mxu0 %v5442
        %v5444 = vpop.f32.mrf.mxu0
        %v5445 = vadd.f32 %v5252, %v5444
        %5446 = vdwg.mxu0
        %5447 = vmatpush.msra.mxu0 0.0
        %5448 = vmatpush.msra.mxu0 0.0
        %5449 = vmatpush.msra.mxu0 0.0
        %5450 = vmatpush.msra.mxu0 0.0
        %5451 = vmatpush.msra.mxu0 0.0
        %5452 = vmatpush.msra.mxu0 0.0
        %5453 = vmatpush.msra.mxu0 0.0
        %5454 = vmatpush.msra.mxu0 0.0
        %5455 = vmatpush.msra.mxu0 0.0
        %5456 = vmatpush.msra.mxu0 0.0
        %5457 = vmatpush.msra.mxu0 0.0
        %5458 = vmatpush.msra.mxu0 0.0
        %5459 = vmatpush.msra.mxu0 0.0
        %5460 = vmatpush.msra.mxu0 0.0
        %5461 = vmatpush.msra.mxu0 0.0
        %v5462 = vand.u32 %v5417, 4294901760
        %v5463 = vsub.f32 %v5417, %v5462
        %v5464 = vand.u32 %v5463, 4294901760
        %v5465 = vsub.f32 %v5463, %v5464
        %v5466 = vand.u32 %v5465, 4294901760
        %5467 = vmatpush.msra.mxu0 %v5466
        %v5468 = vand.u32 %v5415, 4294901760
        %5469 = vmatmul.f32.gmra.mxu0 %v5468
        %v5470 = vpop.f32.mrf.mxu0
        %v5471 = vadd.f32 %v5445, %v5470
        %5472 = vdwg.mxu0
        %5473 = vmatpush.msra.mxu0 0.0
        %5474 = vmatpush.msra.mxu0 0.0
        %5475 = vmatpush.msra.mxu0 0.0
        %5476 = vmatpush.msra.mxu0 0.0
        %5477 = vmatpush.msra.mxu0 0.0
        %5478 = vmatpush.msra.mxu0 0.0
        %5479 = vmatpush.msra.mxu0 0.0
        %5480 = vmatpush.msra.mxu0 0.0
        %5481 = vmatpush.msra.mxu0 0.0
        %5482 = vmatpush.msra.mxu0 0.0
        %5483 = vmatpush.msra.mxu0 0.0
        %5484 = vmatpush.msra.mxu0 0.0
        %5485 = vmatpush.msra.mxu0 0.0
        %5486 = vmatpush.msra.mxu0 0.0
        %5487 = vmatpush.msra.mxu0 0.0
        %v5488 = vand.u32 %v5417, 4294901760
        %v5489 = vsub.f32 %v5417, %v5488
        %5490 = vmatpush.msra.mxu0 %v5489
        %v5491 = vand.u32 %v5415, 4294901760
        %v5492 = vsub.f32 %v5415, %v5491
        %5493 = vmatmul.f32.gmra.mxu0 %v5492
        %v5494 = vpop.f32.mrf.mxu0
        %v5495 = vadd.f32 %v5471, %v5494
        %5496 = vdwg.mxu0
        %5497 = vmatpush.msra.mxu0 0.0
        %5498 = vmatpush.msra.mxu0 0.0
        %5499 = vmatpush.msra.mxu0 0.0
        %5500 = vmatpush.msra.mxu0 0.0
        %5501 = vmatpush.msra.mxu0 0.0
        %5502 = vmatpush.msra.mxu0 0.0
        %5503 = vmatpush.msra.mxu0 0.0
        %5504 = vmatpush.msra.mxu0 0.0
        %5505 = vmatpush.msra.mxu0 0.0
        %5506 = vmatpush.msra.mxu0 0.0
        %5507 = vmatpush.msra.mxu0 0.0
        %5508 = vmatpush.msra.mxu0 0.0
        %5509 = vmatpush.msra.mxu0 0.0
        %5510 = vmatpush.msra.mxu0 0.0
        %5511 = vmatpush.msra.mxu0 0.0
        %v5512 = vand.u32 %v5417, 4294901760
        %5513 = vmatpush.msra.mxu0 %v5512
        %v5514 = vand.u32 %v5415, 4294901760
        %v5515 = vsub.f32 %v5415, %v5514
        %v5516 = vand.u32 %v5515, 4294901760
        %5517 = vmatmul.f32.gmra.mxu0 %v5516
        %v5518 = vpop.f32.mrf.mxu0
        %v5519 = vadd.f32 %v5495, %v5518
        %5520 = vdwg.mxu0
        %5521 = vmatpush.msra.mxu0 0.0
        %5522 = vmatpush.msra.mxu0 0.0
        %5523 = vmatpush.msra.mxu0 0.0
        %5524 = vmatpush.msra.mxu0 0.0
        %5525 = vmatpush.msra.mxu0 0.0
        %5526 = vmatpush.msra.mxu0 0.0
        %5527 = vmatpush.msra.mxu0 0.0
        %5528 = vmatpush.msra.mxu0 0.0
        %5529 = vmatpush.msra.mxu0 0.0
        %5530 = vmatpush.msra.mxu0 0.0
        %5531 = vmatpush.msra.mxu0 0.0
        %5532 = vmatpush.msra.mxu0 0.0
        %5533 = vmatpush.msra.mxu0 0.0
        %5534 = vmatpush.msra.mxu0 0.0
        %5535 = vmatpush.msra.mxu0 0.0
        %v5536 = vand.u32 %v5417, 4294901760
        %v5537 = vsub.f32 %v5417, %v5536
        %v5538 = vand.u32 %v5537, 4294901760
        %5539 = vmatpush.msra.mxu0 %v5538
        %v5540 = vand.u32 %v5415, 4294901760
        %5541 = vmatmul.f32.gmra.mxu0 %v5540
        %v5542 = vpop.f32.mrf.mxu0
        %v5543 = vadd.f32 %v5519, %v5542
        %5544 = vdwg.mxu0
        %5545 = vmatpush.msra.mxu0 0.0
        %5546 = vmatpush.msra.mxu0 0.0
        %5547 = vmatpush.msra.mxu0 0.0
        %5548 = vmatpush.msra.mxu0 0.0
        %5549 = vmatpush.msra.mxu0 0.0
        %5550 = vmatpush.msra.mxu0 0.0
        %5551 = vmatpush.msra.mxu0 0.0
        %5552 = vmatpush.msra.mxu0 0.0
        %5553 = vmatpush.msra.mxu0 0.0
        %5554 = vmatpush.msra.mxu0 0.0
        %5555 = vmatpush.msra.mxu0 0.0
        %5556 = vmatpush.msra.mxu0 0.0
        %5557 = vmatpush.msra.mxu0 0.0
        %5558 = vmatpush.msra.mxu0 0.0
        %5559 = vmatpush.msra.mxu0 0.0
        %v5560 = vand.u32 %v5417, 4294901760
        %5561 = vmatpush.msra.mxu0 %v5560
        %v5562 = vand.u32 %v5415, 4294901760
        %5563 = vmatmul.f32.gmra.mxu0 %v5562
        %v5564 = vpop.f32.mrf.mxu0
        %v5565 = vadd.f32 %v5543, %v5564
        %5566 = vdwg.mxu0
        %5567 = vmatpush.msra.mxu0 0.0
        %5568 = vmatpush.msra.mxu0 0.0
        %5569 = vmatpush.msra.mxu0 0.0
        %5570 = vmatpush.msra.mxu0 0.0
        %5571 = vmatpush.msra.mxu0 0.0
        %5572 = vmatpush.msra.mxu0 0.0
        %5573 = vmatpush.msra.mxu0 0.0
        %5574 = vmatpush.msra.mxu0 0.0
        %5575 = vmatpush.msra.mxu0 0.0
        %5576 = vmatpush.msra.mxu0 0.0
        %5577 = vmatpush.msra.mxu0 0.0
        %5578 = vmatpush.msra.mxu0 0.0
        %5579 = vmatpush.msra.mxu0 0.0
        %5580 = vmatpush.msra.mxu0 0.0
        %5581 = vmatpush.msra.mxu0 0.0
        %v5582 = vand.u32 %v5419, 4294901760
        %5583 = vmatpush.msra.mxu0 %v5582
        %v5584 = vand.u32 %v5415, 4294901760
        %v5585 = vsub.f32 %v5415, %v5584
        %v5586 = vand.u32 %v5585, 4294901760
        %v5587 = vsub.f32 %v5585, %v5586
        %v5588 = vand.u32 %v5587, 4294901760
        %5589 = vmatmul.f32.gmra.mxu0 %v5588
        %v5590 = vpop.f32.mrf.mxu0
        %v5591 = vadd.f32 %v5398, %v5590
        %5592 = vdwg.mxu0
        %5593 = vmatpush.msra.mxu0 0.0
        %5594 = vmatpush.msra.mxu0 0.0
        %5595 = vmatpush.msra.mxu0 0.0
        %5596 = vmatpush.msra.mxu0 0.0
        %5597 = vmatpush.msra.mxu0 0.0
        %5598 = vmatpush.msra.mxu0 0.0
        %5599 = vmatpush.msra.mxu0 0.0
        %5600 = vmatpush.msra.mxu0 0.0
        %5601 = vmatpush.msra.mxu0 0.0
        %5602 = vmatpush.msra.mxu0 0.0
        %5603 = vmatpush.msra.mxu0 0.0
        %5604 = vmatpush.msra.mxu0 0.0
        %5605 = vmatpush.msra.mxu0 0.0
        %5606 = vmatpush.msra.mxu0 0.0
        %5607 = vmatpush.msra.mxu0 0.0
        %v5608 = vand.u32 %v5419, 4294901760
        %v5609 = vsub.f32 %v5419, %v5608
        %v5610 = vand.u32 %v5609, 4294901760
        %v5611 = vsub.f32 %v5609, %v5610
        %v5612 = vand.u32 %v5611, 4294901760
        %5613 = vmatpush.msra.mxu0 %v5612
        %v5614 = vand.u32 %v5415, 4294901760
        %5615 = vmatmul.f32.gmra.mxu0 %v5614
        %v5616 = vpop.f32.mrf.mxu0
        %v5617 = vadd.f32 %v5591, %v5616
        %5618 = vdwg.mxu0
        %5619 = vmatpush.msra.mxu0 0.0
        %5620 = vmatpush.msra.mxu0 0.0
        %5621 = vmatpush.msra.mxu0 0.0
        %5622 = vmatpush.msra.mxu0 0.0
        %5623 = vmatpush.msra.mxu0 0.0
        %5624 = vmatpush.msra.mxu0 0.0
        %5625 = vmatpush.msra.mxu0 0.0
        %5626 = vmatpush.msra.mxu0 0.0
        %5627 = vmatpush.msra.mxu0 0.0
        %5628 = vmatpush.msra.mxu0 0.0
        %5629 = vmatpush.msra.mxu0 0.0
        %5630 = vmatpush.msra.mxu0 0.0
        %5631 = vmatpush.msra.mxu0 0.0
        %5632 = vmatpush.msra.mxu0 0.0
        %5633 = vmatpush.msra.mxu0 0.0
        %v5634 = vand.u32 %v5419, 4294901760
        %v5635 = vsub.f32 %v5419, %v5634
        %5636 = vmatpush.msra.mxu0 %v5635
        %v5637 = vand.u32 %v5415, 4294901760
        %v5638 = vsub.f32 %v5415, %v5637
        %5639 = vmatmul.f32.gmra.mxu0 %v5638
        %v5640 = vpop.f32.mrf.mxu0
        %v5641 = vadd.f32 %v5617, %v5640
        %5642 = vdwg.mxu0
        %5643 = vmatpush.msra.mxu0 0.0
        %5644 = vmatpush.msra.mxu0 0.0
        %5645 = vmatpush.msra.mxu0 0.0
        %5646 = vmatpush.msra.mxu0 0.0
        %5647 = vmatpush.msra.mxu0 0.0
        %5648 = vmatpush.msra.mxu0 0.0
        %5649 = vmatpush.msra.mxu0 0.0
        %5650 = vmatpush.msra.mxu0 0.0
        %5651 = vmatpush.msra.mxu0 0.0
        %5652 = vmatpush.msra.mxu0 0.0
        %5653 = vmatpush.msra.mxu0 0.0
        %5654 = vmatpush.msra.mxu0 0.0
        %5655 = vmatpush.msra.mxu0 0.0
        %5656 = vmatpush.msra.mxu0 0.0
        %5657 = vmatpush.msra.mxu0 0.0
        %v5658 = vand.u32 %v5419, 4294901760
        %5659 = vmatpush.msra.mxu0 %v5658
        %v5660 = vand.u32 %v5415, 4294901760
        %v5661 = vsub.f32 %v5415, %v5660
        %v5662 = vand.u32 %v5661, 4294901760
        %5663 = vmatmul.f32.gmra.mxu0 %v5662
        %v5664 = vpop.f32.mrf.mxu0
        %v5665 = vadd.f32 %v5641, %v5664
        %5666 = vdwg.mxu0
        %5667 = vmatpush.msra.mxu0 0.0
        %5668 = vmatpush.msra.mxu0 0.0
        %5669 = vmatpush.msra.mxu0 0.0
        %5670 = vmatpush.msra.mxu0 0.0
        %5671 = vmatpush.msra.mxu0 0.0
        %5672 = vmatpush.msra.mxu0 0.0
        %5673 = vmatpush.msra.mxu0 0.0
        %5674 = vmatpush.msra.mxu0 0.0
        %5675 = vmatpush.msra.mxu0 0.0
        %5676 = vmatpush.msra.mxu0 0.0
        %5677 = vmatpush.msra.mxu0 0.0
        %5678 = vmatpush.msra.mxu0 0.0
        %5679 = vmatpush.msra.mxu0 0.0
        %5680 = vmatpush.msra.mxu0 0.0
        %5681 = vmatpush.msra.mxu0 0.0
        %v5682 = vand.u32 %v5419, 4294901760
        %v5683 = vsub.f32 %v5419, %v5682
        %v5684 = vand.u32 %v5683, 4294901760
        %5685 = vmatpush.msra.mxu0 %v5684
        %v5686 = vand.u32 %v5415, 4294901760
        %5687 = vmatmul.f32.gmra.mxu0 %v5686
        %v5688 = vpop.f32.mrf.mxu0
        %v5689 = vadd.f32 %v5665, %v5688
        %5690 = vdwg.mxu0
        %5691 = vmatpush.msra.mxu0 0.0
        %5692 = vmatpush.msra.mxu0 0.0
        %5693 = vmatpush.msra.mxu0 0.0
        %5694 = vmatpush.msra.mxu0 0.0
        %5695 = vmatpush.msra.mxu0 0.0
        %5696 = vmatpush.msra.mxu0 0.0
        %5697 = vmatpush.msra.mxu0 0.0
        %5698 = vmatpush.msra.mxu0 0.0
        %5699 = vmatpush.msra.mxu0 0.0
        %5700 = vmatpush.msra.mxu0 0.0
        %5701 = vmatpush.msra.mxu0 0.0
        %5702 = vmatpush.msra.mxu0 0.0
        %5703 = vmatpush.msra.mxu0 0.0
        %5704 = vmatpush.msra.mxu0 0.0
        %5705 = vmatpush.msra.mxu0 0.0
        %v5706 = vand.u32 %v5419, 4294901760
        %5707 = vmatpush.msra.mxu0 %v5706
        %v5708 = vand.u32 %v5415, 4294901760
        %5709 = vmatmul.f32.gmra.mxu0 %v5708
        %v5710 = vpop.f32.mrf.mxu0
        %v5711 = vadd.f32 %v5689, %v5710
        %5712 = vdwg.mxu0
        %v5713 = vld [vmem:[#allocation2] sm:$0xff]
        %v5714 = vld [vmem:[#allocation2 + $0x8] sm:$0xf]
        %s5715 = scalar_lea.vmem %s3, 32
        %v5716 = vld [vmem:[%s5715] sm:$0xf]
        %5719 = vst [vmem:[#allocation1] ss:$2 sm:$0xff] %v5713
        %s5720 = scalar_lea.vmem [#allocation1], 16
        %5721 = vst [vmem:[%s5720] ss:$2 sm:$0xff] %v5714
        %v5722 = vld.sshfl [vmem:[#allocation1] sm:$0xff pattern:$0x75316420]
        %v5723 = vld.sshfl [vmem:[#allocation1 + $0x8] sm:$0xff pattern:$0x75316420]
        %v5724 = vld.sshfl [vmem:[#allocation1 + $0x10] sm:$0xff pattern:$0x75316420]
        %5725 = vrot.lane.b32.xlu0 %v5722, 94
        %v5726 = vpop.permute.xlu0 %5725
        %5727 = vrot.lane.b32.xlu0 %v5723, 94
        %v5728 = vpop.permute.xlu0 %5727
        %5729 = vrot.lane.b32.xlu0 %v5724, 94
        %v5730 = vpop.permute.xlu0 %5729
        %v5731 = vsel %vm2841, %v5726, %v5728
        %v5732 = vsel %vm2841, %v5728, %v5730
        %v5734 = vsel %vm294, %v5716, 0
        %v5736 = vsel %vm298, %v5731, 0
        %v5738 = vsel %vm298, %v5732, 0
        %5740 = vmatpush.msra.mxu0 0.0
        %5741 = vmatpush.msra.mxu0 0.0
        %5742 = vmatpush.msra.mxu0 0.0
        %5743 = vmatpush.msra.mxu0 0.0
        %5744 = vmatpush.msra.mxu0 0.0
        %5745 = vmatpush.msra.mxu0 0.0
        %5746 = vmatpush.msra.mxu0 0.0
        %5747 = vmatpush.msra.mxu0 0.0
        %5748 = vmatpush.msra.mxu0 0.0
        %5749 = vmatpush.msra.mxu0 0.0
        %5750 = vmatpush.msra.mxu0 0.0
        %5751 = vmatpush.msra.mxu0 0.0
        %5752 = vmatpush.msra.mxu0 0.0
        %5753 = vmatpush.msra.mxu0 0.0
        %5754 = vmatpush.msra.mxu0 0.0
        %v5755 = vand.u32 %v5736, 4294901760
        %5756 = vmatpush.msra.mxu0 %v5755
        %v5757 = vand.u32 %v5734, 4294901760
        %v5758 = vsub.f32 %v5734, %v5757
        %v5759 = vand.u32 %v5758, 4294901760
        %v5760 = vsub.f32 %v5758, %v5759
        %v5761 = vand.u32 %v5760, 4294901760
        %5762 = vmatmul.f32.gmra.mxu0 %v5761
        %v5763 = vpop.f32.mrf.mxu0
        %v5764 = vadd.f32 0.0, %v5763
        %5765 = vdwg.mxu0
        %5766 = vmatpush.msra.mxu0 0.0
        %5767 = vmatpush.msra.mxu0 0.0
        %5768 = vmatpush.msra.mxu0 0.0
        %5769 = vmatpush.msra.mxu0 0.0
        %5770 = vmatpush.msra.mxu0 0.0
        %5771 = vmatpush.msra.mxu0 0.0
        %5772 = vmatpush.msra.mxu0 0.0
        %5773 = vmatpush.msra.mxu0 0.0
        %5774 = vmatpush.msra.mxu0 0.0
        %5775 = vmatpush.msra.mxu0 0.0
        %5776 = vmatpush.msra.mxu0 0.0
        %5777 = vmatpush.msra.mxu0 0.0
        %5778 = vmatpush.msra.mxu0 0.0
        %5779 = vmatpush.msra.mxu0 0.0
        %5780 = vmatpush.msra.mxu0 0.0
        %v5781 = vand.u32 %v5736, 4294901760
        %v5782 = vsub.f32 %v5736, %v5781
        %v5783 = vand.u32 %v5782, 4294901760
        %v5784 = vsub.f32 %v5782, %v5783
        %v5785 = vand.u32 %v5784, 4294901760
        %5786 = vmatpush.msra.mxu0 %v5785
        %v5787 = vand.u32 %v5734, 4294901760
        %5788 = vmatmul.f32.gmra.mxu0 %v5787
        %v5789 = vpop.f32.mrf.mxu0
        %v5790 = vadd.f32 %v5764, %v5789
        %5791 = vdwg.mxu0
        %5792 = vmatpush.msra.mxu0 0.0
        %5793 = vmatpush.msra.mxu0 0.0
        %5794 = vmatpush.msra.mxu0 0.0
        %5795 = vmatpush.msra.mxu0 0.0
        %5796 = vmatpush.msra.mxu0 0.0
        %5797 = vmatpush.msra.mxu0 0.0
        %5798 = vmatpush.msra.mxu0 0.0
        %5799 = vmatpush.msra.mxu0 0.0
        %5800 = vmatpush.msra.mxu0 0.0
        %5801 = vmatpush.msra.mxu0 0.0
        %5802 = vmatpush.msra.mxu0 0.0
        %5803 = vmatpush.msra.mxu0 0.0
        %5804 = vmatpush.msra.mxu0 0.0
        %5805 = vmatpush.msra.mxu0 0.0
        %5806 = vmatpush.msra.mxu0 0.0
        %v5807 = vand.u32 %v5736, 4294901760
        %v5808 = vsub.f32 %v5736, %v5807
        %5809 = vmatpush.msra.mxu0 %v5808
        %v5810 = vand.u32 %v5734, 4294901760
        %v5811 = vsub.f32 %v5734, %v5810
        %5812 = vmatmul.f32.gmra.mxu0 %v5811
        %v5813 = vpop.f32.mrf.mxu0
        %v5814 = vadd.f32 %v5790, %v5813
        %5815 = vdwg.mxu0
        %5816 = vmatpush.msra.mxu0 0.0
        %5817 = vmatpush.msra.mxu0 0.0
        %5818 = vmatpush.msra.mxu0 0.0
        %5819 = vmatpush.msra.mxu0 0.0
        %5820 = vmatpush.msra.mxu0 0.0
        %5821 = vmatpush.msra.mxu0 0.0
        %5822 = vmatpush.msra.mxu0 0.0
        %5823 = vmatpush.msra.mxu0 0.0
        %5824 = vmatpush.msra.mxu0 0.0
        %5825 = vmatpush.msra.mxu0 0.0
        %5826 = vmatpush.msra.mxu0 0.0
        %5827 = vmatpush.msra.mxu0 0.0
        %5828 = vmatpush.msra.mxu0 0.0
        %5829 = vmatpush.msra.mxu0 0.0
        %5830 = vmatpush.msra.mxu0 0.0
        %v5831 = vand.u32 %v5736, 4294901760
        %5832 = vmatpush.msra.mxu0 %v5831
        %v5833 = vand.u32 %v5734, 4294901760
        %v5834 = vsub.f32 %v5734, %v5833
        %v5835 = vand.u32 %v5834, 4294901760
        %5836 = vmatmul.f32.gmra.mxu0 %v5835
        %v5837 = vpop.f32.mrf.mxu0
        %v5838 = vadd.f32 %v5814, %v5837
        %5839 = vdwg.mxu0
        %5840 = vmatpush.msra.mxu0 0.0
        %5841 = vmatpush.msra.mxu0 0.0
        %5842 = vmatpush.msra.mxu0 0.0
        %5843 = vmatpush.msra.mxu0 0.0
        %5844 = vmatpush.msra.mxu0 0.0
        %5845 = vmatpush.msra.mxu0 0.0
        %5846 = vmatpush.msra.mxu0 0.0
        %5847 = vmatpush.msra.mxu0 0.0
        %5848 = vmatpush.msra.mxu0 0.0
        %5849 = vmatpush.msra.mxu0 0.0
        %5850 = vmatpush.msra.mxu0 0.0
        %5851 = vmatpush.msra.mxu0 0.0
        %5852 = vmatpush.msra.mxu0 0.0
        %5853 = vmatpush.msra.mxu0 0.0
        %5854 = vmatpush.msra.mxu0 0.0
        %v5855 = vand.u32 %v5736, 4294901760
        %v5856 = vsub.f32 %v5736, %v5855
        %v5857 = vand.u32 %v5856, 4294901760
        %5858 = vmatpush.msra.mxu0 %v5857
        %v5859 = vand.u32 %v5734, 4294901760
        %5860 = vmatmul.f32.gmra.mxu0 %v5859
        %v5861 = vpop.f32.mrf.mxu0
        %v5862 = vadd.f32 %v5838, %v5861
        %5863 = vdwg.mxu0
        %5864 = vmatpush.msra.mxu0 0.0
        %5865 = vmatpush.msra.mxu0 0.0
        %5866 = vmatpush.msra.mxu0 0.0
        %5867 = vmatpush.msra.mxu0 0.0
        %5868 = vmatpush.msra.mxu0 0.0
        %5869 = vmatpush.msra.mxu0 0.0
        %5870 = vmatpush.msra.mxu0 0.0
        %5871 = vmatpush.msra.mxu0 0.0
        %5872 = vmatpush.msra.mxu0 0.0
        %5873 = vmatpush.msra.mxu0 0.0
        %5874 = vmatpush.msra.mxu0 0.0
        %5875 = vmatpush.msra.mxu0 0.0
        %5876 = vmatpush.msra.mxu0 0.0
        %5877 = vmatpush.msra.mxu0 0.0
        %5878 = vmatpush.msra.mxu0 0.0
        %v5879 = vand.u32 %v5736, 4294901760
        %5880 = vmatpush.msra.mxu0 %v5879
        %v5881 = vand.u32 %v5734, 4294901760
        %5882 = vmatmul.f32.gmra.mxu0 %v5881
        %v5883 = vpop.f32.mrf.mxu0
        %v5884 = vadd.f32 %v5862, %v5883
        %5885 = vdwg.mxu0
        %5886 = vmatpush.msra.mxu0 0.0
        %5887 = vmatpush.msra.mxu0 0.0
        %5888 = vmatpush.msra.mxu0 0.0
        %5889 = vmatpush.msra.mxu0 0.0
        %5890 = vmatpush.msra.mxu0 0.0
        %5891 = vmatpush.msra.mxu0 0.0
        %5892 = vmatpush.msra.mxu0 0.0
        %5893 = vmatpush.msra.mxu0 0.0
        %5894 = vmatpush.msra.mxu0 0.0
        %5895 = vmatpush.msra.mxu0 0.0
        %5896 = vmatpush.msra.mxu0 0.0
        %5897 = vmatpush.msra.mxu0 0.0
        %5898 = vmatpush.msra.mxu0 0.0
        %5899 = vmatpush.msra.mxu0 0.0
        %5900 = vmatpush.msra.mxu0 0.0
        %v5901 = vand.u32 %v5738, 4294901760
        %5902 = vmatpush.msra.mxu0 %v5901
        %v5903 = vand.u32 %v5734, 4294901760
        %v5904 = vsub.f32 %v5734, %v5903
        %v5905 = vand.u32 %v5904, 4294901760
        %v5906 = vsub.f32 %v5904, %v5905
        %v5907 = vand.u32 %v5906, 4294901760
        %5908 = vmatmul.f32.gmra.mxu0 %v5907
        %v5909 = vpop.f32.mrf.mxu0
        %v5910 = vadd.f32 0.0, %v5909
        %5911 = vdwg.mxu0
        %5912 = vmatpush.msra.mxu0 0.0
        %5913 = vmatpush.msra.mxu0 0.0
        %5914 = vmatpush.msra.mxu0 0.0
        %5915 = vmatpush.msra.mxu0 0.0
        %5916 = vmatpush.msra.mxu0 0.0
        %5917 = vmatpush.msra.mxu0 0.0
        %5918 = vmatpush.msra.mxu0 0.0
        %5919 = vmatpush.msra.mxu0 0.0
        %5920 = vmatpush.msra.mxu0 0.0
        %5921 = vmatpush.msra.mxu0 0.0
        %5922 = vmatpush.msra.mxu0 0.0
        %5923 = vmatpush.msra.mxu0 0.0
        %5924 = vmatpush.msra.mxu0 0.0
        %5925 = vmatpush.msra.mxu0 0.0
        %5926 = vmatpush.msra.mxu0 0.0
        %v5927 = vand.u32 %v5738, 4294901760
        %v5928 = vsub.f32 %v5738, %v5927
        %v5929 = vand.u32 %v5928, 4294901760
        %v5930 = vsub.f32 %v5928, %v5929
        %v5931 = vand.u32 %v5930, 4294901760
        %5932 = vmatpush.msra.mxu0 %v5931
        %v5933 = vand.u32 %v5734, 4294901760
        %5934 = vmatmul.f32.gmra.mxu0 %v5933
        %v5935 = vpop.f32.mrf.mxu0
        %v5936 = vadd.f32 %v5910, %v5935
        %5937 = vdwg.mxu0
        %5938 = vmatpush.msra.mxu0 0.0
        %5939 = vmatpush.msra.mxu0 0.0
        %5940 = vmatpush.msra.mxu0 0.0
        %5941 = vmatpush.msra.mxu0 0.0
        %5942 = vmatpush.msra.mxu0 0.0
        %5943 = vmatpush.msra.mxu0 0.0
        %5944 = vmatpush.msra.mxu0 0.0
        %5945 = vmatpush.msra.mxu0 0.0
        %5946 = vmatpush.msra.mxu0 0.0
        %5947 = vmatpush.msra.mxu0 0.0
        %5948 = vmatpush.msra.mxu0 0.0
        %5949 = vmatpush.msra.mxu0 0.0
        %5950 = vmatpush.msra.mxu0 0.0
        %5951 = vmatpush.msra.mxu0 0.0
        %5952 = vmatpush.msra.mxu0 0.0
        %v5953 = vand.u32 %v5738, 4294901760
        %v5954 = vsub.f32 %v5738, %v5953
        %5955 = vmatpush.msra.mxu0 %v5954
        %v5956 = vand.u32 %v5734, 4294901760
        %v5957 = vsub.f32 %v5734, %v5956
        %5958 = vmatmul.f32.gmra.mxu0 %v5957
        %v5959 = vpop.f32.mrf.mxu0
        %v5960 = vadd.f32 %v5936, %v5959
        %5961 = vdwg.mxu0
        %5962 = vmatpush.msra.mxu0 0.0
        %5963 = vmatpush.msra.mxu0 0.0
        %5964 = vmatpush.msra.mxu0 0.0
        %5965 = vmatpush.msra.mxu0 0.0
        %5966 = vmatpush.msra.mxu0 0.0
        %5967 = vmatpush.msra.mxu0 0.0
        %5968 = vmatpush.msra.mxu0 0.0
        %5969 = vmatpush.msra.mxu0 0.0
        %5970 = vmatpush.msra.mxu0 0.0
        %5971 = vmatpush.msra.mxu0 0.0
        %5972 = vmatpush.msra.mxu0 0.0
        %5973 = vmatpush.msra.mxu0 0.0
        %5974 = vmatpush.msra.mxu0 0.0
        %5975 = vmatpush.msra.mxu0 0.0
        %5976 = vmatpush.msra.mxu0 0.0
        %v5977 = vand.u32 %v5738, 4294901760
        %5978 = vmatpush.msra.mxu0 %v5977
        %v5979 = vand.u32 %v5734, 4294901760
        %v5980 = vsub.f32 %v5734, %v5979
        %v5981 = vand.u32 %v5980, 4294901760
        %5982 = vmatmul.f32.gmra.mxu0 %v5981
        %v5983 = vpop.f32.mrf.mxu0
        %v5984 = vadd.f32 %v5960, %v5983
        %5985 = vdwg.mxu0
        %5986 = vmatpush.msra.mxu0 0.0
        %5987 = vmatpush.msra.mxu0 0.0
        %5988 = vmatpush.msra.mxu0 0.0
        %5989 = vmatpush.msra.mxu0 0.0
        %5990 = vmatpush.msra.mxu0 0.0
        %5991 = vmatpush.msra.mxu0 0.0
        %5992 = vmatpush.msra.mxu0 0.0
        %5993 = vmatpush.msra.mxu0 0.0
        %5994 = vmatpush.msra.mxu0 0.0
        %5995 = vmatpush.msra.mxu0 0.0
        %5996 = vmatpush.msra.mxu0 0.0
        %5997 = vmatpush.msra.mxu0 0.0
        %5998 = vmatpush.msra.mxu0 0.0
        %5999 = vmatpush.msra.mxu0 0.0
        %6000 = vmatpush.msra.mxu0 0.0
        %v6001 = vand.u32 %v5738, 4294901760
        %v6002 = vsub.f32 %v5738, %v6001
        %v6003 = vand.u32 %v6002, 4294901760
        %6004 = vmatpush.msra.mxu0 %v6003
        %v6005 = vand.u32 %v5734, 4294901760
        %6006 = vmatmul.f32.gmra.mxu0 %v6005
        %v6007 = vpop.f32.mrf.mxu0
        %v6008 = vadd.f32 %v5984, %v6007
        %6009 = vdwg.mxu0
        %6010 = vmatpush.msra.mxu0 0.0
        %6011 = vmatpush.msra.mxu0 0.0
        %6012 = vmatpush.msra.mxu0 0.0
        %6013 = vmatpush.msra.mxu0 0.0
        %6014 = vmatpush.msra.mxu0 0.0
        %6015 = vmatpush.msra.mxu0 0.0
        %6016 = vmatpush.msra.mxu0 0.0
        %6017 = vmatpush.msra.mxu0 0.0
        %6018 = vmatpush.msra.mxu0 0.0
        %6019 = vmatpush.msra.mxu0 0.0
        %6020 = vmatpush.msra.mxu0 0.0
        %6021 = vmatpush.msra.mxu0 0.0
        %6022 = vmatpush.msra.mxu0 0.0
        %6023 = vmatpush.msra.mxu0 0.0
        %6024 = vmatpush.msra.mxu0 0.0
        %v6025 = vand.u32 %v5738, 4294901760
        %6026 = vmatpush.msra.mxu0 %v6025
        %v6027 = vand.u32 %v5734, 4294901760
        %6028 = vmatmul.f32.gmra.mxu0 %v6027
        %v6029 = vpop.f32.mrf.mxu0
        %v6030 = vadd.f32 %v6008, %v6029
        %6031 = vdwg.mxu0
        %v6032 = vadd.f32 %v5565, %v5884
        %v6033 = vadd.f32 %v5711, %v6030
        %v6034 = vsel %vm3147, %v6032, 0.0
        %v6035 = vsel %vm3148, %v6033, 0.0
        %v6036 = vadd.f32 %v5077, %v6034
        %v6037 = vadd.f32 %v5078, %v6035
        %v6038 = vld [vmem:[%s4] sm:$0xf]
        %6040 = vset.pattern.permute.xlu0 0
        %6041 = vperm.xlu0 %6040, %v6038
        %v6042 = vpop.permute.xlu0 %6041
        %v6044 = vadd.f32 %v6036, %v6042
        %v6045 = vadd.f32 %v6037, %v6042
        %v6048 = vrot.slane %v6045, 4
        %v6049 = vsel %vm298, %v6044, %v6048
        %v6051 = vadd.f32 %v254, %v6049
        %v6052 = vmax.f32 %v6051, 0.0
        %6053 = vst [vmem:[%s217] sm:$0xff] %v6052
        %s6054 = sand.u32 %s137, 1
        %s6055 = scalar_lea.sflag [#allocation4], %s6054
        %s6056 = sand.u32 %s137, 1
        %s6057 = smul.addr %s6056, 8
        %s6058 = scalar_lea.vmem [#allocation3], %s6057
        // Predicated region
        $region41: #{tpu_custom_call.1} parent=39 // pred_check
          %p6059 = pneg %p147
        $region42: #{tpu_custom_call.1} parent=39 // pred_check_branch
          %6061 = sbr.rel (%p6059) target = $region44
        $region43: #{tpu_custom_call.1} parent=39 // pred_region
          %6063 = vsyncadd %s6055, 0
          %s6064 = smul.addr %s19, 2
          %s6065 = smul.addr %s6064, 4
          %s6066 = scalar_lea.hbm %s5, %s6065
          %s6068 = sshll.u32 %s6058, 4
          %s6069 = int_to_ptr.vmem [resolvable:$true] %s6068
          %s6070 = sshll.u32 %s6066, 4
          %s6071 = int_to_ptr.hbm [resolvable:$true] %s6070
          %6073 = dma.vmem_to_hbm [thread:$0]  %s6069, 128, %s6071, %s6055
        $region44: #{tpu_custom_call.1} parent=39 // pred_fallthru
          _
      $region40: #{tpu_custom_call.1} parent=5 // pred_fallthru
        _
      %p6074 = scmp.le.s32.totalorder 2, %s14
      // Predicated region
      $region45: #{tpu_custom_call.1} parent=5 // pred_check
        %p6075 = pneg %p6074
      $region46: #{tpu_custom_call.1} parent=5 // pred_check_branch
        %6077 = sbr.rel (%p6075) target = $region48
      $region47: #{tpu_custom_call.1} parent=5 // pred_region
        %s6078 = ssub.s32 %s14, 2
        // Predicated region
        $region49: #{tpu_custom_call.1} parent=47 // pred_check
          %p6079 = pneg %p153
        $region50: #{tpu_custom_call.1} parent=47 // pred_check_branch
          %6081 = sbr.rel (%p6079) target = $region52
        $region51: #{tpu_custom_call.1} parent=47 // pred_region
          %s6082 = sand.u32 %s138, 1
          %s6083 = scalar_lea.sflag [#allocation4], %s6082
          %s6084 = sand.u32 %s138, 1
          %s6085 = smul.addr %s6084, 8
          %s6086 = scalar_lea.vmem [#allocation3], %s6085
          %6088 = dma.done %s6083, 128
        $region52: #{tpu_custom_call.1} parent=47 // pred_fallthru
          _
      $region48: #{tpu_custom_call.1} parent=5 // pred_fallthru
        _
    $region6: #{tpu_custom_call.1} parent=1 // loop_footer
      %s18 = sadd.s32 1, %s14
    $region7: #{tpu_custom_call.1} parent=1 // loop_footer_branch
      %13 = sbr.rel target = $region3
    $region8: #{tpu_custom_call.1} parent=1 // loop_exit
      _
    %6089 = vsyncpa [#allocation4], 1
    %s6090 = scalar_lea.sflag [#allocation4], 1
    %6091 = vsyncpa %s6090, 1

</llo_original>
